<compile_context>
chip_gen: v6e
topology: v6e:2x2x1
jax: 0.10.0
libtpu: 0.0.40
codegen_flags: <defaults>
</compile_context>

<pallas_src>
import functools

import jax
import jax.numpy as jnp
from jax import lax
from jax.experimental import pallas as pl
from jax.experimental.pallas import tpu as pltpu

# ----- module hyper-parameters (from the PyTorch source) -----
HIDDEN_SIZE = 128
INPUT_SIZE = 1
KERNEL_SIZE = 3
NUM_LAYERS = 5
OUTPUT_SIZE = 2
BN_EPS = 1e-5
LANES = 128  # FC output padded to a full lane width


def tcn_kernel(x_ref, w0_ref, w_ref, g_ref, beta_ref, fcw_ref, fcb_ref, o_ref,
               *, seq_len, batch):
    """Fused TCN forward.

    x_ref    : (L*B, 1)  f32   input, time-major flattened (row = t*B + b)
    w0_ref   : (K, 1, C) f32   layer-0 conv taps for the single input channel
    w_ref    : (NUM_LAYERS-1, C, 3C) bf16  layers 1.. taps packed along N
                                           (cols k*C:(k+1)*C = tap k, cin->cout)
    g_ref    : (NUM_LAYERS, 1, C) f32  batchnorm gamma
    beta_ref : (NUM_LAYERS, 1, C) f32  batchnorm beta
    fcw_ref  : (C, 128) f32    fc weight, transposed + zero padded to 128 lanes
    fcb_ref  : (1, 128) f32    fc bias, zero padded
    o_ref    : (B, 128) f32    output (first OUTPUT_SIZE columns are real)
    """
    LB = x_ref.shape[0]
    C = g_ref.shape[-1]
    n_layers = g_ref.shape[0]
    B, L = batch, seq_len

    # Boundary masks over the time-major flattened rows, hoisted out of the
    # layer loop:  row i = t*B + b  ->  t == 0 iff i < B,  t == L-1 iff
    # i >= (L-1)*B.  (No modulo needed thanks to the time-major layout.)
    row = lax.broadcasted_iota(jnp.int32, (LB, 1), 0)
    not_first = row >= B              # keep the x[t-1] tap contribution
    not_last = row < (L - 1) * B      # keep the x[t+1] tap contribution

    def conv_combine(p0, p1, p2):
        # y[t] = p0[t-1] + p1[t] + p2[t+1] with zero padding at sequence ends.
        # Shifts are XLU sublane rolls of the per-tap products; the masks zero
        # the rows that wrapped across sequence boundaries.
        y = p1 + jnp.where(not_first, pltpu.roll(p0, B, 0), 0.0)
        return y + jnp.where(not_last, pltpu.roll(p2, LB - B, 0), 0.0)

    def bn_relu(y, layer):
        # Training-mode BatchNorm1d (biased variance) + ReLU, all f32.
        # Single sweep for the statistics (E[y], E[y^2]).  The conv bias is
        # omitted everywhere: the mean subtraction here cancels it exactly.
        m = jnp.mean(y, axis=0, keepdims=True)           # (1, C)
        m2 = jnp.mean(y * y, axis=0, keepdims=True)      # (1, C)
        var = jnp.maximum(m2 - m * m, 0.0)
        scale = g_ref[layer] * lax.rsqrt(var + BN_EPS)   # (1, C)
        shift = beta_ref[layer] - m * scale
        return jnp.maximum(y * scale + shift, 0.0)

    # ---- layer 0: single input channel -> VPU broadcast multiplies ----------
    xc = x_ref[...].astype(jnp.float32)                  # (LB, 1)
    h = bn_relu(
        conv_combine(xc * w0_ref[0], xc * w0_ref[1], xc * w0_ref[2]), 0)

    # ---- layers 1..n-1: one (LB, C) @ (C, 3C) bf16 MXU matmul per layer -----
    for layer in range(1, n_layers):
        p = jnp.dot(h.astype(jnp.bfloat16), w_ref[layer - 1],
                    preferred_element_type=jnp.float32)  # (LB, 3C) f32 accum
        h = bn_relu(conv_combine(p[:, :C], p[:, C:2 * C], p[:, 2 * C:]), layer)

    # ---- last time step of every sequence = last B rows (time-major), FC ----
    last = h[(L - 1) * B:, :]                            # (B, C)
    o_ref[...] = (jnp.dot(last, fcw_ref[...], preferred_element_type=jnp.float32)
                  + fcb_ref[...]).astype(o_ref.dtype)


def tcn_forward(x, w0, w, gamma, beta, fcw, fcb):
    """x: (B, L, INPUT_SIZE) float32. Returns (B, OUTPUT_SIZE) float32."""
    B, L, cin = x.shape
    assert cin == INPUT_SIZE
    C = HIDDEN_SIZE
    LB = L * B

    # Time-major flatten: row = t*B + b, so temporal shifts become rolls by B
    # rows and the last time step is the last contiguous B rows.
    x_tm = jnp.transpose(x, (1, 0, 2)).reshape(LB, INPUT_SIZE).astype(jnp.float32)

    # Pack the three taps of layers 1.. along the output dim -> a single
    # (LB, C) @ (C, 3C) matmul per layer; store the weights as bf16 (MXU
    # operands); accumulation / elementwise stays f32 inside the kernel.
    w_packed = jnp.concatenate([w[:, 0], w[:, 1], w[:, 2]],
                               axis=-1).astype(jnp.bfloat16)   # (NL-1, C, 3C)
    w0_f32 = w0.astype(jnp.float32)                            # (K, 1, C)

    # Pad the FC to a full 128-lane output so the final store is unmasked.
    fcw_p = jnp.zeros((C, LANES), jnp.float32).at[:, :OUTPUT_SIZE].set(fcw)
    fcb_p = jnp.zeros((1, LANES), jnp.float32).at[:, :OUTPUT_SIZE].set(fcb)

    vmem = pl.BlockSpec(memory_space=pltpu.MemorySpace.VMEM)
    out = pl.pallas_call(
        functools.partial(tcn_kernel, seq_len=L, batch=B),
        out_shape=jax.ShapeDtypeStruct((B, LANES), jnp.float32),
        in_specs=[vmem] * 7,
        out_specs=vmem,
        compiler_params=pltpu.CompilerParams(
            vmem_limit_bytes=32 * 1024 * 1024),
    )(x_tm, w0_f32, w_packed, gamma, beta, fcw_p, fcb_p)
    return out[:, :OUTPUT_SIZE]


def tcn_reference(x, w0, w, b, gamma, beta, fcw, fcb,
                  matmul_dtype=jnp.float32):
    """Pure-JAX reference (full PyTorch semantics, incl. the conv bias).

    matmul_dtype=bfloat16 mimics the kernel's MXU operand cast (f32 accum).
    """
    h = x.astype(jnp.float32)                         # (B, L, Cin)
    for i in range(NUM_LAYERS):
        if i == 0:
            taps = [w0[k].astype(jnp.float32) for k in range(KERNEL_SIZE)]
            lhs = h
        else:
            taps = [w[i - 1, k].astype(matmul_dtype) for k in range(KERNEL_SIZE)]
            lhs = h.astype(matmul_dtype)
        h_prev = jnp.pad(lhs, ((0, 0), (1, 0), (0, 0)))[:, :-1, :]
        h_next = jnp.pad(lhs, ((0, 0), (0, 1), (0, 0)))[:, 1:, :]
        y = (jnp.einsum('blc,cd->bld', h_prev, taps[0],
                        preferred_element_type=jnp.float32)
             + jnp.einsum('blc,cd->bld', lhs, taps[1],
                          preferred_element_type=jnp.float32)
             + jnp.einsum('blc,cd->bld', h_next, taps[2],
                          preferred_element_type=jnp.float32)
             + b[i])
        mean = y.mean(axis=(0, 1), keepdims=True)
        var = ((y - mean) ** 2).mean(axis=(0, 1), keepdims=True)
        y = (y - mean) / jnp.sqrt(var + BN_EPS) * gamma[i] + beta[i]
        h = jnp.maximum(y, 0.0)
    last = h[:, -1, :]
    return last @ fcw + fcb


def make_params(key):
    """Deterministic synthetic parameters (f32 masters, kernel-friendly layout)."""
    C = HIDDEN_SIZE
    ks = jax.random.split(key, 7)
    w0 = 0.5 * jax.random.normal(ks[0], (KERNEL_SIZE, 1, C), jnp.float32)
    w = 0.05 * jax.random.normal(ks[1], (NUM_LAYERS - 1, KERNEL_SIZE, C, C),
                                 jnp.float32)
    b = 0.1 * jax.random.normal(ks[2], (NUM_LAYERS, 1, C), jnp.float32)
    gamma = 1.0 + 0.1 * jax.random.normal(ks[3], (NUM_LAYERS, 1, C), jnp.float32)
    beta = 0.1 * jax.random.normal(ks[4], (NUM_LAYERS, 1, C), jnp.float32)
    fcw = 0.1 * jax.random.normal(ks[5], (C, OUTPUT_SIZE), jnp.float32)
    fcb = 0.1 * jax.random.normal(ks[6], (1, OUTPUT_SIZE), jnp.float32)
    return w0, w, b, gamma, beta, fcw, fcb


if __name__ == "__main__":
    key = jax.random.PRNGKey(0)
    k_x, k_p = jax.random.split(key)

    B, L = 8, 16
    x = jax.random.normal(k_x, (B, L, INPUT_SIZE), jnp.float32)
    w0, w, b, gamma, beta, fcw, fcb = make_params(k_p)

    out = jax.block_until_ready(tcn_forward(x, w0, w, gamma, beta, fcw, fcb))
    assert out.shape == (B, OUTPUT_SIZE)

    # Tight check vs a reference that uses the same bf16 MXU operand cast
    # (validates the conv shifts / BN / FC structure).
    ref_bf16 = tcn_reference(x, w0, w, b, gamma, beta, fcw, fcb,
                             matmul_dtype=jnp.bfloat16)
    assert jnp.allclose(out, ref_bf16, atol=5e-3, rtol=5e-3), (out, ref_bf16)

    # Loose check vs the full-f32 PyTorch-semantics reference (bias included;
    # tolerance loosened for the bf16 MXU operands, per the perf review).
    ref_f32 = tcn_reference(x, w0, w, b, gamma, beta, fcw, fcb,
                            matmul_dtype=jnp.float32)
    assert jnp.allclose(out, ref_f32, atol=1e-1, rtol=1e-1), (out, ref_f32)

    print("KERNEL_OK")
</pallas_src>

<mosaic_0001>
module attributes {stable_mosaic.version = 11 : i64} {
  func.func @tcn_kernel(%arg0: memref<128x1xf32, #tpu.memory_space<vmem>>, %arg1: memref<3x1x128xf32, #tpu.memory_space<vmem>>, %arg2: memref<4x128x384xbf16, #tpu.memory_space<vmem>>, %arg3: memref<5x1x128xf32, #tpu.memory_space<vmem>>, %arg4: memref<5x1x128xf32, #tpu.memory_space<vmem>>, %arg5: memref<128x128xf32, #tpu.memory_space<vmem>>, %arg6: memref<1x128xf32, #tpu.memory_space<vmem>>, %arg7: memref<8x128xf32, #tpu.memory_space<vmem>>) attributes {dimension_semantics = [], scalar_prefetch = 0 : i64, scratch_operands = 0 : i64, tpu.core_type = #tpu.core_type<tc>} {
    %0 = tpu.iota {dimensions = array<i32: 0>} : vector<128x1xi32>
    %c8_i32 = arith.constant 8 : i32
    %1 = vector.broadcast %c8_i32 : i32 to vector<128x1xi32>
    %2 = arith.cmpi sge, %0, %1 : vector<128x1xi32>
    %c120_i32 = arith.constant 120 : i32
    %3 = vector.broadcast %c120_i32 : i32 to vector<128x1xi32>
    %4 = arith.cmpi slt, %0, %3 : vector<128x1xi32>
    %c0 = arith.constant 0 : index
    %c0_0 = arith.constant 0 : index
    %5 = vector.load %arg0[%c0, %c0_0] : memref<128x1xf32, #tpu.memory_space<vmem>>, vector<128x1xf32>
    %c0_1 = arith.constant 0 : index
    %c0_2 = arith.constant 0 : index
    %c0_3 = arith.constant 0 : index
    %6 = vector.load %arg1[%c0_1, %c0_2, %c0_3] : memref<3x1x128xf32, #tpu.memory_space<vmem>>, vector<1x1x128xf32>
    %7 = vector.shape_cast %6 : vector<1x1x128xf32> to vector<1x128xf32>
    %8 = vector.broadcast %5 : vector<128x1xf32> to vector<128x128xf32>
    %9 = vector.broadcast %7 : vector<1x128xf32> to vector<128x128xf32>
    %10 = arith.mulf %8, %9 : vector<128x128xf32>
    %c1 = arith.constant 1 : index
    %c0_4 = arith.constant 0 : index
    %c0_5 = arith.constant 0 : index
    %11 = vector.load %arg1[%c1, %c0_4, %c0_5] : memref<3x1x128xf32, #tpu.memory_space<vmem>>, vector<1x1x128xf32>
    %12 = vector.shape_cast %11 : vector<1x1x128xf32> to vector<1x128xf32>
    %13 = vector.broadcast %5 : vector<128x1xf32> to vector<128x128xf32>
    %14 = vector.broadcast %12 : vector<1x128xf32> to vector<128x128xf32>
    %15 = arith.mulf %13, %14 : vector<128x128xf32>
    %c2 = arith.constant 2 : index
    %c0_6 = arith.constant 0 : index
    %c0_7 = arith.constant 0 : index
    %16 = vector.load %arg1[%c2, %c0_6, %c0_7] : memref<3x1x128xf32, #tpu.memory_space<vmem>>, vector<1x1x128xf32>
    %17 = vector.shape_cast %16 : vector<1x1x128xf32> to vector<1x128xf32>
    %18 = vector.broadcast %5 : vector<128x1xf32> to vector<128x128xf32>
    %19 = vector.broadcast %17 : vector<1x128xf32> to vector<128x128xf32>
    %20 = arith.mulf %18, %19 : vector<128x128xf32>
    %c8_i32_8 = arith.constant 8 : i32
    %21 = tpu.dynamic_rotate %10 by %c8_i32_8 dim 0 : vector<128x128xf32>, i32 -> vector<128x128xf32>
    %cst = arith.constant 0.000000e+00 : f32
    %22 = vector.shape_cast %2 : vector<128x1xi1> to vector<128x1xi1>
    %23 = vector.broadcast %22 : vector<128x1xi1> to vector<128x128xi1>
    %24 = vector.broadcast %cst : f32 to vector<128x128xf32>
    %25 = arith.select %23, %21, %24 : vector<128x128xi1>, vector<128x128xf32>
    %26 = arith.addf %15, %25 : vector<128x128xf32>
    %c120_i32_9 = arith.constant 120 : i32
    %27 = tpu.dynamic_rotate %20 by %c120_i32_9 dim 0 : vector<128x128xf32>, i32 -> vector<128x128xf32>
    %cst_10 = arith.constant 0.000000e+00 : f32
    %28 = vector.shape_cast %4 : vector<128x1xi1> to vector<128x1xi1>
    %29 = vector.broadcast %28 : vector<128x1xi1> to vector<128x128xi1>
    %30 = vector.broadcast %cst_10 : f32 to vector<128x128xf32>
    %31 = arith.select %29, %27, %30 : vector<128x128xi1>, vector<128x128xf32>
    %32 = arith.addf %26, %31 : vector<128x128xf32>
    %cst_11 = arith.constant dense<0.000000e+00> : vector<128xf32>
    %33 = vector.multi_reduction <add>, %32, %cst_11 [0] : vector<128x128xf32> to vector<128xf32>
    %34 = vector.shape_cast %33 : vector<128xf32> to vector<1x128xf32>
    %cst_12 = arith.constant 1.280000e+02 : f32
    %35 = vector.broadcast %cst_12 : f32 to vector<1x128xf32>
    %36 = arith.divf %34, %35 : vector<1x128xf32>
    %37 = arith.mulf %32, %32 : vector<128x128xf32>
    %cst_13 = arith.constant dense<0.000000e+00> : vector<128xf32>
    %38 = vector.multi_reduction <add>, %37, %cst_13 [0] : vector<128x128xf32> to vector<128xf32>
    %39 = vector.shape_cast %38 : vector<128xf32> to vector<1x128xf32>
    %cst_14 = arith.constant 1.280000e+02 : f32
    %40 = vector.broadcast %cst_14 : f32 to vector<1x128xf32>
    %41 = arith.divf %39, %40 : vector<1x128xf32>
    %42 = arith.mulf %36, %36 : vector<1x128xf32>
    %43 = arith.subf %41, %42 : vector<1x128xf32>
    %cst_15 = arith.constant 0.000000e+00 : f32
    %44 = vector.broadcast %cst_15 : f32 to vector<1x128xf32>
    %45 = arith.maximumf %43, %44 : vector<1x128xf32>
    %c0_16 = arith.constant 0 : index
    %c0_17 = arith.constant 0 : index
    %c0_18 = arith.constant 0 : index
    %46 = vector.load %arg3[%c0_16, %c0_17, %c0_18] : memref<5x1x128xf32, #tpu.memory_space<vmem>>, vector<1x1x128xf32>
    %47 = vector.shape_cast %46 : vector<1x1x128xf32> to vector<1x128xf32>
    %cst_19 = arith.constant 9.99999974E-6 : f32
    %48 = vector.broadcast %cst_19 : f32 to vector<1x128xf32>
    %49 = arith.addf %45, %48 : vector<1x128xf32>
    %50 = math.rsqrt %49 : vector<1x128xf32>
    %51 = arith.mulf %47, %50 : vector<1x128xf32>
    %c0_20 = arith.constant 0 : index
    %c0_21 = arith.constant 0 : index
    %c0_22 = arith.constant 0 : index
    %52 = vector.load %arg4[%c0_20, %c0_21, %c0_22] : memref<5x1x128xf32, #tpu.memory_space<vmem>>, vector<1x1x128xf32>
    %53 = vector.shape_cast %52 : vector<1x1x128xf32> to vector<1x128xf32>
    %54 = arith.mulf %36, %51 : vector<1x128xf32>
    %55 = arith.subf %53, %54 : vector<1x128xf32>
    %56 = vector.broadcast %51 : vector<1x128xf32> to vector<128x128xf32>
    %57 = arith.mulf %32, %56 : vector<128x128xf32>
    %58 = vector.broadcast %55 : vector<1x128xf32> to vector<128x128xf32>
    %59 = arith.addf %57, %58 : vector<128x128xf32>
    %cst_23 = arith.constant 0.000000e+00 : f32
    %60 = vector.broadcast %cst_23 : f32 to vector<128x128xf32>
    %61 = arith.maximumf %59, %60 : vector<128x128xf32>
    %62 = arith.truncf %61 : vector<128x128xf32> to vector<128x128xbf16>
    %c0_24 = arith.constant 0 : index
    %c0_25 = arith.constant 0 : index
    %c0_26 = arith.constant 0 : index
    %63 = vector.load %arg2[%c0_24, %c0_25, %c0_26] : memref<4x128x384xbf16, #tpu.memory_space<vmem>>, vector<1x128x384xbf16>
    %64 = vector.shape_cast %63 : vector<1x128x384xbf16> to vector<128x384xbf16>
    %cst_27 = arith.constant dense<0.000000e+00> : vector<128x384xf32>
    %65 = tpu.matmul %62, %64, %cst_27 {dimension_numbers = #tpu.dot_dimension_numbers<[1], [0], [0], [1], [0, 0, 1, 1], [], []>} : vector<128x128xbf16>, vector<128x384xbf16>, vector<128x384xf32> -> vector<128x384xf32>
    %66 = vector.extract_strided_slice %65 {offsets = [0, 0], sizes = [128, 128], strides = [1, 1]} : vector<128x384xf32> to vector<128x128xf32>
    %67 = vector.extract_strided_slice %65 {offsets = [0, 128], sizes = [128, 128], strides = [1, 1]} : vector<128x384xf32> to vector<128x128xf32>
    %68 = vector.extract_strided_slice %65 {offsets = [0, 256], sizes = [128, 128], strides = [1, 1]} : vector<128x384xf32> to vector<128x128xf32>
    %c8_i32_28 = arith.constant 8 : i32
    %69 = tpu.dynamic_rotate %66 by %c8_i32_28 dim 0 : vector<128x128xf32>, i32 -> vector<128x128xf32>
    %cst_29 = arith.constant 0.000000e+00 : f32
    %70 = vector.shape_cast %2 : vector<128x1xi1> to vector<128x1xi1>
    %71 = vector.broadcast %70 : vector<128x1xi1> to vector<128x128xi1>
    %72 = vector.broadcast %cst_29 : f32 to vector<128x128xf32>
    %73 = arith.select %71, %69, %72 : vector<128x128xi1>, vector<128x128xf32>
    %74 = arith.addf %67, %73 : vector<128x128xf32>
    %c120_i32_30 = arith.constant 120 : i32
    %75 = tpu.dynamic_rotate %68 by %c120_i32_30 dim 0 : vector<128x128xf32>, i32 -> vector<128x128xf32>
    %cst_31 = arith.constant 0.000000e+00 : f32
    %76 = vector.shape_cast %4 : vector<128x1xi1> to vector<128x1xi1>
    %77 = vector.broadcast %76 : vector<128x1xi1> to vector<128x128xi1>
    %78 = vector.broadcast %cst_31 : f32 to vector<128x128xf32>
    %79 = arith.select %77, %75, %78 : vector<128x128xi1>, vector<128x128xf32>
    %80 = arith.addf %74, %79 : vector<128x128xf32>
    %cst_32 = arith.constant dense<0.000000e+00> : vector<128xf32>
    %81 = vector.multi_reduction <add>, %80, %cst_32 [0] : vector<128x128xf32> to vector<128xf32>
    %82 = vector.shape_cast %81 : vector<128xf32> to vector<1x128xf32>
    %cst_33 = arith.constant 1.280000e+02 : f32
    %83 = vector.broadcast %cst_33 : f32 to vector<1x128xf32>
    %84 = arith.divf %82, %83 : vector<1x128xf32>
    %85 = arith.mulf %80, %80 : vector<128x128xf32>
    %cst_34 = arith.constant dense<0.000000e+00> : vector<128xf32>
    %86 = vector.multi_reduction <add>, %85, %cst_34 [0] : vector<128x128xf32> to vector<128xf32>
    %87 = vector.shape_cast %86 : vector<128xf32> to vector<1x128xf32>
    %cst_35 = arith.constant 1.280000e+02 : f32
    %88 = vector.broadcast %cst_35 : f32 to vector<1x128xf32>
    %89 = arith.divf %87, %88 : vector<1x128xf32>
    %90 = arith.mulf %84, %84 : vector<1x128xf32>
    %91 = arith.subf %89, %90 : vector<1x128xf32>
    %cst_36 = arith.constant 0.000000e+00 : f32
    %92 = vector.broadcast %cst_36 : f32 to vector<1x128xf32>
    %93 = arith.maximumf %91, %92 : vector<1x128xf32>
    %c1_37 = arith.constant 1 : index
    %c0_38 = arith.constant 0 : index
    %c0_39 = arith.constant 0 : index
    %94 = vector.load %arg3[%c1_37, %c0_38, %c0_39] : memref<5x1x128xf32, #tpu.memory_space<vmem>>, vector<1x1x128xf32>
    %95 = vector.shape_cast %94 : vector<1x1x128xf32> to vector<1x128xf32>
    %cst_40 = arith.constant 9.99999974E-6 : f32
    %96 = vector.broadcast %cst_40 : f32 to vector<1x128xf32>
    %97 = arith.addf %93, %96 : vector<1x128xf32>
    %98 = math.rsqrt %97 : vector<1x128xf32>
    %99 = arith.mulf %95, %98 : vector<1x128xf32>
    %c1_41 = arith.constant 1 : index
    %c0_42 = arith.constant 0 : index
    %c0_43 = arith.constant 0 : index
    %100 = vector.load %arg4[%c1_41, %c0_42, %c0_43] : memref<5x1x128xf32, #tpu.memory_space<vmem>>, vector<1x1x128xf32>
    %101 = vector.shape_cast %100 : vector<1x1x128xf32> to vector<1x128xf32>
    %102 = arith.mulf %84, %99 : vector<1x128xf32>
    %103 = arith.subf %101, %102 : vector<1x128xf32>
    %104 = vector.broadcast %99 : vector<1x128xf32> to vector<128x128xf32>
    %105 = arith.mulf %80, %104 : vector<128x128xf32>
    %106 = vector.broadcast %103 : vector<1x128xf32> to vector<128x128xf32>
    %107 = arith.addf %105, %106 : vector<128x128xf32>
    %cst_44 = arith.constant 0.000000e+00 : f32
    %108 = vector.broadcast %cst_44 : f32 to vector<128x128xf32>
    %109 = arith.maximumf %107, %108 : vector<128x128xf32>
    %110 = arith.truncf %109 : vector<128x128xf32> to vector<128x128xbf16>
    %c1_45 = arith.constant 1 : index
    %c0_46 = arith.constant 0 : index
    %c0_47 = arith.constant 0 : index
    %111 = vector.load %arg2[%c1_45, %c0_46, %c0_47] : memref<4x128x384xbf16, #tpu.memory_space<vmem>>, vector<1x128x384xbf16>
    %112 = vector.shape_cast %111 : vector<1x128x384xbf16> to vector<128x384xbf16>
    %cst_48 = arith.constant dense<0.000000e+00> : vector<128x384xf32>
    %113 = tpu.matmul %110, %112, %cst_48 {dimension_numbers = #tpu.dot_dimension_numbers<[1], [0], [0], [1], [0, 0, 1, 1], [], []>} : vector<128x128xbf16>, vector<128x384xbf16>, vector<128x384xf32> -> vector<128x384xf32>
    %114 = vector.extract_strided_slice %113 {offsets = [0, 0], sizes = [128, 128], strides = [1, 1]} : vector<128x384xf32> to vector<128x128xf32>
    %115 = vector.extract_strided_slice %113 {offsets = [0, 128], sizes = [128, 128], strides = [1, 1]} : vector<128x384xf32> to vector<128x128xf32>
    %116 = vector.extract_strided_slice %113 {offsets = [0, 256], sizes = [128, 128], strides = [1, 1]} : vector<128x384xf32> to vector<128x128xf32>
    %c8_i32_49 = arith.constant 8 : i32
    %117 = tpu.dynamic_rotate %114 by %c8_i32_49 dim 0 : vector<128x128xf32>, i32 -> vector<128x128xf32>
    %cst_50 = arith.constant 0.000000e+00 : f32
    %118 = vector.shape_cast %2 : vector<128x1xi1> to vector<128x1xi1>
    %119 = vector.broadcast %118 : vector<128x1xi1> to vector<128x128xi1>
    %120 = vector.broadcast %cst_50 : f32 to vector<128x128xf32>
    %121 = arith.select %119, %117, %120 : vector<128x128xi1>, vector<128x128xf32>
    %122 = arith.addf %115, %121 : vector<128x128xf32>
    %c120_i32_51 = arith.constant 120 : i32
    %123 = tpu.dynamic_rotate %116 by %c120_i32_51 dim 0 : vector<128x128xf32>, i32 -> vector<128x128xf32>
    %cst_52 = arith.constant 0.000000e+00 : f32
    %124 = vector.shape_cast %4 : vector<128x1xi1> to vector<128x1xi1>
    %125 = vector.broadcast %124 : vector<128x1xi1> to vector<128x128xi1>
    %126 = vector.broadcast %cst_52 : f32 to vector<128x128xf32>
    %127 = arith.select %125, %123, %126 : vector<128x128xi1>, vector<128x128xf32>
    %128 = arith.addf %122, %127 : vector<128x128xf32>
    %cst_53 = arith.constant dense<0.000000e+00> : vector<128xf32>
    %129 = vector.multi_reduction <add>, %128, %cst_53 [0] : vector<128x128xf32> to vector<128xf32>
    %130 = vector.shape_cast %129 : vector<128xf32> to vector<1x128xf32>
    %cst_54 = arith.constant 1.280000e+02 : f32
    %131 = vector.broadcast %cst_54 : f32 to vector<1x128xf32>
    %132 = arith.divf %130, %131 : vector<1x128xf32>
    %133 = arith.mulf %128, %128 : vector<128x128xf32>
    %cst_55 = arith.constant dense<0.000000e+00> : vector<128xf32>
    %134 = vector.multi_reduction <add>, %133, %cst_55 [0] : vector<128x128xf32> to vector<128xf32>
    %135 = vector.shape_cast %134 : vector<128xf32> to vector<1x128xf32>
    %cst_56 = arith.constant 1.280000e+02 : f32
    %136 = vector.broadcast %cst_56 : f32 to vector<1x128xf32>
    %137 = arith.divf %135, %136 : vector<1x128xf32>
    %138 = arith.mulf %132, %132 : vector<1x128xf32>
    %139 = arith.subf %137, %138 : vector<1x128xf32>
    %cst_57 = arith.constant 0.000000e+00 : f32
    %140 = vector.broadcast %cst_57 : f32 to vector<1x128xf32>
    %141 = arith.maximumf %139, %140 : vector<1x128xf32>
    %c2_58 = arith.constant 2 : index
    %c0_59 = arith.constant 0 : index
    %c0_60 = arith.constant 0 : index
    %142 = vector.load %arg3[%c2_58, %c0_59, %c0_60] : memref<5x1x128xf32, #tpu.memory_space<vmem>>, vector<1x1x128xf32>
    %143 = vector.shape_cast %142 : vector<1x1x128xf32> to vector<1x128xf32>
    %cst_61 = arith.constant 9.99999974E-6 : f32
    %144 = vector.broadcast %cst_61 : f32 to vector<1x128xf32>
    %145 = arith.addf %141, %144 : vector<1x128xf32>
    %146 = math.rsqrt %145 : vector<1x128xf32>
    %147 = arith.mulf %143, %146 : vector<1x128xf32>
    %c2_62 = arith.constant 2 : index
    %c0_63 = arith.constant 0 : index
    %c0_64 = arith.constant 0 : index
    %148 = vector.load %arg4[%c2_62, %c0_63, %c0_64] : memref<5x1x128xf32, #tpu.memory_space<vmem>>, vector<1x1x128xf32>
    %149 = vector.shape_cast %148 : vector<1x1x128xf32> to vector<1x128xf32>
    %150 = arith.mulf %132, %147 : vector<1x128xf32>
    %151 = arith.subf %149, %150 : vector<1x128xf32>
    %152 = vector.broadcast %147 : vector<1x128xf32> to vector<128x128xf32>
    %153 = arith.mulf %128, %152 : vector<128x128xf32>
    %154 = vector.broadcast %151 : vector<1x128xf32> to vector<128x128xf32>
    %155 = arith.addf %153, %154 : vector<128x128xf32>
    %cst_65 = arith.constant 0.000000e+00 : f32
    %156 = vector.broadcast %cst_65 : f32 to vector<128x128xf32>
    %157 = arith.maximumf %155, %156 : vector<128x128xf32>
    %158 = arith.truncf %157 : vector<128x128xf32> to vector<128x128xbf16>
    %c2_66 = arith.constant 2 : index
    %c0_67 = arith.constant 0 : index
    %c0_68 = arith.constant 0 : index
    %159 = vector.load %arg2[%c2_66, %c0_67, %c0_68] : memref<4x128x384xbf16, #tpu.memory_space<vmem>>, vector<1x128x384xbf16>
    %160 = vector.shape_cast %159 : vector<1x128x384xbf16> to vector<128x384xbf16>
    %cst_69 = arith.constant dense<0.000000e+00> : vector<128x384xf32>
    %161 = tpu.matmul %158, %160, %cst_69 {dimension_numbers = #tpu.dot_dimension_numbers<[1], [0], [0], [1], [0, 0, 1, 1], [], []>} : vector<128x128xbf16>, vector<128x384xbf16>, vector<128x384xf32> -> vector<128x384xf32>
    %162 = vector.extract_strided_slice %161 {offsets = [0, 0], sizes = [128, 128], strides = [1, 1]} : vector<128x384xf32> to vector<128x128xf32>
    %163 = vector.extract_strided_slice %161 {offsets = [0, 128], sizes = [128, 128], strides = [1, 1]} : vector<128x384xf32> to vector<128x128xf32>
    %164 = vector.extract_strided_slice %161 {offsets = [0, 256], sizes = [128, 128], strides = [1, 1]} : vector<128x384xf32> to vector<128x128xf32>
    %c8_i32_70 = arith.constant 8 : i32
    %165 = tpu.dynamic_rotate %162 by %c8_i32_70 dim 0 : vector<128x128xf32>, i32 -> vector<128x128xf32>
    %cst_71 = arith.constant 0.000000e+00 : f32
    %166 = vector.shape_cast %2 : vector<128x1xi1> to vector<128x1xi1>
    %167 = vector.broadcast %166 : vector<128x1xi1> to vector<128x128xi1>
    %168 = vector.broadcast %cst_71 : f32 to vector<128x128xf32>
    %169 = arith.select %167, %165, %168 : vector<128x128xi1>, vector<128x128xf32>
    %170 = arith.addf %163, %169 : vector<128x128xf32>
    %c120_i32_72 = arith.constant 120 : i32
    %171 = tpu.dynamic_rotate %164 by %c120_i32_72 dim 0 : vector<128x128xf32>, i32 -> vector<128x128xf32>
    %cst_73 = arith.constant 0.000000e+00 : f32
    %172 = vector.shape_cast %4 : vector<128x1xi1> to vector<128x1xi1>
    %173 = vector.broadcast %172 : vector<128x1xi1> to vector<128x128xi1>
    %174 = vector.broadcast %cst_73 : f32 to vector<128x128xf32>
    %175 = arith.select %173, %171, %174 : vector<128x128xi1>, vector<128x128xf32>
    %176 = arith.addf %170, %175 : vector<128x128xf32>
    %cst_74 = arith.constant dense<0.000000e+00> : vector<128xf32>
    %177 = vector.multi_reduction <add>, %176, %cst_74 [0] : vector<128x128xf32> to vector<128xf32>
    %178 = vector.shape_cast %177 : vector<128xf32> to vector<1x128xf32>
    %cst_75 = arith.constant 1.280000e+02 : f32
    %179 = vector.broadcast %cst_75 : f32 to vector<1x128xf32>
    %180 = arith.divf %178, %179 : vector<1x128xf32>
    %181 = arith.mulf %176, %176 : vector<128x128xf32>
    %cst_76 = arith.constant dense<0.000000e+00> : vector<128xf32>
    %182 = vector.multi_reduction <add>, %181, %cst_76 [0] : vector<128x128xf32> to vector<128xf32>
    %183 = vector.shape_cast %182 : vector<128xf32> to vector<1x128xf32>
    %cst_77 = arith.constant 1.280000e+02 : f32
    %184 = vector.broadcast %cst_77 : f32 to vector<1x128xf32>
    %185 = arith.divf %183, %184 : vector<1x128xf32>
    %186 = arith.mulf %180, %180 : vector<1x128xf32>
    %187 = arith.subf %185, %186 : vector<1x128xf32>
    %cst_78 = arith.constant 0.000000e+00 : f32
    %188 = vector.broadcast %cst_78 : f32 to vector<1x128xf32>
    %189 = arith.maximumf %187, %188 : vector<1x128xf32>
    %c3 = arith.constant 3 : index
    %c0_79 = arith.constant 0 : index
    %c0_80 = arith.constant 0 : index
    %190 = vector.load %arg3[%c3, %c0_79, %c0_80] : memref<5x1x128xf32, #tpu.memory_space<vmem>>, vector<1x1x128xf32>
    %191 = vector.shape_cast %190 : vector<1x1x128xf32> to vector<1x128xf32>
    %cst_81 = arith.constant 9.99999974E-6 : f32
    %192 = vector.broadcast %cst_81 : f32 to vector<1x128xf32>
    %193 = arith.addf %189, %192 : vector<1x128xf32>
    %194 = math.rsqrt %193 : vector<1x128xf32>
    %195 = arith.mulf %191, %194 : vector<1x128xf32>
    %c3_82 = arith.constant 3 : index
    %c0_83 = arith.constant 0 : index
    %c0_84 = arith.constant 0 : index
    %196 = vector.load %arg4[%c3_82, %c0_83, %c0_84] : memref<5x1x128xf32, #tpu.memory_space<vmem>>, vector<1x1x128xf32>
    %197 = vector.shape_cast %196 : vector<1x1x128xf32> to vector<1x128xf32>
    %198 = arith.mulf %180, %195 : vector<1x128xf32>
    %199 = arith.subf %197, %198 : vector<1x128xf32>
    %200 = vector.broadcast %195 : vector<1x128xf32> to vector<128x128xf32>
    %201 = arith.mulf %176, %200 : vector<128x128xf32>
    %202 = vector.broadcast %199 : vector<1x128xf32> to vector<128x128xf32>
    %203 = arith.addf %201, %202 : vector<128x128xf32>
    %cst_85 = arith.constant 0.000000e+00 : f32
    %204 = vector.broadcast %cst_85 : f32 to vector<128x128xf32>
    %205 = arith.maximumf %203, %204 : vector<128x128xf32>
    %206 = arith.truncf %205 : vector<128x128xf32> to vector<128x128xbf16>
    %c3_86 = arith.constant 3 : index
    %c0_87 = arith.constant 0 : index
    %c0_88 = arith.constant 0 : index
    %207 = vector.load %arg2[%c3_86, %c0_87, %c0_88] : memref<4x128x384xbf16, #tpu.memory_space<vmem>>, vector<1x128x384xbf16>
    %208 = vector.shape_cast %207 : vector<1x128x384xbf16> to vector<128x384xbf16>
    %cst_89 = arith.constant dense<0.000000e+00> : vector<128x384xf32>
    %209 = tpu.matmul %206, %208, %cst_89 {dimension_numbers = #tpu.dot_dimension_numbers<[1], [0], [0], [1], [0, 0, 1, 1], [], []>} : vector<128x128xbf16>, vector<128x384xbf16>, vector<128x384xf32> -> vector<128x384xf32>
    %210 = vector.extract_strided_slice %209 {offsets = [0, 0], sizes = [128, 128], strides = [1, 1]} : vector<128x384xf32> to vector<128x128xf32>
    %211 = vector.extract_strided_slice %209 {offsets = [0, 128], sizes = [128, 128], strides = [1, 1]} : vector<128x384xf32> to vector<128x128xf32>
    %212 = vector.extract_strided_slice %209 {offsets = [0, 256], sizes = [128, 128], strides = [1, 1]} : vector<128x384xf32> to vector<128x128xf32>
    %c8_i32_90 = arith.constant 8 : i32
    %213 = tpu.dynamic_rotate %210 by %c8_i32_90 dim 0 : vector<128x128xf32>, i32 -> vector<128x128xf32>
    %cst_91 = arith.constant 0.000000e+00 : f32
    %214 = vector.shape_cast %2 : vector<128x1xi1> to vector<128x1xi1>
    %215 = vector.broadcast %214 : vector<128x1xi1> to vector<128x128xi1>
    %216 = vector.broadcast %cst_91 : f32 to vector<128x128xf32>
    %217 = arith.select %215, %213, %216 : vector<128x128xi1>, vector<128x128xf32>
    %218 = arith.addf %211, %217 : vector<128x128xf32>
    %c120_i32_92 = arith.constant 120 : i32
    %219 = tpu.dynamic_rotate %212 by %c120_i32_92 dim 0 : vector<128x128xf32>, i32 -> vector<128x128xf32>
    %cst_93 = arith.constant 0.000000e+00 : f32
    %220 = vector.shape_cast %4 : vector<128x1xi1> to vector<128x1xi1>
    %221 = vector.broadcast %220 : vector<128x1xi1> to vector<128x128xi1>
    %222 = vector.broadcast %cst_93 : f32 to vector<128x128xf32>
    %223 = arith.select %221, %219, %222 : vector<128x128xi1>, vector<128x128xf32>
    %224 = arith.addf %218, %223 : vector<128x128xf32>
    %cst_94 = arith.constant dense<0.000000e+00> : vector<128xf32>
    %225 = vector.multi_reduction <add>, %224, %cst_94 [0] : vector<128x128xf32> to vector<128xf32>
    %226 = vector.shape_cast %225 : vector<128xf32> to vector<1x128xf32>
    %cst_95 = arith.constant 1.280000e+02 : f32
    %227 = vector.broadcast %cst_95 : f32 to vector<1x128xf32>
    %228 = arith.divf %226, %227 : vector<1x128xf32>
    %229 = arith.mulf %224, %224 : vector<128x128xf32>
    %cst_96 = arith.constant dense<0.000000e+00> : vector<128xf32>
    %230 = vector.multi_reduction <add>, %229, %cst_96 [0] : vector<128x128xf32> to vector<128xf32>
    %231 = vector.shape_cast %230 : vector<128xf32> to vector<1x128xf32>
    %cst_97 = arith.constant 1.280000e+02 : f32
    %232 = vector.broadcast %cst_97 : f32 to vector<1x128xf32>
    %233 = arith.divf %231, %232 : vector<1x128xf32>
    %234 = arith.mulf %228, %228 : vector<1x128xf32>
    %235 = arith.subf %233, %234 : vector<1x128xf32>
    %cst_98 = arith.constant 0.000000e+00 : f32
    %236 = vector.broadcast %cst_98 : f32 to vector<1x128xf32>
    %237 = arith.maximumf %235, %236 : vector<1x128xf32>
    %c4 = arith.constant 4 : index
    %c0_99 = arith.constant 0 : index
    %c0_100 = arith.constant 0 : index
    %238 = vector.load %arg3[%c4, %c0_99, %c0_100] : memref<5x1x128xf32, #tpu.memory_space<vmem>>, vector<1x1x128xf32>
    %239 = vector.shape_cast %238 : vector<1x1x128xf32> to vector<1x128xf32>
    %cst_101 = arith.constant 9.99999974E-6 : f32
    %240 = vector.broadcast %cst_101 : f32 to vector<1x128xf32>
    %241 = arith.addf %237, %240 : vector<1x128xf32>
    %242 = math.rsqrt %241 : vector<1x128xf32>
    %243 = arith.mulf %239, %242 : vector<1x128xf32>
    %c4_102 = arith.constant 4 : index
    %c0_103 = arith.constant 0 : index
    %c0_104 = arith.constant 0 : index
    %244 = vector.load %arg4[%c4_102, %c0_103, %c0_104] : memref<5x1x128xf32, #tpu.memory_space<vmem>>, vector<1x1x128xf32>
    %245 = vector.shape_cast %244 : vector<1x1x128xf32> to vector<1x128xf32>
    %246 = arith.mulf %228, %243 : vector<1x128xf32>
    %247 = arith.subf %245, %246 : vector<1x128xf32>
    %248 = vector.broadcast %243 : vector<1x128xf32> to vector<128x128xf32>
    %249 = arith.mulf %224, %248 : vector<128x128xf32>
    %250 = vector.broadcast %247 : vector<1x128xf32> to vector<128x128xf32>
    %251 = arith.addf %249, %250 : vector<128x128xf32>
    %cst_105 = arith.constant 0.000000e+00 : f32
    %252 = vector.broadcast %cst_105 : f32 to vector<128x128xf32>
    %253 = arith.maximumf %251, %252 : vector<128x128xf32>
    %254 = vector.extract_strided_slice %253 {offsets = [120, 0], sizes = [8, 128], strides = [1, 1]} : vector<128x128xf32> to vector<8x128xf32>
    %c0_106 = arith.constant 0 : index
    %c0_107 = arith.constant 0 : index
    %255 = vector.load %arg5[%c0_106, %c0_107] : memref<128x128xf32, #tpu.memory_space<vmem>>, vector<128x128xf32>
    %cst_108 = arith.constant dense<0.000000e+00> : vector<8x128xf32>
    %256 = tpu.matmul %254, %255, %cst_108 {dimension_numbers = #tpu.dot_dimension_numbers<[1], [0], [0], [1], [0, 0, 1, 1], [], []>} : vector<8x128xf32>, vector<128x128xf32>, vector<8x128xf32> -> vector<8x128xf32>
    %c0_109 = arith.constant 0 : index
    %c0_110 = arith.constant 0 : index
    %257 = vector.load %arg6[%c0_109, %c0_110] : memref<1x128xf32, #tpu.memory_space<vmem>>, vector<1x128xf32>
    %258 = vector.broadcast %257 : vector<1x128xf32> to vector<8x128xf32>
    %259 = arith.addf %256, %258 : vector<8x128xf32>
    %c0_111 = arith.constant 0 : index
    %c0_112 = arith.constant 0 : index
    %260 = vector.load %arg7[%c0_111, %c0_112] : memref<8x128xf32, #tpu.memory_space<vmem>>, vector<8x128xf32>
    tpu.vector_store %arg7[%c0_111, %c0_112], %259 {strides = array<i32>} : memref<8x128xf32, #tpu.memory_space<vmem>>, vector<8x128xf32>,
    return
  }
}

</mosaic_0001>

<llo_original>
// kernel: tpu_custom_call.1
$region0: #{tpu_custom_call.1}
  #allocation0 [shape = 'u32[]', space=smem, size = 0x4, offset = 0x4, fixed_abs, tag = 'smem constant byte address 0x4 - core index']
  #allocation1 [shape = 'u32[144,128]{1,0:T(1,128)}', space=vmem, size = 0x12000, scoped, tag = 'internal scratch']
  %s0 = inlined_call_operand.vmem [shape: f32[128,1], index: 0, kind: input, shape index: {}]
  %s1 = inlined_call_operand.hbm [shape: f32[3,1,128], index: 1, kind: input, shape index: {}]
  %s2 = inlined_call_operand.hbm [shape: bf16[4,128,384], index: 2, kind: input, shape index: {}]
  %s3 = inlined_call_operand.vmem [shape: f32[5,1,128], index: 3, kind: input, shape index: {}]
  %s4 = inlined_call_operand.vmem [shape: f32[5,1,128], index: 4, kind: input, shape index: {}]
  %s5 = inlined_call_operand.vmem [shape: f32[128,128], index: 5, kind: input, shape index: {}]
  %s6 = inlined_call_operand.vmem [shape: f32[1,128], index: 6, kind: input, shape index: {}]
  %s7 = inlined_call_operand.hbm [shape: f32[8,128], index: 7, kind: output, shape index: {}]
  %s8 = sld [smem:[#allocation0]]
  $region46: #{tpu_custom_call.1} parent=0
    _
  %s10 = ssub.s32 1, %s8
  %s11 = scalar_select 0, %s10, %s8
  $region1: #{tpu_custom_call.1} parent=0
    #allocation2 [shape = 'u8[1536]{0}', space=vmem, size = 0x800, scoped, tag = 'input window, operand 1, single buffered']
    #allocation3 [shape = 's32[1]{0}', space=sflag, size = 0x4, scoped, tag = 'scoped memory for tpu_custom_call.1']
    #allocation4 [shape = 's32[1]{0}', space=sflag, size = 0x4, scoped, tag = 'scoped memory for tpu_custom_call.1']
    #allocation5 [shape = 'u8[393216]{0}', space=vmem, size = 0x60000, scoped, tag = 'input window, operand 2, single buffered']
    #allocation6 [shape = 's32[1]{0}', space=sflag, size = 0x4, scoped, tag = 'scoped memory for tpu_custom_call.1']
    #allocation7 [shape = 'u8[4096]{0}', space=vmem, size = 0x1000, scoped, tag = 'output window, operand 0, single buffered']
    %12 = vsyncpa [#allocation3], 0
    %13 = vsyncpa [#allocation6], 0
    %14 = vsyncpa [#allocation4], 0
    // Predicated region
    $region2: #{tpu_custom_call.1} parent=1 // pred_check
      _
    $region3: #{tpu_custom_call.1} parent=1 // pred_check_branch
      %16 = sbr.rel (0) target = $region5
    $region4: #{tpu_custom_call.1} parent=1 // pred_region
      _
    $region5: #{tpu_custom_call.1} parent=1 // pred_fallthru
      _
    // Predicated region
    $region6: #{tpu_custom_call.1} parent=1 // pred_check
      _
    $region7: #{tpu_custom_call.1} parent=1 // pred_check_branch
      %18 = sbr.rel (0) target = $region9
    $region8: #{tpu_custom_call.1} parent=1 // pred_region
      %s20 = ssub.s32 48, 48
      %21 = vsyncadd [#allocation3], %s20
      %s22 = sshll.u32 [#allocation2], 4
      %s23 = int_to_ptr.vmem [resolvable:$true] %s22
      %28 = dma.hbm_to_vmem [thread:$0]  %s1, 48, %s23, [#allocation3], 16, 16, 1
    $region9: #{tpu_custom_call.1} parent=1 // pred_fallthru
      _
    // Predicated region
    $region10: #{tpu_custom_call.1} parent=1 // pred_check
      _
    $region11: #{tpu_custom_call.1} parent=1 // pred_check_branch
      %30 = sbr.rel (0) target = $region13
    $region12: #{tpu_custom_call.1} parent=1 // pred_region
      %s32 = ssub.s32 12288, 12288
      %33 = vsyncadd [#allocation6], %s32
      %s34 = sshll.u32 [#allocation5], 4
      %s35 = int_to_ptr.vmem [resolvable:$true] %s34
      %40 = dma.hbm_to_vmem [thread:$0]  %s2, 12288, %s35, [#allocation6], 192, 192, 12
    $region13: #{tpu_custom_call.1} parent=1 // pred_fallthru
      _
    // Predicated region
    $region14: #{tpu_custom_call.1} parent=1 // pred_check
      _
    $region15: #{tpu_custom_call.1} parent=1 // pred_check_branch
      %42 = sbr.rel (0) target = $region17
    $region16: #{tpu_custom_call.1} parent=1 // pred_region
      _
    $region17: #{tpu_custom_call.1} parent=1 // pred_fallthru
      _
    // Predicated region
    $region18: #{tpu_custom_call.1} parent=1 // pred_check
      _
    $region19: #{tpu_custom_call.1} parent=1 // pred_check_branch
      %44 = sbr.rel (0) target = $region21
    $region20: #{tpu_custom_call.1} parent=1 // pred_region
      _
    $region21: #{tpu_custom_call.1} parent=1 // pred_fallthru
      _
    // Predicated region
    $region22: #{tpu_custom_call.1} parent=1 // pred_check
      _
    $region23: #{tpu_custom_call.1} parent=1 // pred_check_branch
      %46 = sbr.rel (0) target = $region25
    $region24: #{tpu_custom_call.1} parent=1 // pred_region
      _
    $region25: #{tpu_custom_call.1} parent=1 // pred_fallthru
      _
    // Predicated region
    $region26: #{tpu_custom_call.1} parent=1 // pred_check
      _
    $region27: #{tpu_custom_call.1} parent=1 // pred_check_branch
      %48 = sbr.rel (0) target = $region29
    $region28: #{tpu_custom_call.1} parent=1 // pred_region
      _
    $region29: #{tpu_custom_call.1} parent=1 // pred_fallthru
      _
    // Predicated region
    $region30: #{tpu_custom_call.1} parent=1 // pred_check
      _
    $region31: #{tpu_custom_call.1} parent=1 // pred_check_branch
      %50 = sbr.rel (0) target = $region33
    $region32: #{tpu_custom_call.1} parent=1 // pred_region
      %51 = dma.done [#allocation3], 48
    $region33: #{tpu_custom_call.1} parent=1 // pred_fallthru
      _
    // Predicated region
    $region34: #{tpu_custom_call.1} parent=1 // pred_check
      _
    $region35: #{tpu_custom_call.1} parent=1 // pred_check_branch
      %53 = sbr.rel (0) target = $region37
    $region36: #{tpu_custom_call.1} parent=1 // pred_region
      %54 = dma.done [#allocation6], 12288
    $region37: #{tpu_custom_call.1} parent=1 // pred_fallthru
      _
    %v56 = vlaneseq
    %v57 = vshrl.u32 %v56, 7
    %v58 = vadd.s32 %v57, 8
    %v59 = vadd.s32 %v57, 16
    %v60 = vadd.s32 %v57, 24
    %v61 = vadd.s32 %v57, 32
    %v62 = vadd.s32 %v57, 40
    %v63 = vadd.s32 %v57, 48
    %v64 = vadd.s32 %v57, 56
    %v65 = vadd.s32 %v57, 64
    %v66 = vadd.s32 %v57, 72
    %v67 = vadd.s32 %v57, 80
    %v68 = vadd.s32 %v57, 88
    %v69 = vadd.s32 %v57, 96
    %v70 = vadd.s32 %v57, 104
    %v71 = vadd.s32 %v57, 112
    %v72 = vadd.s32 %v57, 120
    %vm73 = vcmp.ge.s32.totalorder %v57, 8
    %vm74 = vcmp.ge.s32.totalorder %v58, 8
    %vm75 = vcmp.ge.s32.totalorder %v59, 8
    %vm76 = vcmp.ge.s32.totalorder %v60, 8
    %vm77 = vcmp.ge.s32.totalorder %v61, 8
    %vm78 = vcmp.ge.s32.totalorder %v62, 8
    %vm79 = vcmp.ge.s32.totalorder %v63, 8
    %vm80 = vcmp.ge.s32.totalorder %v64, 8
    %vm81 = vcmp.ge.s32.totalorder %v65, 8
    %vm82 = vcmp.ge.s32.totalorder %v66, 8
    %vm83 = vcmp.ge.s32.totalorder %v67, 8
    %vm84 = vcmp.ge.s32.totalorder %v68, 8
    %vm85 = vcmp.ge.s32.totalorder %v69, 8
    %vm86 = vcmp.ge.s32.totalorder %v70, 8
    %vm87 = vcmp.ge.s32.totalorder %v71, 8
    %vm88 = vcmp.ge.s32.totalorder %v72, 8
    %vm89 = vcmp.lt.s32.totalorder %v57, 120
    %vm90 = vcmp.lt.s32.totalorder %v58, 120
    %vm91 = vcmp.lt.s32.totalorder %v59, 120
    %vm92 = vcmp.lt.s32.totalorder %v60, 120
    %vm93 = vcmp.lt.s32.totalorder %v61, 120
    %vm94 = vcmp.lt.s32.totalorder %v62, 120
    %vm95 = vcmp.lt.s32.totalorder %v63, 120
    %vm96 = vcmp.lt.s32.totalorder %v64, 120
    %vm97 = vcmp.lt.s32.totalorder %v65, 120
    %vm98 = vcmp.lt.s32.totalorder %v66, 120
    %vm99 = vcmp.lt.s32.totalorder %v67, 120
    %vm100 = vcmp.lt.s32.totalorder %v68, 120
    %vm101 = vcmp.lt.s32.totalorder %v69, 120
    %vm102 = vcmp.lt.s32.totalorder %v70, 120
    %vm103 = vcmp.lt.s32.totalorder %v71, 120
    %vm104 = vcmp.lt.s32.totalorder %v72, 120
    %v105 = vld [vmem:[%s0] sm:$0xff]
    %v106 = vld [vmem:[%s0 + $0x8] sm:$0xff]
    %v107 = vld [vmem:[%s0 + $0x10] sm:$0xff]
    %v108 = vld [vmem:[%s0 + $0x18] sm:$0xff]
    %v109 = vld [vmem:[%s0 + $0x20] sm:$0xff]
    %v110 = vld [vmem:[%s0 + $0x28] sm:$0xff]
    %v111 = vld [vmem:[%s0 + $0x30] sm:$0xff]
    %v112 = vld [vmem:[%s0 + $0x38] sm:$0xff]
    %v113 = vld [vmem:[%s0 + $0x40] sm:$0xff]
    %v114 = vld [vmem:[%s0 + $0x48] sm:$0xff]
    %v115 = vld [vmem:[%s0 + $0x50] sm:$0xff]
    %v116 = vld [vmem:[%s0 + $0x58] sm:$0xff]
    %v117 = vld [vmem:[%s0 + $0x60] sm:$0xff]
    %v118 = vld [vmem:[%s0 + $0x68] sm:$0xff]
    %v119 = vld [vmem:[%s0 + $0x70] sm:$0xff]
    %v120 = vld [vmem:[%s0 + $0x78] sm:$0xff]
    %v121 = vld [vmem:[#allocation2] sm:$0x1]
    %123 = vset.pattern.permute.xlu0 0
    %124 = vperm.xlu0 %123, %v105
    %v125 = vpop.permute.xlu0 %124
    %128 = vset.pattern.permute.xlu0 0
    %129 = vperm.xlu0 %128, %v106
    %v130 = vpop.permute.xlu0 %129
    %133 = vset.pattern.permute.xlu0 0
    %134 = vperm.xlu0 %133, %v107
    %v135 = vpop.permute.xlu0 %134
    %138 = vset.pattern.permute.xlu0 0
    %139 = vperm.xlu0 %138, %v108
    %v140 = vpop.permute.xlu0 %139
    %143 = vset.pattern.permute.xlu0 0
    %144 = vperm.xlu0 %143, %v109
    %v145 = vpop.permute.xlu0 %144
    %148 = vset.pattern.permute.xlu0 0
    %149 = vperm.xlu0 %148, %v110
    %v150 = vpop.permute.xlu0 %149
    %153 = vset.pattern.permute.xlu0 0
    %154 = vperm.xlu0 %153, %v111
    %v155 = vpop.permute.xlu0 %154
    %158 = vset.pattern.permute.xlu0 0
    %159 = vperm.xlu0 %158, %v112
    %v160 = vpop.permute.xlu0 %159
    %163 = vset.pattern.permute.xlu0 0
    %164 = vperm.xlu0 %163, %v113
    %v165 = vpop.permute.xlu0 %164
    %168 = vset.pattern.permute.xlu0 0
    %169 = vperm.xlu0 %168, %v114
    %v170 = vpop.permute.xlu0 %169
    %173 = vset.pattern.permute.xlu0 0
    %174 = vperm.xlu0 %173, %v115
    %v175 = vpop.permute.xlu0 %174
    %178 = vset.pattern.permute.xlu0 0
    %179 = vperm.xlu0 %178, %v116
    %v180 = vpop.permute.xlu0 %179
    %183 = vset.pattern.permute.xlu0 0
    %184 = vperm.xlu0 %183, %v117
    %v185 = vpop.permute.xlu0 %184
    %188 = vset.pattern.permute.xlu0 0
    %189 = vperm.xlu0 %188, %v118
    %v190 = vpop.permute.xlu0 %189
    %193 = vset.pattern.permute.xlu0 0
    %194 = vperm.xlu0 %193, %v119
    %v195 = vpop.permute.xlu0 %194
    %198 = vset.pattern.permute.xlu0 0
    %199 = vperm.xlu0 %198, %v120
    %v200 = vpop.permute.xlu0 %199
    %v203 = vlaneseq
    %v204 = vshrl.u32 %v203, 7
    %v205 = vsub.s32 0, %v204
    %v206 = vrot.slane %v121, %v205
    %v208 = vmul.f32 %v125, %v206
    %v209 = vmul.f32 %v130, %v206
    %v210 = vmul.f32 %v135, %v206
    %v211 = vmul.f32 %v140, %v206
    %v212 = vmul.f32 %v145, %v206
    %v213 = vmul.f32 %v150, %v206
    %v214 = vmul.f32 %v155, %v206
    %v215 = vmul.f32 %v160, %v206
    %v216 = vmul.f32 %v165, %v206
    %v217 = vmul.f32 %v170, %v206
    %v218 = vmul.f32 %v175, %v206
    %v219 = vmul.f32 %v180, %v206
    %v220 = vmul.f32 %v185, %v206
    %v221 = vmul.f32 %v190, %v206
    %v222 = vmul.f32 %v195, %v206
    %v223 = vmul.f32 %v200, %v206
    %s224 = scalar_lea.vmem [#allocation2], 1
    %v225 = vld [vmem:[%s224] sm:$0x1]
    %v227 = vlaneseq
    %v228 = vshrl.u32 %v227, 7
    %v229 = vsub.s32 0, %v228
    %v230 = vrot.slane %v225, %v229
    %v232 = vmul.f32 %v125, %v230
    %v233 = vmul.f32 %v130, %v230
    %v234 = vmul.f32 %v135, %v230
    %v235 = vmul.f32 %v140, %v230
    %v236 = vmul.f32 %v145, %v230
    %v237 = vmul.f32 %v150, %v230
    %v238 = vmul.f32 %v155, %v230
    %v239 = vmul.f32 %v160, %v230
    %v240 = vmul.f32 %v165, %v230
    %v241 = vmul.f32 %v170, %v230
    %v242 = vmul.f32 %v175, %v230
    %v243 = vmul.f32 %v180, %v230
    %v244 = vmul.f32 %v185, %v230
    %v245 = vmul.f32 %v190, %v230
    %v246 = vmul.f32 %v195, %v230
    %v247 = vmul.f32 %v200, %v230
    %s248 = scalar_lea.vmem [#allocation2], 2
    %v249 = vld [vmem:[%s248] sm:$0x1]
    %v251 = vlaneseq
    %v252 = vshrl.u32 %v251, 7
    %v253 = vsub.s32 0, %v252
    %v254 = vrot.slane %v249, %v253
    %v256 = vmul.f32 %v125, %v254
    %v257 = vmul.f32 %v130, %v254
    %v258 = vmul.f32 %v135, %v254
    %v259 = vmul.f32 %v140, %v254
    %v260 = vmul.f32 %v145, %v254
    %v261 = vmul.f32 %v150, %v254
    %v262 = vmul.f32 %v155, %v254
    %v263 = vmul.f32 %v160, %v254
    %v264 = vmul.f32 %v165, %v254
    %v265 = vmul.f32 %v170, %v254
    %v266 = vmul.f32 %v175, %v254
    %v267 = vmul.f32 %v180, %v254
    %v268 = vmul.f32 %v185, %v254
    %v269 = vmul.f32 %v190, %v254
    %v270 = vmul.f32 %v195, %v254
    %v271 = vmul.f32 %v200, %v254
    %v272 = vsel %vm73, 1, 0
    %v273 = vsel %vm74, 1, 0
    %v274 = vsel %vm75, 1, 0
    %v275 = vsel %vm76, 1, 0
    %v276 = vsel %vm77, 1, 0
    %v277 = vsel %vm78, 1, 0
    %v278 = vsel %vm79, 1, 0
    %v279 = vsel %vm80, 1, 0
    %v280 = vsel %vm81, 1, 0
    %v281 = vsel %vm82, 1, 0
    %v282 = vsel %vm83, 1, 0
    %v283 = vsel %vm84, 1, 0
    %v284 = vsel %vm85, 1, 0
    %v285 = vsel %vm86, 1, 0
    %v286 = vsel %vm87, 1, 0
    %v287 = vsel %vm88, 1, 0
    %vm288 = vcmp.eq.s32.totalorder %v272, 1
    %vm289 = vcmp.eq.s32.totalorder %v273, 1
    %vm290 = vcmp.eq.s32.totalorder %v274, 1
    %vm291 = vcmp.eq.s32.totalorder %v275, 1
    %vm292 = vcmp.eq.s32.totalorder %v276, 1
    %vm293 = vcmp.eq.s32.totalorder %v277, 1
    %vm294 = vcmp.eq.s32.totalorder %v278, 1
    %vm295 = vcmp.eq.s32.totalorder %v279, 1
    %vm296 = vcmp.eq.s32.totalorder %v280, 1
    %vm297 = vcmp.eq.s32.totalorder %v281, 1
    %vm298 = vcmp.eq.s32.totalorder %v282, 1
    %vm299 = vcmp.eq.s32.totalorder %v283, 1
    %vm300 = vcmp.eq.s32.totalorder %v284, 1
    %vm301 = vcmp.eq.s32.totalorder %v285, 1
    %vm302 = vcmp.eq.s32.totalorder %v286, 1
    %vm303 = vcmp.eq.s32.totalorder %v287, 1
    %v304 = vsel %vm288, %v223, 0.0
    %v305 = vsel %vm289, %v208, 0.0
    %v306 = vsel %vm290, %v209, 0.0
    %v307 = vsel %vm291, %v210, 0.0
    %v308 = vsel %vm292, %v211, 0.0
    %v309 = vsel %vm293, %v212, 0.0
    %v310 = vsel %vm294, %v213, 0.0
    %v311 = vsel %vm295, %v214, 0.0
    %v312 = vsel %vm296, %v215, 0.0
    %v313 = vsel %vm297, %v216, 0.0
    %v314 = vsel %vm298, %v217, 0.0
    %v315 = vsel %vm299, %v218, 0.0
    %v316 = vsel %vm300, %v219, 0.0
    %v317 = vsel %vm301, %v220, 0.0
    %v318 = vsel %vm302, %v221, 0.0
    %v319 = vsel %vm303, %v222, 0.0
    %v320 = vadd.f32 %v232, %v304
    %v321 = vadd.f32 %v233, %v305
    %v322 = vadd.f32 %v234, %v306
    %v323 = vadd.f32 %v235, %v307
    %v324 = vadd.f32 %v236, %v308
    %v325 = vadd.f32 %v237, %v309
    %v326 = vadd.f32 %v238, %v310
    %v327 = vadd.f32 %v239, %v311
    %v328 = vadd.f32 %v240, %v312
    %v329 = vadd.f32 %v241, %v313
    %v330 = vadd.f32 %v242, %v314
    %v331 = vadd.f32 %v243, %v315
    %v332 = vadd.f32 %v244, %v316
    %v333 = vadd.f32 %v245, %v317
    %v334 = vadd.f32 %v246, %v318
    %v335 = vadd.f32 %v247, %v319
    %v336 = vsel %vm89, 1, 0
    %v337 = vsel %vm90, 1, 0
    %v338 = vsel %vm91, 1, 0
    %v339 = vsel %vm92, 1, 0
    %v340 = vsel %vm93, 1, 0
    %v341 = vsel %vm94, 1, 0
    %v342 = vsel %vm95, 1, 0
    %v343 = vsel %vm96, 1, 0
    %v344 = vsel %vm97, 1, 0
    %v345 = vsel %vm98, 1, 0
    %v346 = vsel %vm99, 1, 0
    %v347 = vsel %vm100, 1, 0
    %v348 = vsel %vm101, 1, 0
    %v349 = vsel %vm102, 1, 0
    %v350 = vsel %vm103, 1, 0
    %v351 = vsel %vm104, 1, 0
    %vm352 = vcmp.eq.s32.totalorder %v336, 1
    %vm353 = vcmp.eq.s32.totalorder %v337, 1
    %vm354 = vcmp.eq.s32.totalorder %v338, 1
    %vm355 = vcmp.eq.s32.totalorder %v339, 1
    %vm356 = vcmp.eq.s32.totalorder %v340, 1
    %vm357 = vcmp.eq.s32.totalorder %v341, 1
    %vm358 = vcmp.eq.s32.totalorder %v342, 1
    %vm359 = vcmp.eq.s32.totalorder %v343, 1
    %vm360 = vcmp.eq.s32.totalorder %v344, 1
    %vm361 = vcmp.eq.s32.totalorder %v345, 1
    %vm362 = vcmp.eq.s32.totalorder %v346, 1
    %vm363 = vcmp.eq.s32.totalorder %v347, 1
    %vm364 = vcmp.eq.s32.totalorder %v348, 1
    %vm365 = vcmp.eq.s32.totalorder %v349, 1
    %vm366 = vcmp.eq.s32.totalorder %v350, 1
    %vm367 = vcmp.eq.s32.totalorder %v351, 1
    %v368 = vsel %vm352, %v257, 0.0
    %v369 = vsel %vm353, %v258, 0.0
    %v370 = vsel %vm354, %v259, 0.0
    %v371 = vsel %vm355, %v260, 0.0
    %v372 = vsel %vm356, %v261, 0.0
    %v373 = vsel %vm357, %v262, 0.0
    %v374 = vsel %vm358, %v263, 0.0
    %v375 = vsel %vm359, %v264, 0.0
    %v376 = vsel %vm360, %v265, 0.0
    %v377 = vsel %vm361, %v266, 0.0
    %v378 = vsel %vm362, %v267, 0.0
    %v379 = vsel %vm363, %v268, 0.0
    %v380 = vsel %vm364, %v269, 0.0
    %v381 = vsel %vm365, %v270, 0.0
    %v382 = vsel %vm366, %v271, 0.0
    %v383 = vsel %vm367, %v256, 0.0
    %v384 = vadd.f32 %v320, %v368
    %v385 = vadd.f32 %v321, %v369
    %v386 = vadd.f32 %v322, %v370
    %v387 = vadd.f32 %v323, %v371
    %v388 = vadd.f32 %v324, %v372
    %v389 = vadd.f32 %v325, %v373
    %v390 = vadd.f32 %v326, %v374
    %v391 = vadd.f32 %v327, %v375
    %v392 = vadd.f32 %v328, %v376
    %v393 = vadd.f32 %v329, %v377
    %v394 = vadd.f32 %v330, %v378
    %v395 = vadd.f32 %v331, %v379
    %v396 = vadd.f32 %v332, %v380
    %v397 = vadd.f32 %v333, %v381
    %v398 = vadd.f32 %v334, %v382
    %v399 = vadd.f32 %v335, %v383
    %v400 = vadd.f32 %v384, %v385
    %v401 = vadd.f32 %v400, %v386
    %v402 = vadd.f32 %v401, %v387
    %v403 = vadd.f32 %v402, %v388
    %v404 = vadd.f32 %v403, %v389
    %v405 = vadd.f32 %v404, %v390
    %v406 = vadd.f32 %v405, %v391
    %v407 = vadd.f32 %v406, %v392
    %v408 = vadd.f32 %v407, %v393
    %v409 = vadd.f32 %v408, %v394
    %v410 = vadd.f32 %v409, %v395
    %v411 = vadd.f32 %v410, %v396
    %v412 = vadd.f32 %v411, %v397
    %v413 = vadd.f32 %v412, %v398
    %v414 = vadd.f32 %v413, %v399
    %v415 = vrot.slane %v414, 4
    %v416 = vadd.f32 %v414, %v415
    %v417 = vrot.slane %v416, 2
    %v418 = vadd.f32 %v416, %v417
    %v419 = vrot.slane %v418, 1
    %v420 = vadd.f32 %v418, %v419
    %v421 = vrcp.pop 128.0
    %v422 = vmul.f32 %v420, %v421
    %v423 = vmul.f32 %v384, %v384
    %v424 = vmul.f32 %v385, %v385
    %v425 = vmul.f32 %v386, %v386
    %v426 = vmul.f32 %v387, %v387
    %v427 = vmul.f32 %v388, %v388
    %v428 = vmul.f32 %v389, %v389
    %v429 = vmul.f32 %v390, %v390
    %v430 = vmul.f32 %v391, %v391
    %v431 = vmul.f32 %v392, %v392
    %v432 = vmul.f32 %v393, %v393
    %v433 = vmul.f32 %v394, %v394
    %v434 = vmul.f32 %v395, %v395
    %v435 = vmul.f32 %v396, %v396
    %v436 = vmul.f32 %v397, %v397
    %v437 = vmul.f32 %v398, %v398
    %v438 = vmul.f32 %v399, %v399
    %v439 = vadd.f32 %v423, %v424
    %v440 = vadd.f32 %v439, %v425
    %v441 = vadd.f32 %v440, %v426
    %v442 = vadd.f32 %v441, %v427
    %v443 = vadd.f32 %v442, %v428
    %v444 = vadd.f32 %v443, %v429
    %v445 = vadd.f32 %v444, %v430
    %v446 = vadd.f32 %v445, %v431
    %v447 = vadd.f32 %v446, %v432
    %v448 = vadd.f32 %v447, %v433
    %v449 = vadd.f32 %v448, %v434
    %v450 = vadd.f32 %v449, %v435
    %v451 = vadd.f32 %v450, %v436
    %v452 = vadd.f32 %v451, %v437
    %v453 = vadd.f32 %v452, %v438
    %v454 = vrot.slane %v453, 4
    %v455 = vadd.f32 %v453, %v454
    %v456 = vrot.slane %v455, 2
    %v457 = vadd.f32 %v455, %v456
    %v458 = vrot.slane %v457, 1
    %v459 = vadd.f32 %v457, %v458
    %v460 = vmul.f32 %v459, %v421
    %v461 = vmul.f32 %v422, %v422
    %v462 = vsub.f32 %v460, %v461
    %v463 = vmax.f32 %v462, 0.0
    %v464 = vld [vmem:[%s3] sm:$0x1]
    %v465 = vadd.f32 %v463, 1e-05
    %v466 = vrsqrt.pop %v465
    %v467 = vmul.f32 %v464, %v466
    %v468 = vld [vmem:[%s4] sm:$0x1]
    %v469 = vmul.f32 %v422, %v467
    %v470 = vsub.f32 %v468, %v469
    %v472 = vlaneseq
    %v473 = vshrl.u32 %v472, 7
    %v474 = vsub.s32 0, %v473
    %v475 = vrot.slane %v467, %v474
    %v477 = vmul.f32 %v384, %v475
    %v478 = vmul.f32 %v385, %v475
    %v479 = vmul.f32 %v386, %v475
    %v480 = vmul.f32 %v387, %v475
    %v481 = vmul.f32 %v388, %v475
    %v482 = vmul.f32 %v389, %v475
    %v483 = vmul.f32 %v390, %v475
    %v484 = vmul.f32 %v391, %v475
    %v485 = vmul.f32 %v392, %v475
    %v486 = vmul.f32 %v393, %v475
    %v487 = vmul.f32 %v394, %v475
    %v488 = vmul.f32 %v395, %v475
    %v489 = vmul.f32 %v396, %v475
    %v490 = vmul.f32 %v397, %v475
    %v491 = vmul.f32 %v398, %v475
    %v492 = vmul.f32 %v399, %v475
    %v494 = vlaneseq
    %v495 = vshrl.u32 %v494, 7
    %v496 = vsub.s32 0, %v495
    %v497 = vrot.slane %v470, %v496
    %v499 = vadd.f32 %v477, %v497
    %v500 = vadd.f32 %v478, %v497
    %v501 = vadd.f32 %v479, %v497
    %v502 = vadd.f32 %v480, %v497
    %v503 = vadd.f32 %v481, %v497
    %v504 = vadd.f32 %v482, %v497
    %v505 = vadd.f32 %v483, %v497
    %v506 = vadd.f32 %v484, %v497
    %v507 = vadd.f32 %v485, %v497
    %v508 = vadd.f32 %v486, %v497
    %v509 = vadd.f32 %v487, %v497
    %v510 = vadd.f32 %v488, %v497
    %v511 = vadd.f32 %v489, %v497
    %v512 = vadd.f32 %v490, %v497
    %v513 = vadd.f32 %v491, %v497
    %v514 = vadd.f32 %v492, %v497
    %v515 = vmax.f32 %v499, 0.0
    %v516 = vmax.f32 %v500, 0.0
    %v517 = vmax.f32 %v501, 0.0
    %v518 = vmax.f32 %v502, 0.0
    %v519 = vmax.f32 %v503, 0.0
    %v520 = vmax.f32 %v504, 0.0
    %v521 = vmax.f32 %v505, 0.0
    %v522 = vmax.f32 %v506, 0.0
    %v523 = vmax.f32 %v507, 0.0
    %v524 = vmax.f32 %v508, 0.0
    %v525 = vmax.f32 %v509, 0.0
    %v526 = vmax.f32 %v510, 0.0
    %v527 = vmax.f32 %v511, 0.0
    %v528 = vmax.f32 %v512, 0.0
    %v529 = vmax.f32 %v513, 0.0
    %v530 = vmax.f32 %v514, 0.0
    %v531 = vpack.c.bf16 %v516, %v515
    %v532 = vpack.c.bf16 %v518, %v517
    %v533 = vpack.c.bf16 %v520, %v519
    %v534 = vpack.c.bf16 %v522, %v521
    %v535 = vpack.c.bf16 %v524, %v523
    %v536 = vpack.c.bf16 %v526, %v525
    %v537 = vpack.c.bf16 %v528, %v527
    %v538 = vpack.c.bf16 %v530, %v529
    %v539 = vld [vmem:[#allocation5] sm:$0xff]
    %v540 = vld [vmem:[#allocation5 + $0x8] sm:$0xf]
    %v541 = vld [vmem:[#allocation5 + $0xc] sm:$0xff]
    %v542 = vld [vmem:[#allocation5 + $0x14] sm:$0xf]
    %v543 = vld [vmem:[#allocation5 + $0x18] sm:$0xff]
    %v544 = vld [vmem:[#allocation5 + $0x20] sm:$0xf]
    %v545 = vld [vmem:[#allocation5 + $0x24] sm:$0xff]
    %v546 = vld [vmem:[#allocation5 + $0x2c] sm:$0xf]
    %v547 = vld [vmem:[#allocation5 + $0x30] sm:$0xff]
    %v548 = vld [vmem:[#allocation5 + $0x38] sm:$0xf]
    %v549 = vld [vmem:[#allocation5 + $0x3c] sm:$0xff]
    %v550 = vld [vmem:[#allocation5 + $0x44] sm:$0xf]
    %v551 = vld [vmem:[#allocation5 + $0x48] sm:$0xff]
    %v552 = vld [vmem:[#allocation5 + $0x50] sm:$0xf]
    %v553 = vld [vmem:[#allocation5 + $0x54] sm:$0xff]
    %v554 = vld [vmem:[#allocation5 + $0x5c] sm:$0xf]
    %v555 = vld [vmem:[#allocation5 + $0x60] sm:$0xff]
    %v556 = vld [vmem:[#allocation5 + $0x68] sm:$0xf]
    %v557 = vld [vmem:[#allocation5 + $0x6c] sm:$0xff]
    %v558 = vld [vmem:[#allocation5 + $0x74] sm:$0xf]
    %v559 = vld [vmem:[#allocation5 + $0x78] sm:$0xff]
    %v560 = vld [vmem:[#allocation5 + $0x80] sm:$0xf]
    %v561 = vld [vmem:[#allocation5 + $0x84] sm:$0xff]
    %v562 = vld [vmem:[#allocation5 + $0x8c] sm:$0xf]
    %v563 = vld [vmem:[#allocation5 + $0x90] sm:$0xff]
    %v564 = vld [vmem:[#allocation5 + $0x98] sm:$0xf]
    %v565 = vld [vmem:[#allocation5 + $0x9c] sm:$0xff]
    %v566 = vld [vmem:[#allocation5 + $0xa4] sm:$0xf]
    %v567 = vld [vmem:[#allocation5 + $0xa8] sm:$0xff]
    %v568 = vld [vmem:[#allocation5 + $0xb0] sm:$0xf]
    %v569 = vld [vmem:[#allocation5 + $0xb4] sm:$0xff]
    %v570 = vld [vmem:[#allocation5 + $0xbc] sm:$0xf]
    %v603 = vunpack.c.l.b16 %v539
    %v604 = vunpack.c.h.b16 %v539
    %v605 = vunpack.c.l.b16 %v540
    %v606 = vunpack.c.l.b16 %v541
    %v607 = vunpack.c.h.b16 %v541
    %v608 = vunpack.c.l.b16 %v542
    %v609 = vunpack.c.l.b16 %v543
    %v610 = vunpack.c.h.b16 %v543
    %v611 = vunpack.c.l.b16 %v544
    %v612 = vunpack.c.l.b16 %v545
    %v613 = vunpack.c.h.b16 %v545
    %v614 = vunpack.c.l.b16 %v546
    %v615 = vunpack.c.l.b16 %v547
    %v616 = vunpack.c.h.b16 %v547
    %v617 = vunpack.c.l.b16 %v548
    %v618 = vunpack.c.l.b16 %v549
    %v619 = vunpack.c.h.b16 %v549
    %v620 = vunpack.c.l.b16 %v550
    %v621 = vunpack.c.l.b16 %v551
    %v622 = vunpack.c.h.b16 %v551
    %v623 = vunpack.c.l.b16 %v552
    %v624 = vunpack.c.l.b16 %v553
    %v625 = vunpack.c.h.b16 %v553
    %v626 = vunpack.c.l.b16 %v554
    %v627 = vunpack.c.l.b16 %v555
    %v628 = vunpack.c.h.b16 %v555
    %v629 = vunpack.c.l.b16 %v556
    %v630 = vunpack.c.l.b16 %v557
    %v631 = vunpack.c.h.b16 %v557
    %v632 = vunpack.c.l.b16 %v558
    %v633 = vunpack.c.l.b16 %v559
    %v634 = vunpack.c.h.b16 %v559
    %v635 = vunpack.c.l.b16 %v560
    %v636 = vunpack.c.l.b16 %v561
    %v637 = vunpack.c.h.b16 %v561
    %v638 = vunpack.c.l.b16 %v562
    %v639 = vunpack.c.l.b16 %v563
    %v640 = vunpack.c.h.b16 %v563
    %v641 = vunpack.c.l.b16 %v564
    %v642 = vunpack.c.l.b16 %v565
    %v643 = vunpack.c.h.b16 %v565
    %v644 = vunpack.c.l.b16 %v566
    %v645 = vunpack.c.l.b16 %v567
    %v646 = vunpack.c.h.b16 %v567
    %v647 = vunpack.c.l.b16 %v568
    %v648 = vunpack.c.l.b16 %v569
    %v649 = vunpack.c.h.b16 %v569
    %v650 = vunpack.c.l.b16 %v570
    %v651 = vpack.c.b16 %v606, %v603
    %v652 = vpack.c.b16 %v607, %v604
    %v653 = vpack.c.b16 %v608, %v605
    %v654 = vpack.c.b16 %v612, %v609
    %v655 = vpack.c.b16 %v613, %v610
    %v656 = vpack.c.b16 %v614, %v611
    %v657 = vpack.c.b16 %v618, %v615
    %v658 = vpack.c.b16 %v619, %v616
    %v659 = vpack.c.b16 %v620, %v617
    %v660 = vpack.c.b16 %v624, %v621
    %v661 = vpack.c.b16 %v625, %v622
    %v662 = vpack.c.b16 %v626, %v623
    %v663 = vpack.c.b16 %v630, %v627
    %v664 = vpack.c.b16 %v631, %v628
    %v665 = vpack.c.b16 %v632, %v629
    %v666 = vpack.c.b16 %v636, %v633
    %v667 = vpack.c.b16 %v637, %v634
    %v668 = vpack.c.b16 %v638, %v635
    %v669 = vpack.c.b16 %v642, %v639
    %v670 = vpack.c.b16 %v643, %v640
    %v671 = vpack.c.b16 %v644, %v641
    %v672 = vpack.c.b16 %v648, %v645
    %v673 = vpack.c.b16 %v649, %v646
    %v674 = vpack.c.b16 %v650, %v647
    %699 = vmatprep.subr.bf16.mxu0 %v673
    %700 = vmatpush1.bf16.msra.mxu0 %v672
    %701 = vmatprep.subr.bf16.mxu0 %v670
    %702 = vmatpush1.bf16.msra.mxu0 %v669
    %703 = vmatprep.subr.bf16.mxu0 %v667
    %704 = vmatpush1.bf16.msra.mxu0 %v666
    %705 = vmatprep.subr.bf16.mxu0 %v664
    %706 = vmatpush1.bf16.msra.mxu0 %v663
    %707 = vmatprep.subr.bf16.mxu0 %v661
    %708 = vmatpush1.bf16.msra.mxu0 %v660
    %709 = vmatprep.subr.bf16.mxu0 %v658
    %710 = vmatpush1.bf16.msra.mxu0 %v657
    %711 = vmatprep.subr.bf16.mxu0 %v655
    %712 = vmatpush1.bf16.msra.mxu0 %v654
    %713 = vmatprep.subr.bf16.mxu0 %v652
    %714 = vmatpush1.bf16.msra.mxu0 %v651
    %715 = vmatprep.subr.bf16.mxu0 0
    %716 = vmatpush2.bf16.msra.mxu0 0
    %717 = vmatprep.subr.bf16.mxu0 0
    %718 = vmatpush2.bf16.msra.mxu0 0
    %719 = vmatprep.subr.bf16.mxu0 0
    %720 = vmatpush2.bf16.msra.mxu0 0
    %721 = vmatprep.subr.bf16.mxu0 0
    %722 = vmatpush2.bf16.msra.mxu0 0
    %723 = vmatprep.subr.bf16.mxu0 0
    %724 = vmatpush2.bf16.msra.mxu0 0
    %725 = vmatprep.subr.bf16.mxu0 0
    %726 = vmatpush2.bf16.msra.mxu0 0
    %727 = vmatprep.subr.bf16.mxu0 0
    %728 = vmatpush2.bf16.msra.mxu0 0
    %729 = vmatprep.subr.bf16.mxu0 0
    %730 = vmatpush2.bf16.msra.mxu0 0
    %731 = vmatprep.mubr.bf16.mxu0 0
    %732 = vmatmul.mubr.bf16.gmra.mxu0 %v531
    %v733 = vpop.f32.mrf.mxu0
    %v734 = vadd.f32 0.0, %v733
    %v735 = vpop.f32.mrf.mxu0
    %v736 = vadd.f32 0.0, %v735
    %v737 = vpop.f32.mrf.mxu0
    %v738 = vadd.f32 0.0, %v737
    %v739 = vpop.f32.mrf.mxu0
    %v740 = vadd.f32 0.0, %v739
    %741 = vmatprep.mubr.bf16.mxu0 0
    %742 = vmatmul.mubr.bf16.gmra.mxu0 %v532
    %v743 = vpop.f32.mrf.mxu0
    %v744 = vadd.f32 0.0, %v743
    %v745 = vpop.f32.mrf.mxu0
    %v746 = vadd.f32 0.0, %v745
    %v747 = vpop.f32.mrf.mxu0
    %v748 = vadd.f32 0.0, %v747
    %v749 = vpop.f32.mrf.mxu0
    %v750 = vadd.f32 0.0, %v749
    %751 = vmatprep.mubr.bf16.mxu0 0
    %752 = vmatmul.mubr.bf16.gmra.mxu0 %v533
    %v753 = vpop.f32.mrf.mxu0
    %v754 = vadd.f32 0.0, %v753
    %v755 = vpop.f32.mrf.mxu0
    %v756 = vadd.f32 0.0, %v755
    %v757 = vpop.f32.mrf.mxu0
    %v758 = vadd.f32 0.0, %v757
    %v759 = vpop.f32.mrf.mxu0
    %v760 = vadd.f32 0.0, %v759
    %761 = vmatprep.mubr.bf16.mxu0 0
    %762 = vmatmul.mubr.bf16.gmra.mxu0 %v534
    %v763 = vpop.f32.mrf.mxu0
    %v764 = vadd.f32 0.0, %v763
    %v765 = vpop.f32.mrf.mxu0
    %v766 = vadd.f32 0.0, %v765
    %v767 = vpop.f32.mrf.mxu0
    %v768 = vadd.f32 0.0, %v767
    %v769 = vpop.f32.mrf.mxu0
    %v770 = vadd.f32 0.0, %v769
    %771 = vmatprep.mubr.bf16.mxu0 0
    %772 = vmatmul.mubr.bf16.gmra.mxu0 %v535
    %v773 = vpop.f32.mrf.mxu0
    %v774 = vadd.f32 0.0, %v773
    %v775 = vpop.f32.mrf.mxu0
    %v776 = vadd.f32 0.0, %v775
    %v777 = vpop.f32.mrf.mxu0
    %v778 = vadd.f32 0.0, %v777
    %v779 = vpop.f32.mrf.mxu0
    %v780 = vadd.f32 0.0, %v779
    %781 = vmatprep.mubr.bf16.mxu0 0
    %782 = vmatmul.mubr.bf16.gmra.mxu0 %v536
    %v783 = vpop.f32.mrf.mxu0
    %v784 = vadd.f32 0.0, %v783
    %v785 = vpop.f32.mrf.mxu0
    %v786 = vadd.f32 0.0, %v785
    %v787 = vpop.f32.mrf.mxu0
    %v788 = vadd.f32 0.0, %v787
    %v789 = vpop.f32.mrf.mxu0
    %v790 = vadd.f32 0.0, %v789
    %791 = vmatprep.mubr.bf16.mxu0 0
    %792 = vmatmul.mubr.bf16.gmra.mxu0 %v537
    %v793 = vpop.f32.mrf.mxu0
    %v794 = vadd.f32 0.0, %v793
    %v795 = vpop.f32.mrf.mxu0
    %v796 = vadd.f32 0.0, %v795
    %v797 = vpop.f32.mrf.mxu0
    %v798 = vadd.f32 0.0, %v797
    %v799 = vpop.f32.mrf.mxu0
    %v800 = vadd.f32 0.0, %v799
    %801 = vmatprep.mubr.bf16.mxu0 0
    %802 = vmatmul.mubr.bf16.gmra.mxu0 %v538
    %v803 = vpop.f32.mrf.mxu0
    %v804 = vadd.f32 0.0, %v803
    %v805 = vpop.f32.mrf.mxu0
    %v806 = vadd.f32 0.0, %v805
    %v807 = vpop.f32.mrf.mxu0
    %v808 = vadd.f32 0.0, %v807
    %v809 = vpop.f32.mrf.mxu0
    %v810 = vadd.f32 0.0, %v809
    %811 = vdwg.mxu0
    %812 = vmatprep.subr.bf16.mxu0 0
    %813 = vmatpush1.bf16.msra.mxu0 %v674
    %814 = vmatprep.subr.bf16.mxu0 0
    %815 = vmatpush1.bf16.msra.mxu0 %v671
    %816 = vmatprep.subr.bf16.mxu0 0
    %817 = vmatpush1.bf16.msra.mxu0 %v668
    %818 = vmatprep.subr.bf16.mxu0 0
    %819 = vmatpush1.bf16.msra.mxu0 %v665
    %820 = vmatprep.subr.bf16.mxu0 0
    %821 = vmatpush1.bf16.msra.mxu0 %v662
    %822 = vmatprep.subr.bf16.mxu0 0
    %823 = vmatpush1.bf16.msra.mxu0 %v659
    %824 = vmatprep.subr.bf16.mxu0 0
    %825 = vmatpush1.bf16.msra.mxu0 %v656
    %826 = vmatprep.subr.bf16.mxu0 0
    %827 = vmatpush1.bf16.msra.mxu0 %v653
    %828 = vmatprep.subr.bf16.mxu0 0
    %829 = vmatpush2.bf16.msra.mxu0 0
    %830 = vmatprep.subr.bf16.mxu0 0
    %831 = vmatpush2.bf16.msra.mxu0 0
    %832 = vmatprep.subr.bf16.mxu0 0
    %833 = vmatpush2.bf16.msra.mxu0 0
    %834 = vmatprep.subr.bf16.mxu0 0
    %835 = vmatpush2.bf16.msra.mxu0 0
    %836 = vmatprep.subr.bf16.mxu0 0
    %837 = vmatpush2.bf16.msra.mxu0 0
    %838 = vmatprep.subr.bf16.mxu0 0
    %839 = vmatpush2.bf16.msra.mxu0 0
    %840 = vmatprep.subr.bf16.mxu0 0
    %841 = vmatpush2.bf16.msra.mxu0 0
    %842 = vmatprep.subr.bf16.mxu0 0
    %843 = vmatpush2.bf16.msra.mxu0 0
    %844 = vmatprep.mubr.bf16.mxu0 0
    %845 = vmatmul.mubr.bf16.gmra.mxu0 %v531
    %v846 = vpop.f32.mrf.mxu0
    %v847 = vadd.f32 0.0, %v846
    %v848 = vpop.f32.mrf.mxu0
    %v849 = vpop.f32.mrf.mxu0
    %v850 = vadd.f32 0.0, %v849
    %v851 = vpop.f32.mrf.mxu0
    %852 = vmatprep.mubr.bf16.mxu0 0
    %853 = vmatmul.mubr.bf16.gmra.mxu0 %v532
    %v854 = vpop.f32.mrf.mxu0
    %v855 = vadd.f32 0.0, %v854
    %v856 = vpop.f32.mrf.mxu0
    %v857 = vpop.f32.mrf.mxu0
    %v858 = vadd.f32 0.0, %v857
    %v859 = vpop.f32.mrf.mxu0
    %860 = vmatprep.mubr.bf16.mxu0 0
    %861 = vmatmul.mubr.bf16.gmra.mxu0 %v533
    %v862 = vpop.f32.mrf.mxu0
    %v863 = vadd.f32 0.0, %v862
    %v864 = vpop.f32.mrf.mxu0
    %v865 = vpop.f32.mrf.mxu0
    %v866 = vadd.f32 0.0, %v865
    %v867 = vpop.f32.mrf.mxu0
    %868 = vmatprep.mubr.bf16.mxu0 0
    %869 = vmatmul.mubr.bf16.gmra.mxu0 %v534
    %v870 = vpop.f32.mrf.mxu0
    %v871 = vadd.f32 0.0, %v870
    %v872 = vpop.f32.mrf.mxu0
    %v873 = vpop.f32.mrf.mxu0
    %v874 = vadd.f32 0.0, %v873
    %v875 = vpop.f32.mrf.mxu0
    %876 = vmatprep.mubr.bf16.mxu0 0
    %877 = vmatmul.mubr.bf16.gmra.mxu0 %v535
    %v878 = vpop.f32.mrf.mxu0
    %v879 = vadd.f32 0.0, %v878
    %v880 = vpop.f32.mrf.mxu0
    %v881 = vpop.f32.mrf.mxu0
    %v882 = vadd.f32 0.0, %v881
    %v883 = vpop.f32.mrf.mxu0
    %884 = vmatprep.mubr.bf16.mxu0 0
    %885 = vmatmul.mubr.bf16.gmra.mxu0 %v536
    %v886 = vpop.f32.mrf.mxu0
    %v887 = vadd.f32 0.0, %v886
    %v888 = vpop.f32.mrf.mxu0
    %v889 = vpop.f32.mrf.mxu0
    %v890 = vadd.f32 0.0, %v889
    %v891 = vpop.f32.mrf.mxu0
    %892 = vmatprep.mubr.bf16.mxu0 0
    %893 = vmatmul.mubr.bf16.gmra.mxu0 %v537
    %v894 = vpop.f32.mrf.mxu0
    %v895 = vadd.f32 0.0, %v894
    %v896 = vpop.f32.mrf.mxu0
    %v897 = vpop.f32.mrf.mxu0
    %v898 = vadd.f32 0.0, %v897
    %v899 = vpop.f32.mrf.mxu0
    %900 = vmatprep.mubr.bf16.mxu0 0
    %901 = vmatmul.mubr.bf16.gmra.mxu0 %v538
    %v902 = vpop.f32.mrf.mxu0
    %v903 = vadd.f32 0.0, %v902
    %v904 = vpop.f32.mrf.mxu0
    %v905 = vpop.f32.mrf.mxu0
    %v906 = vadd.f32 0.0, %v905
    %v907 = vpop.f32.mrf.mxu0
    %908 = vdwg.mxu0
    %v909 = vsel %vm288, %v808, 0.0
    %v910 = vsel %vm289, %v734, 0.0
    %v911 = vsel %vm290, %v738, 0.0
    %v912 = vsel %vm291, %v744, 0.0
    %v913 = vsel %vm292, %v748, 0.0
    %v914 = vsel %vm293, %v754, 0.0
    %v915 = vsel %vm294, %v758, 0.0
    %v916 = vsel %vm295, %v764, 0.0
    %v917 = vsel %vm296, %v768, 0.0
    %v918 = vsel %vm297, %v774, 0.0
    %v919 = vsel %vm298, %v778, 0.0
    %v920 = vsel %vm299, %v784, 0.0
    %v921 = vsel %vm300, %v788, 0.0
    %v922 = vsel %vm301, %v794, 0.0
    %v923 = vsel %vm302, %v798, 0.0
    %v924 = vsel %vm303, %v804, 0.0
    %v925 = vadd.f32 %v736, %v909
    %v926 = vadd.f32 %v740, %v910
    %v927 = vadd.f32 %v746, %v911
    %v928 = vadd.f32 %v750, %v912
    %v929 = vadd.f32 %v756, %v913
    %v930 = vadd.f32 %v760, %v914
    %v931 = vadd.f32 %v766, %v915
    %v932 = vadd.f32 %v770, %v916
    %v933 = vadd.f32 %v776, %v917
    %v934 = vadd.f32 %v780, %v918
    %v935 = vadd.f32 %v786, %v919
    %v936 = vadd.f32 %v790, %v920
    %v937 = vadd.f32 %v796, %v921
    %v938 = vadd.f32 %v800, %v922
    %v939 = vadd.f32 %v806, %v923
    %v940 = vadd.f32 %v810, %v924
    %v941 = vsel %vm352, %v850, 0.0
    %v942 = vsel %vm353, %v855, 0.0
    %v943 = vsel %vm354, %v858, 0.0
    %v944 = vsel %vm355, %v863, 0.0
    %v945 = vsel %vm356, %v866, 0.0
    %v946 = vsel %vm357, %v871, 0.0
    %v947 = vsel %vm358, %v874, 0.0
    %v948 = vsel %vm359, %v879, 0.0
    %v949 = vsel %vm360, %v882, 0.0
    %v950 = vsel %vm361, %v887, 0.0
    %v951 = vsel %vm362, %v890, 0.0
    %v952 = vsel %vm363, %v895, 0.0
    %v953 = vsel %vm364, %v898, 0.0
    %v954 = vsel %vm365, %v903, 0.0
    %v955 = vsel %vm366, %v906, 0.0
    %v956 = vsel %vm367, %v847, 0.0
    %v957 = vadd.f32 %v925, %v941
    %v958 = vadd.f32 %v926, %v942
    %v959 = vadd.f32 %v927, %v943
    %v960 = vadd.f32 %v928, %v944
    %v961 = vadd.f32 %v929, %v945
    %v962 = vadd.f32 %v930, %v946
    %v963 = vadd.f32 %v931, %v947
    %v964 = vadd.f32 %v932, %v948
    %v965 = vadd.f32 %v933, %v949
    %v966 = vadd.f32 %v934, %v950
    %v967 = vadd.f32 %v935, %v951
    %v968 = vadd.f32 %v936, %v952
    %v969 = vadd.f32 %v937, %v953
    %v970 = vadd.f32 %v938, %v954
    %v971 = vadd.f32 %v939, %v955
    %v972 = vadd.f32 %v940, %v956
    %v973 = vadd.f32 %v957, %v958
    %v974 = vadd.f32 %v973, %v959
    %v975 = vadd.f32 %v974, %v960
    %v976 = vadd.f32 %v975, %v961
    %v977 = vadd.f32 %v976, %v962
    %v978 = vadd.f32 %v977, %v963
    %v979 = vadd.f32 %v978, %v964
    %v980 = vadd.f32 %v979, %v965
    %v981 = vadd.f32 %v980, %v966
    %v982 = vadd.f32 %v981, %v967
    %v983 = vadd.f32 %v982, %v968
    %v984 = vadd.f32 %v983, %v969
    %v985 = vadd.f32 %v984, %v970
    %v986 = vadd.f32 %v985, %v971
    %v987 = vadd.f32 %v986, %v972
    %v988 = vrot.slane %v987, 4
    %v989 = vadd.f32 %v987, %v988
    %v990 = vrot.slane %v989, 2
    %v991 = vadd.f32 %v989, %v990
    %v992 = vrot.slane %v991, 1
    %v993 = vadd.f32 %v991, %v992
    %v994 = vmul.f32 %v993, %v421
    %v995 = vmul.f32 %v957, %v957
    %v996 = vmul.f32 %v958, %v958
    %v997 = vmul.f32 %v959, %v959
    %v998 = vmul.f32 %v960, %v960
    %v999 = vmul.f32 %v961, %v961
    %v1000 = vmul.f32 %v962, %v962
    %v1001 = vmul.f32 %v963, %v963
    %v1002 = vmul.f32 %v964, %v964
    %v1003 = vmul.f32 %v965, %v965
    %v1004 = vmul.f32 %v966, %v966
    %v1005 = vmul.f32 %v967, %v967
    %v1006 = vmul.f32 %v968, %v968
    %v1007 = vmul.f32 %v969, %v969
    %v1008 = vmul.f32 %v970, %v970
    %v1009 = vmul.f32 %v971, %v971
    %v1010 = vmul.f32 %v972, %v972
    %v1011 = vadd.f32 %v995, %v996
    %v1012 = vadd.f32 %v1011, %v997
    %v1013 = vadd.f32 %v1012, %v998
    %v1014 = vadd.f32 %v1013, %v999
    %v1015 = vadd.f32 %v1014, %v1000
    %v1016 = vadd.f32 %v1015, %v1001
    %v1017 = vadd.f32 %v1016, %v1002
    %v1018 = vadd.f32 %v1017, %v1003
    %v1019 = vadd.f32 %v1018, %v1004
    %v1020 = vadd.f32 %v1019, %v1005
    %v1021 = vadd.f32 %v1020, %v1006
    %v1022 = vadd.f32 %v1021, %v1007
    %v1023 = vadd.f32 %v1022, %v1008
    %v1024 = vadd.f32 %v1023, %v1009
    %v1025 = vadd.f32 %v1024, %v1010
    %v1026 = vrot.slane %v1025, 4
    %v1027 = vadd.f32 %v1025, %v1026
    %v1028 = vrot.slane %v1027, 2
    %v1029 = vadd.f32 %v1027, %v1028
    %v1030 = vrot.slane %v1029, 1
    %v1031 = vadd.f32 %v1029, %v1030
    %v1032 = vmul.f32 %v1031, %v421
    %v1033 = vmul.f32 %v994, %v994
    %v1034 = vsub.f32 %v1032, %v1033
    %v1035 = vmax.f32 %v1034, 0.0
    %s1036 = scalar_lea.vmem %s3, 1
    %v1037 = vld [vmem:[%s1036] sm:$0x1]
    %v1038 = vadd.f32 %v1035, 1e-05
    %v1039 = vrsqrt.pop %v1038
    %v1040 = vmul.f32 %v1037, %v1039
    %s1041 = scalar_lea.vmem %s4, 1
    %v1042 = vld [vmem:[%s1041] sm:$0x1]
    %v1043 = vmul.f32 %v994, %v1040
    %v1044 = vsub.f32 %v1042, %v1043
    %v1046 = vlaneseq
    %v1047 = vshrl.u32 %v1046, 7
    %v1048 = vsub.s32 0, %v1047
    %v1049 = vrot.slane %v1040, %v1048
    %v1051 = vmul.f32 %v957, %v1049
    %v1052 = vmul.f32 %v958, %v1049
    %v1053 = vmul.f32 %v959, %v1049
    %v1054 = vmul.f32 %v960, %v1049
    %v1055 = vmul.f32 %v961, %v1049
    %v1056 = vmul.f32 %v962, %v1049
    %v1057 = vmul.f32 %v963, %v1049
    %v1058 = vmul.f32 %v964, %v1049
    %v1059 = vmul.f32 %v965, %v1049
    %v1060 = vmul.f32 %v966, %v1049
    %v1061 = vmul.f32 %v967, %v1049
    %v1062 = vmul.f32 %v968, %v1049
    %v1063 = vmul.f32 %v969, %v1049
    %v1064 = vmul.f32 %v970, %v1049
    %v1065 = vmul.f32 %v971, %v1049
    %v1066 = vmul.f32 %v972, %v1049
    %v1068 = vlaneseq
    %v1069 = vshrl.u32 %v1068, 7
    %v1070 = vsub.s32 0, %v1069
    %v1071 = vrot.slane %v1044, %v1070
    %v1073 = vadd.f32 %v1051, %v1071
    %v1074 = vadd.f32 %v1052, %v1071
    %v1075 = vadd.f32 %v1053, %v1071
    %v1076 = vadd.f32 %v1054, %v1071
    %v1077 = vadd.f32 %v1055, %v1071
    %v1078 = vadd.f32 %v1056, %v1071
    %v1079 = vadd.f32 %v1057, %v1071
    %v1080 = vadd.f32 %v1058, %v1071
    %v1081 = vadd.f32 %v1059, %v1071
    %v1082 = vadd.f32 %v1060, %v1071
    %v1083 = vadd.f32 %v1061, %v1071
    %v1084 = vadd.f32 %v1062, %v1071
    %v1085 = vadd.f32 %v1063, %v1071
    %v1086 = vadd.f32 %v1064, %v1071
    %v1087 = vadd.f32 %v1065, %v1071
    %v1088 = vadd.f32 %v1066, %v1071
    %v1089 = vmax.f32 %v1073, 0.0
    %v1090 = vmax.f32 %v1074, 0.0
    %v1091 = vmax.f32 %v1075, 0.0
    %v1092 = vmax.f32 %v1076, 0.0
    %v1093 = vmax.f32 %v1077, 0.0
    %v1094 = vmax.f32 %v1078, 0.0
    %v1095 = vmax.f32 %v1079, 0.0
    %v1096 = vmax.f32 %v1080, 0.0
    %v1097 = vmax.f32 %v1081, 0.0
    %v1098 = vmax.f32 %v1082, 0.0
    %v1099 = vmax.f32 %v1083, 0.0
    %v1100 = vmax.f32 %v1084, 0.0
    %v1101 = vmax.f32 %v1085, 0.0
    %v1102 = vmax.f32 %v1086, 0.0
    %v1103 = vmax.f32 %v1087, 0.0
    %v1104 = vmax.f32 %v1088, 0.0
    %v1105 = vpack.c.bf16 %v1090, %v1089
    %v1106 = vpack.c.bf16 %v1092, %v1091
    %v1107 = vpack.c.bf16 %v1094, %v1093
    %v1108 = vpack.c.bf16 %v1096, %v1095
    %v1109 = vpack.c.bf16 %v1098, %v1097
    %v1110 = vpack.c.bf16 %v1100, %v1099
    %v1111 = vpack.c.bf16 %v1102, %v1101
    %v1112 = vpack.c.bf16 %v1104, %v1103
    %s1113 = scalar_lea.vmem [#allocation5], 192
    %v1114 = vld [vmem:[%s1113] sm:$0xff]
    %v1115 = vld [vmem:[%s1113 + $0x8] sm:$0xf]
    %v1116 = vld [vmem:[%s1113 + $0xc] sm:$0xff]
    %v1117 = vld [vmem:[%s1113 + $0x14] sm:$0xf]
    %v1118 = vld [vmem:[%s1113 + $0x18] sm:$0xff]
    %v1119 = vld [vmem:[%s1113 + $0x20] sm:$0xf]
    %v1120 = vld [vmem:[%s1113 + $0x24] sm:$0xff]
    %v1121 = vld [vmem:[%s1113 + $0x2c] sm:$0xf]
    %v1122 = vld [vmem:[%s1113 + $0x30] sm:$0xff]
    %v1123 = vld [vmem:[%s1113 + $0x38] sm:$0xf]
    %v1124 = vld [vmem:[%s1113 + $0x3c] sm:$0xff]
    %v1125 = vld [vmem:[%s1113 + $0x44] sm:$0xf]
    %v1126 = vld [vmem:[%s1113 + $0x48] sm:$0xff]
    %v1127 = vld [vmem:[%s1113 + $0x50] sm:$0xf]
    %v1128 = vld [vmem:[%s1113 + $0x54] sm:$0xff]
    %v1129 = vld [vmem:[%s1113 + $0x5c] sm:$0xf]
    %v1130 = vld [vmem:[%s1113 + $0x60] sm:$0xff]
    %v1131 = vld [vmem:[%s1113 + $0x68] sm:$0xf]
    %v1132 = vld [vmem:[%s1113 + $0x6c] sm:$0xff]
    %v1133 = vld [vmem:[%s1113 + $0x74] sm:$0xf]
    %v1134 = vld [vmem:[%s1113 + $0x78] sm:$0xff]
    %v1135 = vld [vmem:[%s1113 + $0x80] sm:$0xf]
    %v1136 = vld [vmem:[%s1113 + $0x84] sm:$0xff]
    %v1137 = vld [vmem:[%s1113 + $0x8c] sm:$0xf]
    %v1138 = vld [vmem:[%s1113 + $0x90] sm:$0xff]
    %v1139 = vld [vmem:[%s1113 + $0x98] sm:$0xf]
    %v1140 = vld [vmem:[%s1113 + $0x9c] sm:$0xff]
    %v1141 = vld [vmem:[%s1113 + $0xa4] sm:$0xf]
    %v1142 = vld [vmem:[%s1113 + $0xa8] sm:$0xff]
    %v1143 = vld [vmem:[%s1113 + $0xb0] sm:$0xf]
    %v1144 = vld [vmem:[%s1113 + $0xb4] sm:$0xff]
    %v1145 = vld [vmem:[%s1113 + $0xbc] sm:$0xf]
    %v1178 = vunpack.c.l.b16 %v1114
    %v1179 = vunpack.c.h.b16 %v1114
    %v1180 = vunpack.c.l.b16 %v1115
    %v1181 = vunpack.c.l.b16 %v1116
    %v1182 = vunpack.c.h.b16 %v1116
    %v1183 = vunpack.c.l.b16 %v1117
    %v1184 = vunpack.c.l.b16 %v1118
    %v1185 = vunpack.c.h.b16 %v1118
    %v1186 = vunpack.c.l.b16 %v1119
    %v1187 = vunpack.c.l.b16 %v1120
    %v1188 = vunpack.c.h.b16 %v1120
    %v1189 = vunpack.c.l.b16 %v1121
    %v1190 = vunpack.c.l.b16 %v1122
    %v1191 = vunpack.c.h.b16 %v1122
    %v1192 = vunpack.c.l.b16 %v1123
    %v1193 = vunpack.c.l.b16 %v1124
    %v1194 = vunpack.c.h.b16 %v1124
    %v1195 = vunpack.c.l.b16 %v1125
    %v1196 = vunpack.c.l.b16 %v1126
    %v1197 = vunpack.c.h.b16 %v1126
    %v1198 = vunpack.c.l.b16 %v1127
    %v1199 = vunpack.c.l.b16 %v1128
    %v1200 = vunpack.c.h.b16 %v1128
    %v1201 = vunpack.c.l.b16 %v1129
    %v1202 = vunpack.c.l.b16 %v1130
    %v1203 = vunpack.c.h.b16 %v1130
    %v1204 = vunpack.c.l.b16 %v1131
    %v1205 = vunpack.c.l.b16 %v1132
    %v1206 = vunpack.c.h.b16 %v1132
    %v1207 = vunpack.c.l.b16 %v1133
    %v1208 = vunpack.c.l.b16 %v1134
    %v1209 = vunpack.c.h.b16 %v1134
    %v1210 = vunpack.c.l.b16 %v1135
    %v1211 = vunpack.c.l.b16 %v1136
    %v1212 = vunpack.c.h.b16 %v1136
    %v1213 = vunpack.c.l.b16 %v1137
    %v1214 = vunpack.c.l.b16 %v1138
    %v1215 = vunpack.c.h.b16 %v1138
    %v1216 = vunpack.c.l.b16 %v1139
    %v1217 = vunpack.c.l.b16 %v1140
    %v1218 = vunpack.c.h.b16 %v1140
    %v1219 = vunpack.c.l.b16 %v1141
    %v1220 = vunpack.c.l.b16 %v1142
    %v1221 = vunpack.c.h.b16 %v1142
    %v1222 = vunpack.c.l.b16 %v1143
    %v1223 = vunpack.c.l.b16 %v1144
    %v1224 = vunpack.c.h.b16 %v1144
    %v1225 = vunpack.c.l.b16 %v1145
    %v1226 = vpack.c.b16 %v1181, %v1178
    %v1227 = vpack.c.b16 %v1182, %v1179
    %v1228 = vpack.c.b16 %v1183, %v1180
    %v1229 = vpack.c.b16 %v1187, %v1184
    %v1230 = vpack.c.b16 %v1188, %v1185
    %v1231 = vpack.c.b16 %v1189, %v1186
    %v1232 = vpack.c.b16 %v1193, %v1190
    %v1233 = vpack.c.b16 %v1194, %v1191
    %v1234 = vpack.c.b16 %v1195, %v1192
    %v1235 = vpack.c.b16 %v1199, %v1196
    %v1236 = vpack.c.b16 %v1200, %v1197
    %v1237 = vpack.c.b16 %v1201, %v1198
    %v1238 = vpack.c.b16 %v1205, %v1202
    %v1239 = vpack.c.b16 %v1206, %v1203
    %v1240 = vpack.c.b16 %v1207, %v1204
    %v1241 = vpack.c.b16 %v1211, %v1208
    %v1242 = vpack.c.b16 %v1212, %v1209
    %v1243 = vpack.c.b16 %v1213, %v1210
    %v1244 = vpack.c.b16 %v1217, %v1214
    %v1245 = vpack.c.b16 %v1218, %v1215
    %v1246 = vpack.c.b16 %v1219, %v1216
    %v1247 = vpack.c.b16 %v1223, %v1220
    %v1248 = vpack.c.b16 %v1224, %v1221
    %v1249 = vpack.c.b16 %v1225, %v1222
    %1274 = vmatprep.subr.bf16.mxu0 %v1248
    %1275 = vmatpush1.bf16.msra.mxu0 %v1247
    %1276 = vmatprep.subr.bf16.mxu0 %v1245
    %1277 = vmatpush1.bf16.msra.mxu0 %v1244
    %1278 = vmatprep.subr.bf16.mxu0 %v1242
    %1279 = vmatpush1.bf16.msra.mxu0 %v1241
    %1280 = vmatprep.subr.bf16.mxu0 %v1239
    %1281 = vmatpush1.bf16.msra.mxu0 %v1238
    %1282 = vmatprep.subr.bf16.mxu0 %v1236
    %1283 = vmatpush1.bf16.msra.mxu0 %v1235
    %1284 = vmatprep.subr.bf16.mxu0 %v1233
    %1285 = vmatpush1.bf16.msra.mxu0 %v1232
    %1286 = vmatprep.subr.bf16.mxu0 %v1230
    %1287 = vmatpush1.bf16.msra.mxu0 %v1229
    %1288 = vmatprep.subr.bf16.mxu0 %v1227
    %1289 = vmatpush1.bf16.msra.mxu0 %v1226
    %1290 = vmatprep.subr.bf16.mxu0 0
    %1291 = vmatpush2.bf16.msra.mxu0 0
    %1292 = vmatprep.subr.bf16.mxu0 0
    %1293 = vmatpush2.bf16.msra.mxu0 0
    %1294 = vmatprep.subr.bf16.mxu0 0
    %1295 = vmatpush2.bf16.msra.mxu0 0
    %1296 = vmatprep.subr.bf16.mxu0 0
    %1297 = vmatpush2.bf16.msra.mxu0 0
    %1298 = vmatprep.subr.bf16.mxu0 0
    %1299 = vmatpush2.bf16.msra.mxu0 0
    %1300 = vmatprep.subr.bf16.mxu0 0
    %1301 = vmatpush2.bf16.msra.mxu0 0
    %1302 = vmatprep.subr.bf16.mxu0 0
    %1303 = vmatpush2.bf16.msra.mxu0 0
    %1304 = vmatprep.subr.bf16.mxu0 0
    %1305 = vmatpush2.bf16.msra.mxu0 0
    %1306 = vmatprep.mubr.bf16.mxu0 0
    %1307 = vmatmul.mubr.bf16.gmra.mxu0 %v1105
    %v1308 = vpop.f32.mrf.mxu0
    %v1309 = vadd.f32 0.0, %v1308
    %v1310 = vpop.f32.mrf.mxu0
    %v1311 = vadd.f32 0.0, %v1310
    %v1312 = vpop.f32.mrf.mxu0
    %v1313 = vadd.f32 0.0, %v1312
    %v1314 = vpop.f32.mrf.mxu0
    %v1315 = vadd.f32 0.0, %v1314
    %1316 = vmatprep.mubr.bf16.mxu0 0
    %1317 = vmatmul.mubr.bf16.gmra.mxu0 %v1106
    %v1318 = vpop.f32.mrf.mxu0
    %v1319 = vadd.f32 0.0, %v1318
    %v1320 = vpop.f32.mrf.mxu0
    %v1321 = vadd.f32 0.0, %v1320
    %v1322 = vpop.f32.mrf.mxu0
    %v1323 = vadd.f32 0.0, %v1322
    %v1324 = vpop.f32.mrf.mxu0
    %v1325 = vadd.f32 0.0, %v1324
    %1326 = vmatprep.mubr.bf16.mxu0 0
    %1327 = vmatmul.mubr.bf16.gmra.mxu0 %v1107
    %v1328 = vpop.f32.mrf.mxu0
    %v1329 = vadd.f32 0.0, %v1328
    %v1330 = vpop.f32.mrf.mxu0
    %v1331 = vadd.f32 0.0, %v1330
    %v1332 = vpop.f32.mrf.mxu0
    %v1333 = vadd.f32 0.0, %v1332
    %v1334 = vpop.f32.mrf.mxu0
    %v1335 = vadd.f32 0.0, %v1334
    %1336 = vmatprep.mubr.bf16.mxu0 0
    %1337 = vmatmul.mubr.bf16.gmra.mxu0 %v1108
    %v1338 = vpop.f32.mrf.mxu0
    %v1339 = vadd.f32 0.0, %v1338
    %v1340 = vpop.f32.mrf.mxu0
    %v1341 = vadd.f32 0.0, %v1340
    %v1342 = vpop.f32.mrf.mxu0
    %v1343 = vadd.f32 0.0, %v1342
    %v1344 = vpop.f32.mrf.mxu0
    %v1345 = vadd.f32 0.0, %v1344
    %1346 = vmatprep.mubr.bf16.mxu0 0
    %1347 = vmatmul.mubr.bf16.gmra.mxu0 %v1109
    %v1348 = vpop.f32.mrf.mxu0
    %v1349 = vadd.f32 0.0, %v1348
    %v1350 = vpop.f32.mrf.mxu0
    %v1351 = vadd.f32 0.0, %v1350
    %v1352 = vpop.f32.mrf.mxu0
    %v1353 = vadd.f32 0.0, %v1352
    %v1354 = vpop.f32.mrf.mxu0
    %v1355 = vadd.f32 0.0, %v1354
    %1356 = vmatprep.mubr.bf16.mxu0 0
    %1357 = vmatmul.mubr.bf16.gmra.mxu0 %v1110
    %v1358 = vpop.f32.mrf.mxu0
    %v1359 = vadd.f32 0.0, %v1358
    %v1360 = vpop.f32.mrf.mxu0
    %v1361 = vadd.f32 0.0, %v1360
    %v1362 = vpop.f32.mrf.mxu0
    %v1363 = vadd.f32 0.0, %v1362
    %v1364 = vpop.f32.mrf.mxu0
    %v1365 = vadd.f32 0.0, %v1364
    %1366 = vmatprep.mubr.bf16.mxu0 0
    %1367 = vmatmul.mubr.bf16.gmra.mxu0 %v1111
    %v1368 = vpop.f32.mrf.mxu0
    %v1369 = vadd.f32 0.0, %v1368
    %v1370 = vpop.f32.mrf.mxu0
    %v1371 = vadd.f32 0.0, %v1370
    %v1372 = vpop.f32.mrf.mxu0
    %v1373 = vadd.f32 0.0, %v1372
    %v1374 = vpop.f32.mrf.mxu0
    %v1375 = vadd.f32 0.0, %v1374
    %1376 = vmatprep.mubr.bf16.mxu0 0
    %1377 = vmatmul.mubr.bf16.gmra.mxu0 %v1112
    %v1378 = vpop.f32.mrf.mxu0
    %v1379 = vadd.f32 0.0, %v1378
    %v1380 = vpop.f32.mrf.mxu0
    %v1381 = vadd.f32 0.0, %v1380
    %v1382 = vpop.f32.mrf.mxu0
    %v1383 = vadd.f32 0.0, %v1382
    %v1384 = vpop.f32.mrf.mxu0
    %v1385 = vadd.f32 0.0, %v1384
    %1386 = vdwg.mxu0
    %1387 = vmatprep.subr.bf16.mxu0 0
    %1388 = vmatpush1.bf16.msra.mxu0 %v1249
    %1389 = vmatprep.subr.bf16.mxu0 0
    %1390 = vmatpush1.bf16.msra.mxu0 %v1246
    %1391 = vmatprep.subr.bf16.mxu0 0
    %1392 = vmatpush1.bf16.msra.mxu0 %v1243
    %1393 = vmatprep.subr.bf16.mxu0 0
    %1394 = vmatpush1.bf16.msra.mxu0 %v1240
    %1395 = vmatprep.subr.bf16.mxu0 0
    %1396 = vmatpush1.bf16.msra.mxu0 %v1237
    %1397 = vmatprep.subr.bf16.mxu0 0
    %1398 = vmatpush1.bf16.msra.mxu0 %v1234
    %1399 = vmatprep.subr.bf16.mxu0 0
    %1400 = vmatpush1.bf16.msra.mxu0 %v1231
    %1401 = vmatprep.subr.bf16.mxu0 0
    %1402 = vmatpush1.bf16.msra.mxu0 %v1228
    %1403 = vmatprep.subr.bf16.mxu0 0
    %1404 = vmatpush2.bf16.msra.mxu0 0
    %1405 = vmatprep.subr.bf16.mxu0 0
    %1406 = vmatpush2.bf16.msra.mxu0 0
    %1407 = vmatprep.subr.bf16.mxu0 0
    %1408 = vmatpush2.bf16.msra.mxu0 0
    %1409 = vmatprep.subr.bf16.mxu0 0
    %1410 = vmatpush2.bf16.msra.mxu0 0
    %1411 = vmatprep.subr.bf16.mxu0 0
    %1412 = vmatpush2.bf16.msra.mxu0 0
    %1413 = vmatprep.subr.bf16.mxu0 0
    %1414 = vmatpush2.bf16.msra.mxu0 0
    %1415 = vmatprep.subr.bf16.mxu0 0
    %1416 = vmatpush2.bf16.msra.mxu0 0
    %1417 = vmatprep.subr.bf16.mxu0 0
    %1418 = vmatpush2.bf16.msra.mxu0 0
    %1419 = vmatprep.mubr.bf16.mxu0 0
    %1420 = vmatmul.mubr.bf16.gmra.mxu0 %v1105
    %v1421 = vpop.f32.mrf.mxu0
    %v1422 = vadd.f32 0.0, %v1421
    %v1423 = vpop.f32.mrf.mxu0
    %v1424 = vpop.f32.mrf.mxu0
    %v1425 = vadd.f32 0.0, %v1424
    %v1426 = vpop.f32.mrf.mxu0
    %1427 = vmatprep.mubr.bf16.mxu0 0
    %1428 = vmatmul.mubr.bf16.gmra.mxu0 %v1106
    %v1429 = vpop.f32.mrf.mxu0
    %v1430 = vadd.f32 0.0, %v1429
    %v1431 = vpop.f32.mrf.mxu0
    %v1432 = vpop.f32.mrf.mxu0
    %v1433 = vadd.f32 0.0, %v1432
    %v1434 = vpop.f32.mrf.mxu0
    %1435 = vmatprep.mubr.bf16.mxu0 0
    %1436 = vmatmul.mubr.bf16.gmra.mxu0 %v1107
    %v1437 = vpop.f32.mrf.mxu0
    %v1438 = vadd.f32 0.0, %v1437
    %v1439 = vpop.f32.mrf.mxu0
    %v1440 = vpop.f32.mrf.mxu0
    %v1441 = vadd.f32 0.0, %v1440
    %v1442 = vpop.f32.mrf.mxu0
    %1443 = vmatprep.mubr.bf16.mxu0 0
    %1444 = vmatmul.mubr.bf16.gmra.mxu0 %v1108
    %v1445 = vpop.f32.mrf.mxu0
    %v1446 = vadd.f32 0.0, %v1445
    %v1447 = vpop.f32.mrf.mxu0
    %v1448 = vpop.f32.mrf.mxu0
    %v1449 = vadd.f32 0.0, %v1448
    %v1450 = vpop.f32.mrf.mxu0
    %1451 = vmatprep.mubr.bf16.mxu0 0
    %1452 = vmatmul.mubr.bf16.gmra.mxu0 %v1109
    %v1453 = vpop.f32.mrf.mxu0
    %v1454 = vadd.f32 0.0, %v1453
    %v1455 = vpop.f32.mrf.mxu0
    %v1456 = vpop.f32.mrf.mxu0
    %v1457 = vadd.f32 0.0, %v1456
    %v1458 = vpop.f32.mrf.mxu0
    %1459 = vmatprep.mubr.bf16.mxu0 0
    %1460 = vmatmul.mubr.bf16.gmra.mxu0 %v1110
    %v1461 = vpop.f32.mrf.mxu0
    %v1462 = vadd.f32 0.0, %v1461
    %v1463 = vpop.f32.mrf.mxu0
    %v1464 = vpop.f32.mrf.mxu0
    %v1465 = vadd.f32 0.0, %v1464
    %v1466 = vpop.f32.mrf.mxu0
    %1467 = vmatprep.mubr.bf16.mxu0 0
    %1468 = vmatmul.mubr.bf16.gmra.mxu0 %v1111
    %v1469 = vpop.f32.mrf.mxu0
    %v1470 = vadd.f32 0.0, %v1469
    %v1471 = vpop.f32.mrf.mxu0
    %v1472 = vpop.f32.mrf.mxu0
    %v1473 = vadd.f32 0.0, %v1472
    %v1474 = vpop.f32.mrf.mxu0
    %1475 = vmatprep.mubr.bf16.mxu0 0
    %1476 = vmatmul.mubr.bf16.gmra.mxu0 %v1112
    %v1477 = vpop.f32.mrf.mxu0
    %v1478 = vadd.f32 0.0, %v1477
    %v1479 = vpop.f32.mrf.mxu0
    %v1480 = vpop.f32.mrf.mxu0
    %v1481 = vadd.f32 0.0, %v1480
    %v1482 = vpop.f32.mrf.mxu0
    %1483 = vdwg.mxu0
    %v1484 = vsel %vm288, %v1383, 0.0
    %v1485 = vsel %vm289, %v1309, 0.0
    %v1486 = vsel %vm290, %v1313, 0.0
    %v1487 = vsel %vm291, %v1319, 0.0
    %v1488 = vsel %vm292, %v1323, 0.0
    %v1489 = vsel %vm293, %v1329, 0.0
    %v1490 = vsel %vm294, %v1333, 0.0
    %v1491 = vsel %vm295, %v1339, 0.0
    %v1492 = vsel %vm296, %v1343, 0.0
    %v1493 = vsel %vm297, %v1349, 0.0
    %v1494 = vsel %vm298, %v1353, 0.0
    %v1495 = vsel %vm299, %v1359, 0.0
    %v1496 = vsel %vm300, %v1363, 0.0
    %v1497 = vsel %vm301, %v1369, 0.0
    %v1498 = vsel %vm302, %v1373, 0.0
    %v1499 = vsel %vm303, %v1379, 0.0
    %v1500 = vadd.f32 %v1311, %v1484
    %v1501 = vadd.f32 %v1315, %v1485
    %v1502 = vadd.f32 %v1321, %v1486
    %v1503 = vadd.f32 %v1325, %v1487
    %v1504 = vadd.f32 %v1331, %v1488
    %v1505 = vadd.f32 %v1335, %v1489
    %v1506 = vadd.f32 %v1341, %v1490
    %v1507 = vadd.f32 %v1345, %v1491
    %v1508 = vadd.f32 %v1351, %v1492
    %v1509 = vadd.f32 %v1355, %v1493
    %v1510 = vadd.f32 %v1361, %v1494
    %v1511 = vadd.f32 %v1365, %v1495
    %v1512 = vadd.f32 %v1371, %v1496
    %v1513 = vadd.f32 %v1375, %v1497
    %v1514 = vadd.f32 %v1381, %v1498
    %v1515 = vadd.f32 %v1385, %v1499
    %v1516 = vsel %vm352, %v1425, 0.0
    %v1517 = vsel %vm353, %v1430, 0.0
    %v1518 = vsel %vm354, %v1433, 0.0
    %v1519 = vsel %vm355, %v1438, 0.0
    %v1520 = vsel %vm356, %v1441, 0.0
    %v1521 = vsel %vm357, %v1446, 0.0
    %v1522 = vsel %vm358, %v1449, 0.0
    %v1523 = vsel %vm359, %v1454, 0.0
    %v1524 = vsel %vm360, %v1457, 0.0
    %v1525 = vsel %vm361, %v1462, 0.0
    %v1526 = vsel %vm362, %v1465, 0.0
    %v1527 = vsel %vm363, %v1470, 0.0
    %v1528 = vsel %vm364, %v1473, 0.0
    %v1529 = vsel %vm365, %v1478, 0.0
    %v1530 = vsel %vm366, %v1481, 0.0
    %v1531 = vsel %vm367, %v1422, 0.0
    %v1532 = vadd.f32 %v1500, %v1516
    %v1533 = vadd.f32 %v1501, %v1517
    %v1534 = vadd.f32 %v1502, %v1518
    %v1535 = vadd.f32 %v1503, %v1519
    %v1536 = vadd.f32 %v1504, %v1520
    %v1537 = vadd.f32 %v1505, %v1521
    %v1538 = vadd.f32 %v1506, %v1522
    %v1539 = vadd.f32 %v1507, %v1523
    %v1540 = vadd.f32 %v1508, %v1524
    %v1541 = vadd.f32 %v1509, %v1525
    %v1542 = vadd.f32 %v1510, %v1526
    %v1543 = vadd.f32 %v1511, %v1527
    %v1544 = vadd.f32 %v1512, %v1528
    %v1545 = vadd.f32 %v1513, %v1529
    %v1546 = vadd.f32 %v1514, %v1530
    %v1547 = vadd.f32 %v1515, %v1531
    %v1548 = vadd.f32 %v1532, %v1533
    %v1549 = vadd.f32 %v1548, %v1534
    %v1550 = vadd.f32 %v1549, %v1535
    %v1551 = vadd.f32 %v1550, %v1536
    %v1552 = vadd.f32 %v1551, %v1537
    %v1553 = vadd.f32 %v1552, %v1538
    %v1554 = vadd.f32 %v1553, %v1539
    %v1555 = vadd.f32 %v1554, %v1540
    %v1556 = vadd.f32 %v1555, %v1541
    %v1557 = vadd.f32 %v1556, %v1542
    %v1558 = vadd.f32 %v1557, %v1543
    %v1559 = vadd.f32 %v1558, %v1544
    %v1560 = vadd.f32 %v1559, %v1545
    %v1561 = vadd.f32 %v1560, %v1546
    %v1562 = vadd.f32 %v1561, %v1547
    %v1563 = vrot.slane %v1562, 4
    %v1564 = vadd.f32 %v1562, %v1563
    %v1565 = vrot.slane %v1564, 2
    %v1566 = vadd.f32 %v1564, %v1565
    %v1567 = vrot.slane %v1566, 1
    %v1568 = vadd.f32 %v1566, %v1567
    %v1569 = vmul.f32 %v1568, %v421
    %v1570 = vmul.f32 %v1532, %v1532
    %v1571 = vmul.f32 %v1533, %v1533
    %v1572 = vmul.f32 %v1534, %v1534
    %v1573 = vmul.f32 %v1535, %v1535
    %v1574 = vmul.f32 %v1536, %v1536
    %v1575 = vmul.f32 %v1537, %v1537
    %v1576 = vmul.f32 %v1538, %v1538
    %v1577 = vmul.f32 %v1539, %v1539
    %v1578 = vmul.f32 %v1540, %v1540
    %v1579 = vmul.f32 %v1541, %v1541
    %v1580 = vmul.f32 %v1542, %v1542
    %v1581 = vmul.f32 %v1543, %v1543
    %v1582 = vmul.f32 %v1544, %v1544
    %v1583 = vmul.f32 %v1545, %v1545
    %v1584 = vmul.f32 %v1546, %v1546
    %v1585 = vmul.f32 %v1547, %v1547
    %v1586 = vadd.f32 %v1570, %v1571
    %v1587 = vadd.f32 %v1586, %v1572
    %v1588 = vadd.f32 %v1587, %v1573
    %v1589 = vadd.f32 %v1588, %v1574
    %v1590 = vadd.f32 %v1589, %v1575
    %v1591 = vadd.f32 %v1590, %v1576
    %v1592 = vadd.f32 %v1591, %v1577
    %v1593 = vadd.f32 %v1592, %v1578
    %v1594 = vadd.f32 %v1593, %v1579
    %v1595 = vadd.f32 %v1594, %v1580
    %v1596 = vadd.f32 %v1595, %v1581
    %v1597 = vadd.f32 %v1596, %v1582
    %v1598 = vadd.f32 %v1597, %v1583
    %v1599 = vadd.f32 %v1598, %v1584
    %v1600 = vadd.f32 %v1599, %v1585
    %v1601 = vrot.slane %v1600, 4
    %v1602 = vadd.f32 %v1600, %v1601
    %v1603 = vrot.slane %v1602, 2
    %v1604 = vadd.f32 %v1602, %v1603
    %v1605 = vrot.slane %v1604, 1
    %v1606 = vadd.f32 %v1604, %v1605
    %v1607 = vmul.f32 %v1606, %v421
    %v1608 = vmul.f32 %v1569, %v1569
    %v1609 = vsub.f32 %v1607, %v1608
    %v1610 = vmax.f32 %v1609, 0.0
    %s1611 = scalar_lea.vmem %s3, 2
    %v1612 = vld [vmem:[%s1611] sm:$0x1]
    %v1613 = vadd.f32 %v1610, 1e-05
    %v1614 = vrsqrt.pop %v1613
    %v1615 = vmul.f32 %v1612, %v1614
    %s1616 = scalar_lea.vmem %s4, 2
    %v1617 = vld [vmem:[%s1616] sm:$0x1]
    %v1618 = vmul.f32 %v1569, %v1615
    %v1619 = vsub.f32 %v1617, %v1618
    %v1621 = vlaneseq
    %v1622 = vshrl.u32 %v1621, 7
    %v1623 = vsub.s32 0, %v1622
    %v1624 = vrot.slane %v1615, %v1623
    %v1626 = vmul.f32 %v1532, %v1624
    %v1627 = vmul.f32 %v1533, %v1624
    %v1628 = vmul.f32 %v1534, %v1624
    %v1629 = vmul.f32 %v1535, %v1624
    %v1630 = vmul.f32 %v1536, %v1624
    %v1631 = vmul.f32 %v1537, %v1624
    %v1632 = vmul.f32 %v1538, %v1624
    %v1633 = vmul.f32 %v1539, %v1624
    %v1634 = vmul.f32 %v1540, %v1624
    %v1635 = vmul.f32 %v1541, %v1624
    %v1636 = vmul.f32 %v1542, %v1624
    %v1637 = vmul.f32 %v1543, %v1624
    %v1638 = vmul.f32 %v1544, %v1624
    %v1639 = vmul.f32 %v1545, %v1624
    %v1640 = vmul.f32 %v1546, %v1624
    %v1641 = vmul.f32 %v1547, %v1624
    %v1643 = vlaneseq
    %v1644 = vshrl.u32 %v1643, 7
    %v1645 = vsub.s32 0, %v1644
    %v1646 = vrot.slane %v1619, %v1645
    %v1648 = vadd.f32 %v1626, %v1646
    %v1649 = vadd.f32 %v1627, %v1646
    %v1650 = vadd.f32 %v1628, %v1646
    %v1651 = vadd.f32 %v1629, %v1646
    %v1652 = vadd.f32 %v1630, %v1646
    %v1653 = vadd.f32 %v1631, %v1646
    %v1654 = vadd.f32 %v1632, %v1646
    %v1655 = vadd.f32 %v1633, %v1646
    %v1656 = vadd.f32 %v1634, %v1646
    %v1657 = vadd.f32 %v1635, %v1646
    %v1658 = vadd.f32 %v1636, %v1646
    %v1659 = vadd.f32 %v1637, %v1646
    %v1660 = vadd.f32 %v1638, %v1646
    %v1661 = vadd.f32 %v1639, %v1646
    %v1662 = vadd.f32 %v1640, %v1646
    %v1663 = vadd.f32 %v1641, %v1646
    %v1664 = vmax.f32 %v1648, 0.0
    %v1665 = vmax.f32 %v1649, 0.0
    %v1666 = vmax.f32 %v1650, 0.0
    %v1667 = vmax.f32 %v1651, 0.0
    %v1668 = vmax.f32 %v1652, 0.0
    %v1669 = vmax.f32 %v1653, 0.0
    %v1670 = vmax.f32 %v1654, 0.0
    %v1671 = vmax.f32 %v1655, 0.0
    %v1672 = vmax.f32 %v1656, 0.0
    %v1673 = vmax.f32 %v1657, 0.0
    %v1674 = vmax.f32 %v1658, 0.0
    %v1675 = vmax.f32 %v1659, 0.0
    %v1676 = vmax.f32 %v1660, 0.0
    %v1677 = vmax.f32 %v1661, 0.0
    %v1678 = vmax.f32 %v1662, 0.0
    %v1679 = vmax.f32 %v1663, 0.0
    %v1680 = vpack.c.bf16 %v1665, %v1664
    %v1681 = vpack.c.bf16 %v1667, %v1666
    %v1682 = vpack.c.bf16 %v1669, %v1668
    %v1683 = vpack.c.bf16 %v1671, %v1670
    %v1684 = vpack.c.bf16 %v1673, %v1672
    %v1685 = vpack.c.bf16 %v1675, %v1674
    %v1686 = vpack.c.bf16 %v1677, %v1676
    %v1687 = vpack.c.bf16 %v1679, %v1678
    %s1688 = scalar_lea.vmem [#allocation5], 384
    %v1689 = vld [vmem:[%s1688] sm:$0xff]
    %v1690 = vld [vmem:[%s1688 + $0x8] sm:$0xf]
    %v1691 = vld [vmem:[%s1688 + $0xc] sm:$0xff]
    %v1692 = vld [vmem:[%s1688 + $0x14] sm:$0xf]
    %v1693 = vld [vmem:[%s1688 + $0x18] sm:$0xff]
    %v1694 = vld [vmem:[%s1688 + $0x20] sm:$0xf]
    %v1695 = vld [vmem:[%s1688 + $0x24] sm:$0xff]
    %v1696 = vld [vmem:[%s1688 + $0x2c] sm:$0xf]
    %v1697 = vld [vmem:[%s1688 + $0x30] sm:$0xff]
    %v1698 = vld [vmem:[%s1688 + $0x38] sm:$0xf]
    %v1699 = vld [vmem:[%s1688 + $0x3c] sm:$0xff]
    %v1700 = vld [vmem:[%s1688 + $0x44] sm:$0xf]
    %v1701 = vld [vmem:[%s1688 + $0x48] sm:$0xff]
    %v1702 = vld [vmem:[%s1688 + $0x50] sm:$0xf]
    %v1703 = vld [vmem:[%s1688 + $0x54] sm:$0xff]
    %v1704 = vld [vmem:[%s1688 + $0x5c] sm:$0xf]
    %v1705 = vld [vmem:[%s1688 + $0x60] sm:$0xff]
    %v1706 = vld [vmem:[%s1688 + $0x68] sm:$0xf]
    %v1707 = vld [vmem:[%s1688 + $0x6c] sm:$0xff]
    %v1708 = vld [vmem:[%s1688 + $0x74] sm:$0xf]
    %v1709 = vld [vmem:[%s1688 + $0x78] sm:$0xff]
    %v1710 = vld [vmem:[%s1688 + $0x80] sm:$0xf]
    %v1711 = vld [vmem:[%s1688 + $0x84] sm:$0xff]
    %v1712 = vld [vmem:[%s1688 + $0x8c] sm:$0xf]
    %v1713 = vld [vmem:[%s1688 + $0x90] sm:$0xff]
    %v1714 = vld [vmem:[%s1688 + $0x98] sm:$0xf]
    %v1715 = vld [vmem:[%s1688 + $0x9c] sm:$0xff]
    %v1716 = vld [vmem:[%s1688 + $0xa4] sm:$0xf]
    %v1717 = vld [vmem:[%s1688 + $0xa8] sm:$0xff]
    %v1718 = vld [vmem:[%s1688 + $0xb0] sm:$0xf]
    %v1719 = vld [vmem:[%s1688 + $0xb4] sm:$0xff]
    %v1720 = vld [vmem:[%s1688 + $0xbc] sm:$0xf]
    %v1753 = vunpack.c.l.b16 %v1689
    %v1754 = vunpack.c.h.b16 %v1689
    %v1755 = vunpack.c.l.b16 %v1690
    %v1756 = vunpack.c.l.b16 %v1691
    %v1757 = vunpack.c.h.b16 %v1691
    %v1758 = vunpack.c.l.b16 %v1692
    %v1759 = vunpack.c.l.b16 %v1693
    %v1760 = vunpack.c.h.b16 %v1693
    %v1761 = vunpack.c.l.b16 %v1694
    %v1762 = vunpack.c.l.b16 %v1695
    %v1763 = vunpack.c.h.b16 %v1695
    %v1764 = vunpack.c.l.b16 %v1696
    %v1765 = vunpack.c.l.b16 %v1697
    %v1766 = vunpack.c.h.b16 %v1697
    %v1767 = vunpack.c.l.b16 %v1698
    %v1768 = vunpack.c.l.b16 %v1699
    %v1769 = vunpack.c.h.b16 %v1699
    %v1770 = vunpack.c.l.b16 %v1700
    %v1771 = vunpack.c.l.b16 %v1701
    %v1772 = vunpack.c.h.b16 %v1701
    %v1773 = vunpack.c.l.b16 %v1702
    %v1774 = vunpack.c.l.b16 %v1703
    %v1775 = vunpack.c.h.b16 %v1703
    %v1776 = vunpack.c.l.b16 %v1704
    %v1777 = vunpack.c.l.b16 %v1705
    %v1778 = vunpack.c.h.b16 %v1705
    %v1779 = vunpack.c.l.b16 %v1706
    %v1780 = vunpack.c.l.b16 %v1707
    %v1781 = vunpack.c.h.b16 %v1707
    %v1782 = vunpack.c.l.b16 %v1708
    %v1783 = vunpack.c.l.b16 %v1709
    %v1784 = vunpack.c.h.b16 %v1709
    %v1785 = vunpack.c.l.b16 %v1710
    %v1786 = vunpack.c.l.b16 %v1711
    %v1787 = vunpack.c.h.b16 %v1711
    %v1788 = vunpack.c.l.b16 %v1712
    %v1789 = vunpack.c.l.b16 %v1713
    %v1790 = vunpack.c.h.b16 %v1713
    %v1791 = vunpack.c.l.b16 %v1714
    %v1792 = vunpack.c.l.b16 %v1715
    %v1793 = vunpack.c.h.b16 %v1715
    %v1794 = vunpack.c.l.b16 %v1716
    %v1795 = vunpack.c.l.b16 %v1717
    %v1796 = vunpack.c.h.b16 %v1717
    %v1797 = vunpack.c.l.b16 %v1718
    %v1798 = vunpack.c.l.b16 %v1719
    %v1799 = vunpack.c.h.b16 %v1719
    %v1800 = vunpack.c.l.b16 %v1720
    %v1801 = vpack.c.b16 %v1756, %v1753
    %v1802 = vpack.c.b16 %v1757, %v1754
    %v1803 = vpack.c.b16 %v1758, %v1755
    %v1804 = vpack.c.b16 %v1762, %v1759
    %v1805 = vpack.c.b16 %v1763, %v1760
    %v1806 = vpack.c.b16 %v1764, %v1761
    %v1807 = vpack.c.b16 %v1768, %v1765
    %v1808 = vpack.c.b16 %v1769, %v1766
    %v1809 = vpack.c.b16 %v1770, %v1767
    %v1810 = vpack.c.b16 %v1774, %v1771
    %v1811 = vpack.c.b16 %v1775, %v1772
    %v1812 = vpack.c.b16 %v1776, %v1773
    %v1813 = vpack.c.b16 %v1780, %v1777
    %v1814 = vpack.c.b16 %v1781, %v1778
    %v1815 = vpack.c.b16 %v1782, %v1779
    %v1816 = vpack.c.b16 %v1786, %v1783
    %v1817 = vpack.c.b16 %v1787, %v1784
    %v1818 = vpack.c.b16 %v1788, %v1785
    %v1819 = vpack.c.b16 %v1792, %v1789
    %v1820 = vpack.c.b16 %v1793, %v1790
    %v1821 = vpack.c.b16 %v1794, %v1791
    %v1822 = vpack.c.b16 %v1798, %v1795
    %v1823 = vpack.c.b16 %v1799, %v1796
    %v1824 = vpack.c.b16 %v1800, %v1797
    %1849 = vmatprep.subr.bf16.mxu0 %v1823
    %1850 = vmatpush1.bf16.msra.mxu0 %v1822
    %1851 = vmatprep.subr.bf16.mxu0 %v1820
    %1852 = vmatpush1.bf16.msra.mxu0 %v1819
    %1853 = vmatprep.subr.bf16.mxu0 %v1817
    %1854 = vmatpush1.bf16.msra.mxu0 %v1816
    %1855 = vmatprep.subr.bf16.mxu0 %v1814
    %1856 = vmatpush1.bf16.msra.mxu0 %v1813
    %1857 = vmatprep.subr.bf16.mxu0 %v1811
    %1858 = vmatpush1.bf16.msra.mxu0 %v1810
    %1859 = vmatprep.subr.bf16.mxu0 %v1808
    %1860 = vmatpush1.bf16.msra.mxu0 %v1807
    %1861 = vmatprep.subr.bf16.mxu0 %v1805
    %1862 = vmatpush1.bf16.msra.mxu0 %v1804
    %1863 = vmatprep.subr.bf16.mxu0 %v1802
    %1864 = vmatpush1.bf16.msra.mxu0 %v1801
    %1865 = vmatprep.subr.bf16.mxu0 0
    %1866 = vmatpush2.bf16.msra.mxu0 0
    %1867 = vmatprep.subr.bf16.mxu0 0
    %1868 = vmatpush2.bf16.msra.mxu0 0
    %1869 = vmatprep.subr.bf16.mxu0 0
    %1870 = vmatpush2.bf16.msra.mxu0 0
    %1871 = vmatprep.subr.bf16.mxu0 0
    %1872 = vmatpush2.bf16.msra.mxu0 0
    %1873 = vmatprep.subr.bf16.mxu0 0
    %1874 = vmatpush2.bf16.msra.mxu0 0
    %1875 = vmatprep.subr.bf16.mxu0 0
    %1876 = vmatpush2.bf16.msra.mxu0 0
    %1877 = vmatprep.subr.bf16.mxu0 0
    %1878 = vmatpush2.bf16.msra.mxu0 0
    %1879 = vmatprep.subr.bf16.mxu0 0
    %1880 = vmatpush2.bf16.msra.mxu0 0
    %1881 = vmatprep.mubr.bf16.mxu0 0
    %1882 = vmatmul.mubr.bf16.gmra.mxu0 %v1680
    %v1883 = vpop.f32.mrf.mxu0
    %v1884 = vadd.f32 0.0, %v1883
    %v1885 = vpop.f32.mrf.mxu0
    %v1886 = vadd.f32 0.0, %v1885
    %v1887 = vpop.f32.mrf.mxu0
    %v1888 = vadd.f32 0.0, %v1887
    %v1889 = vpop.f32.mrf.mxu0
    %v1890 = vadd.f32 0.0, %v1889
    %1891 = vmatprep.mubr.bf16.mxu0 0
    %1892 = vmatmul.mubr.bf16.gmra.mxu0 %v1681
    %v1893 = vpop.f32.mrf.mxu0
    %v1894 = vadd.f32 0.0, %v1893
    %v1895 = vpop.f32.mrf.mxu0
    %v1896 = vadd.f32 0.0, %v1895
    %v1897 = vpop.f32.mrf.mxu0
    %v1898 = vadd.f32 0.0, %v1897
    %v1899 = vpop.f32.mrf.mxu0
    %v1900 = vadd.f32 0.0, %v1899
    %1901 = vmatprep.mubr.bf16.mxu0 0
    %1902 = vmatmul.mubr.bf16.gmra.mxu0 %v1682
    %v1903 = vpop.f32.mrf.mxu0
    %v1904 = vadd.f32 0.0, %v1903
    %v1905 = vpop.f32.mrf.mxu0
    %v1906 = vadd.f32 0.0, %v1905
    %v1907 = vpop.f32.mrf.mxu0
    %v1908 = vadd.f32 0.0, %v1907
    %v1909 = vpop.f32.mrf.mxu0
    %v1910 = vadd.f32 0.0, %v1909
    %1911 = vmatprep.mubr.bf16.mxu0 0
    %1912 = vmatmul.mubr.bf16.gmra.mxu0 %v1683
    %v1913 = vpop.f32.mrf.mxu0
    %v1914 = vadd.f32 0.0, %v1913
    %v1915 = vpop.f32.mrf.mxu0
    %v1916 = vadd.f32 0.0, %v1915
    %v1917 = vpop.f32.mrf.mxu0
    %v1918 = vadd.f32 0.0, %v1917
    %v1919 = vpop.f32.mrf.mxu0
    %v1920 = vadd.f32 0.0, %v1919
    %1921 = vmatprep.mubr.bf16.mxu0 0
    %1922 = vmatmul.mubr.bf16.gmra.mxu0 %v1684
    %v1923 = vpop.f32.mrf.mxu0
    %v1924 = vadd.f32 0.0, %v1923
    %v1925 = vpop.f32.mrf.mxu0
    %v1926 = vadd.f32 0.0, %v1925
    %v1927 = vpop.f32.mrf.mxu0
    %v1928 = vadd.f32 0.0, %v1927
    %v1929 = vpop.f32.mrf.mxu0
    %v1930 = vadd.f32 0.0, %v1929
    %1931 = vmatprep.mubr.bf16.mxu0 0
    %1932 = vmatmul.mubr.bf16.gmra.mxu0 %v1685
    %v1933 = vpop.f32.mrf.mxu0
    %v1934 = vadd.f32 0.0, %v1933
    %v1935 = vpop.f32.mrf.mxu0
    %v1936 = vadd.f32 0.0, %v1935
    %v1937 = vpop.f32.mrf.mxu0
    %v1938 = vadd.f32 0.0, %v1937
    %v1939 = vpop.f32.mrf.mxu0
    %v1940 = vadd.f32 0.0, %v1939
    %1941 = vmatprep.mubr.bf16.mxu0 0
    %1942 = vmatmul.mubr.bf16.gmra.mxu0 %v1686
    %v1943 = vpop.f32.mrf.mxu0
    %v1944 = vadd.f32 0.0, %v1943
    %v1945 = vpop.f32.mrf.mxu0
    %v1946 = vadd.f32 0.0, %v1945
    %v1947 = vpop.f32.mrf.mxu0
    %v1948 = vadd.f32 0.0, %v1947
    %v1949 = vpop.f32.mrf.mxu0
    %v1950 = vadd.f32 0.0, %v1949
    %1951 = vmatprep.mubr.bf16.mxu0 0
    %1952 = vmatmul.mubr.bf16.gmra.mxu0 %v1687
    %v1953 = vpop.f32.mrf.mxu0
    %v1954 = vadd.f32 0.0, %v1953
    %v1955 = vpop.f32.mrf.mxu0
    %v1956 = vadd.f32 0.0, %v1955
    %v1957 = vpop.f32.mrf.mxu0
    %v1958 = vadd.f32 0.0, %v1957
    %v1959 = vpop.f32.mrf.mxu0
    %v1960 = vadd.f32 0.0, %v1959
    %1961 = vdwg.mxu0
    %1962 = vmatprep.subr.bf16.mxu0 0
    %1963 = vmatpush1.bf16.msra.mxu0 %v1824
    %1964 = vmatprep.subr.bf16.mxu0 0
    %1965 = vmatpush1.bf16.msra.mxu0 %v1821
    %1966 = vmatprep.subr.bf16.mxu0 0
    %1967 = vmatpush1.bf16.msra.mxu0 %v1818
    %1968 = vmatprep.subr.bf16.mxu0 0
    %1969 = vmatpush1.bf16.msra.mxu0 %v1815
    %1970 = vmatprep.subr.bf16.mxu0 0
    %1971 = vmatpush1.bf16.msra.mxu0 %v1812
    %1972 = vmatprep.subr.bf16.mxu0 0
    %1973 = vmatpush1.bf16.msra.mxu0 %v1809
    %1974 = vmatprep.subr.bf16.mxu0 0
    %1975 = vmatpush1.bf16.msra.mxu0 %v1806
    %1976 = vmatprep.subr.bf16.mxu0 0
    %1977 = vmatpush1.bf16.msra.mxu0 %v1803
    %1978 = vmatprep.subr.bf16.mxu0 0
    %1979 = vmatpush2.bf16.msra.mxu0 0
    %1980 = vmatprep.subr.bf16.mxu0 0
    %1981 = vmatpush2.bf16.msra.mxu0 0
    %1982 = vmatprep.subr.bf16.mxu0 0
    %1983 = vmatpush2.bf16.msra.mxu0 0
    %1984 = vmatprep.subr.bf16.mxu0 0
    %1985 = vmatpush2.bf16.msra.mxu0 0
    %1986 = vmatprep.subr.bf16.mxu0 0
    %1987 = vmatpush2.bf16.msra.mxu0 0
    %1988 = vmatprep.subr.bf16.mxu0 0
    %1989 = vmatpush2.bf16.msra.mxu0 0
    %1990 = vmatprep.subr.bf16.mxu0 0
    %1991 = vmatpush2.bf16.msra.mxu0 0
    %1992 = vmatprep.subr.bf16.mxu0 0
    %1993 = vmatpush2.bf16.msra.mxu0 0
    %1994 = vmatprep.mubr.bf16.mxu0 0
    %1995 = vmatmul.mubr.bf16.gmra.mxu0 %v1680
    %v1996 = vpop.f32.mrf.mxu0
    %v1997 = vadd.f32 0.0, %v1996
    %v1998 = vpop.f32.mrf.mxu0
    %v1999 = vpop.f32.mrf.mxu0
    %v2000 = vadd.f32 0.0, %v1999
    %v2001 = vpop.f32.mrf.mxu0
    %2002 = vmatprep.mubr.bf16.mxu0 0
    %2003 = vmatmul.mubr.bf16.gmra.mxu0 %v1681
    %v2004 = vpop.f32.mrf.mxu0
    %v2005 = vadd.f32 0.0, %v2004
    %v2006 = vpop.f32.mrf.mxu0
    %v2007 = vpop.f32.mrf.mxu0
    %v2008 = vadd.f32 0.0, %v2007
    %v2009 = vpop.f32.mrf.mxu0
    %2010 = vmatprep.mubr.bf16.mxu0 0
    %2011 = vmatmul.mubr.bf16.gmra.mxu0 %v1682
    %v2012 = vpop.f32.mrf.mxu0
    %v2013 = vadd.f32 0.0, %v2012
    %v2014 = vpop.f32.mrf.mxu0
    %v2015 = vpop.f32.mrf.mxu0
    %v2016 = vadd.f32 0.0, %v2015
    %v2017 = vpop.f32.mrf.mxu0
    %2018 = vmatprep.mubr.bf16.mxu0 0
    %2019 = vmatmul.mubr.bf16.gmra.mxu0 %v1683
    %v2020 = vpop.f32.mrf.mxu0
    %v2021 = vadd.f32 0.0, %v2020
    %v2022 = vpop.f32.mrf.mxu0
    %v2023 = vpop.f32.mrf.mxu0
    %v2024 = vadd.f32 0.0, %v2023
    %v2025 = vpop.f32.mrf.mxu0
    %2026 = vmatprep.mubr.bf16.mxu0 0
    %2027 = vmatmul.mubr.bf16.gmra.mxu0 %v1684
    %v2028 = vpop.f32.mrf.mxu0
    %v2029 = vadd.f32 0.0, %v2028
    %v2030 = vpop.f32.mrf.mxu0
    %v2031 = vpop.f32.mrf.mxu0
    %v2032 = vadd.f32 0.0, %v2031
    %v2033 = vpop.f32.mrf.mxu0
    %2034 = vmatprep.mubr.bf16.mxu0 0
    %2035 = vmatmul.mubr.bf16.gmra.mxu0 %v1685
    %v2036 = vpop.f32.mrf.mxu0
    %v2037 = vadd.f32 0.0, %v2036
    %v2038 = vpop.f32.mrf.mxu0
    %v2039 = vpop.f32.mrf.mxu0
    %v2040 = vadd.f32 0.0, %v2039
    %v2041 = vpop.f32.mrf.mxu0
    %2042 = vmatprep.mubr.bf16.mxu0 0
    %2043 = vmatmul.mubr.bf16.gmra.mxu0 %v1686
    %v2044 = vpop.f32.mrf.mxu0
    %v2045 = vadd.f32 0.0, %v2044
    %v2046 = vpop.f32.mrf.mxu0
    %v2047 = vpop.f32.mrf.mxu0
    %v2048 = vadd.f32 0.0, %v2047
    %v2049 = vpop.f32.mrf.mxu0
    %2050 = vmatprep.mubr.bf16.mxu0 0
    %2051 = vmatmul.mubr.bf16.gmra.mxu0 %v1687
    %v2052 = vpop.f32.mrf.mxu0
    %v2053 = vadd.f32 0.0, %v2052
    %v2054 = vpop.f32.mrf.mxu0
    %v2055 = vpop.f32.mrf.mxu0
    %v2056 = vadd.f32 0.0, %v2055
    %v2057 = vpop.f32.mrf.mxu0
    %2058 = vdwg.mxu0
    %v2059 = vsel %vm288, %v1958, 0.0
    %v2060 = vsel %vm289, %v1884, 0.0
    %v2061 = vsel %vm290, %v1888, 0.0
    %v2062 = vsel %vm291, %v1894, 0.0
    %v2063 = vsel %vm292, %v1898, 0.0
    %v2064 = vsel %vm293, %v1904, 0.0
    %v2065 = vsel %vm294, %v1908, 0.0
    %v2066 = vsel %vm295, %v1914, 0.0
    %v2067 = vsel %vm296, %v1918, 0.0
    %v2068 = vsel %vm297, %v1924, 0.0
    %v2069 = vsel %vm298, %v1928, 0.0
    %v2070 = vsel %vm299, %v1934, 0.0
    %v2071 = vsel %vm300, %v1938, 0.0
    %v2072 = vsel %vm301, %v1944, 0.0
    %v2073 = vsel %vm302, %v1948, 0.0
    %v2074 = vsel %vm303, %v1954, 0.0
    %v2075 = vadd.f32 %v1886, %v2059
    %v2076 = vadd.f32 %v1890, %v2060
    %v2077 = vadd.f32 %v1896, %v2061
    %v2078 = vadd.f32 %v1900, %v2062
    %v2079 = vadd.f32 %v1906, %v2063
    %v2080 = vadd.f32 %v1910, %v2064
    %v2081 = vadd.f32 %v1916, %v2065
    %v2082 = vadd.f32 %v1920, %v2066
    %v2083 = vadd.f32 %v1926, %v2067
    %v2084 = vadd.f32 %v1930, %v2068
    %v2085 = vadd.f32 %v1936, %v2069
    %v2086 = vadd.f32 %v1940, %v2070
    %v2087 = vadd.f32 %v1946, %v2071
    %v2088 = vadd.f32 %v1950, %v2072
    %v2089 = vadd.f32 %v1956, %v2073
    %v2090 = vadd.f32 %v1960, %v2074
    %v2091 = vsel %vm352, %v2000, 0.0
    %v2092 = vsel %vm353, %v2005, 0.0
    %v2093 = vsel %vm354, %v2008, 0.0
    %v2094 = vsel %vm355, %v2013, 0.0
    %v2095 = vsel %vm356, %v2016, 0.0
    %v2096 = vsel %vm357, %v2021, 0.0
    %v2097 = vsel %vm358, %v2024, 0.0
    %v2098 = vsel %vm359, %v2029, 0.0
    %v2099 = vsel %vm360, %v2032, 0.0
    %v2100 = vsel %vm361, %v2037, 0.0
    %v2101 = vsel %vm362, %v2040, 0.0
    %v2102 = vsel %vm363, %v2045, 0.0
    %v2103 = vsel %vm364, %v2048, 0.0
    %v2104 = vsel %vm365, %v2053, 0.0
    %v2105 = vsel %vm366, %v2056, 0.0
    %v2106 = vsel %vm367, %v1997, 0.0
    %v2107 = vadd.f32 %v2075, %v2091
    %v2108 = vadd.f32 %v2076, %v2092
    %v2109 = vadd.f32 %v2077, %v2093
    %v2110 = vadd.f32 %v2078, %v2094
    %v2111 = vadd.f32 %v2079, %v2095
    %v2112 = vadd.f32 %v2080, %v2096
    %v2113 = vadd.f32 %v2081, %v2097
    %v2114 = vadd.f32 %v2082, %v2098
    %v2115 = vadd.f32 %v2083, %v2099
    %v2116 = vadd.f32 %v2084, %v2100
    %v2117 = vadd.f32 %v2085, %v2101
    %v2118 = vadd.f32 %v2086, %v2102
    %v2119 = vadd.f32 %v2087, %v2103
    %v2120 = vadd.f32 %v2088, %v2104
    %v2121 = vadd.f32 %v2089, %v2105
    %v2122 = vadd.f32 %v2090, %v2106
    %v2123 = vadd.f32 %v2107, %v2108
    %v2124 = vadd.f32 %v2123, %v2109
    %v2125 = vadd.f32 %v2124, %v2110
    %v2126 = vadd.f32 %v2125, %v2111
    %v2127 = vadd.f32 %v2126, %v2112
    %v2128 = vadd.f32 %v2127, %v2113
    %v2129 = vadd.f32 %v2128, %v2114
    %v2130 = vadd.f32 %v2129, %v2115
    %v2131 = vadd.f32 %v2130, %v2116
    %v2132 = vadd.f32 %v2131, %v2117
    %v2133 = vadd.f32 %v2132, %v2118
    %v2134 = vadd.f32 %v2133, %v2119
    %v2135 = vadd.f32 %v2134, %v2120
    %v2136 = vadd.f32 %v2135, %v2121
    %v2137 = vadd.f32 %v2136, %v2122
    %v2138 = vrot.slane %v2137, 4
    %v2139 = vadd.f32 %v2137, %v2138
    %v2140 = vrot.slane %v2139, 2
    %v2141 = vadd.f32 %v2139, %v2140
    %v2142 = vrot.slane %v2141, 1
    %v2143 = vadd.f32 %v2141, %v2142
    %v2144 = vmul.f32 %v2143, %v421
    %v2145 = vmul.f32 %v2107, %v2107
    %v2146 = vmul.f32 %v2108, %v2108
    %v2147 = vmul.f32 %v2109, %v2109
    %v2148 = vmul.f32 %v2110, %v2110
    %v2149 = vmul.f32 %v2111, %v2111
    %v2150 = vmul.f32 %v2112, %v2112
    %v2151 = vmul.f32 %v2113, %v2113
    %v2152 = vmul.f32 %v2114, %v2114
    %v2153 = vmul.f32 %v2115, %v2115
    %v2154 = vmul.f32 %v2116, %v2116
    %v2155 = vmul.f32 %v2117, %v2117
    %v2156 = vmul.f32 %v2118, %v2118
    %v2157 = vmul.f32 %v2119, %v2119
    %v2158 = vmul.f32 %v2120, %v2120
    %v2159 = vmul.f32 %v2121, %v2121
    %v2160 = vmul.f32 %v2122, %v2122
    %v2161 = vadd.f32 %v2145, %v2146
    %v2162 = vadd.f32 %v2161, %v2147
    %v2163 = vadd.f32 %v2162, %v2148
    %v2164 = vadd.f32 %v2163, %v2149
    %v2165 = vadd.f32 %v2164, %v2150
    %v2166 = vadd.f32 %v2165, %v2151
    %v2167 = vadd.f32 %v2166, %v2152
    %v2168 = vadd.f32 %v2167, %v2153
    %v2169 = vadd.f32 %v2168, %v2154
    %v2170 = vadd.f32 %v2169, %v2155
    %v2171 = vadd.f32 %v2170, %v2156
    %v2172 = vadd.f32 %v2171, %v2157
    %v2173 = vadd.f32 %v2172, %v2158
    %v2174 = vadd.f32 %v2173, %v2159
    %v2175 = vadd.f32 %v2174, %v2160
    %v2176 = vrot.slane %v2175, 4
    %v2177 = vadd.f32 %v2175, %v2176
    %v2178 = vrot.slane %v2177, 2
    %v2179 = vadd.f32 %v2177, %v2178
    %v2180 = vrot.slane %v2179, 1
    %v2181 = vadd.f32 %v2179, %v2180
    %v2182 = vmul.f32 %v2181, %v421
    %v2183 = vmul.f32 %v2144, %v2144
    %v2184 = vsub.f32 %v2182, %v2183
    %v2185 = vmax.f32 %v2184, 0.0
    %s2186 = scalar_lea.vmem %s3, 3
    %v2187 = vld [vmem:[%s2186] sm:$0x1]
    %v2188 = vadd.f32 %v2185, 1e-05
    %v2189 = vrsqrt.pop %v2188
    %v2190 = vmul.f32 %v2187, %v2189
    %s2191 = scalar_lea.vmem %s4, 3
    %v2192 = vld [vmem:[%s2191] sm:$0x1]
    %v2193 = vmul.f32 %v2144, %v2190
    %v2194 = vsub.f32 %v2192, %v2193
    %v2196 = vlaneseq
    %v2197 = vshrl.u32 %v2196, 7
    %v2198 = vsub.s32 0, %v2197
    %v2199 = vrot.slane %v2190, %v2198
    %v2201 = vmul.f32 %v2107, %v2199
    %v2202 = vmul.f32 %v2108, %v2199
    %v2203 = vmul.f32 %v2109, %v2199
    %v2204 = vmul.f32 %v2110, %v2199
    %v2205 = vmul.f32 %v2111, %v2199
    %v2206 = vmul.f32 %v2112, %v2199
    %v2207 = vmul.f32 %v2113, %v2199
    %v2208 = vmul.f32 %v2114, %v2199
    %v2209 = vmul.f32 %v2115, %v2199
    %v2210 = vmul.f32 %v2116, %v2199
    %v2211 = vmul.f32 %v2117, %v2199
    %v2212 = vmul.f32 %v2118, %v2199
    %v2213 = vmul.f32 %v2119, %v2199
    %v2214 = vmul.f32 %v2120, %v2199
    %v2215 = vmul.f32 %v2121, %v2199
    %v2216 = vmul.f32 %v2122, %v2199
    %v2218 = vlaneseq
    %v2219 = vshrl.u32 %v2218, 7
    %v2220 = vsub.s32 0, %v2219
    %v2221 = vrot.slane %v2194, %v2220
    %v2223 = vadd.f32 %v2201, %v2221
    %v2224 = vadd.f32 %v2202, %v2221
    %v2225 = vadd.f32 %v2203, %v2221
    %v2226 = vadd.f32 %v2204, %v2221
    %v2227 = vadd.f32 %v2205, %v2221
    %v2228 = vadd.f32 %v2206, %v2221
    %v2229 = vadd.f32 %v2207, %v2221
    %v2230 = vadd.f32 %v2208, %v2221
    %v2231 = vadd.f32 %v2209, %v2221
    %v2232 = vadd.f32 %v2210, %v2221
    %v2233 = vadd.f32 %v2211, %v2221
    %v2234 = vadd.f32 %v2212, %v2221
    %v2235 = vadd.f32 %v2213, %v2221
    %v2236 = vadd.f32 %v2214, %v2221
    %v2237 = vadd.f32 %v2215, %v2221
    %v2238 = vadd.f32 %v2216, %v2221
    %v2239 = vmax.f32 %v2223, 0.0
    %v2240 = vmax.f32 %v2224, 0.0
    %v2241 = vmax.f32 %v2225, 0.0
    %v2242 = vmax.f32 %v2226, 0.0
    %v2243 = vmax.f32 %v2227, 0.0
    %v2244 = vmax.f32 %v2228, 0.0
    %v2245 = vmax.f32 %v2229, 0.0
    %v2246 = vmax.f32 %v2230, 0.0
    %v2247 = vmax.f32 %v2231, 0.0
    %v2248 = vmax.f32 %v2232, 0.0
    %v2249 = vmax.f32 %v2233, 0.0
    %v2250 = vmax.f32 %v2234, 0.0
    %v2251 = vmax.f32 %v2235, 0.0
    %v2252 = vmax.f32 %v2236, 0.0
    %v2253 = vmax.f32 %v2237, 0.0
    %v2254 = vmax.f32 %v2238, 0.0
    %v2255 = vpack.c.bf16 %v2240, %v2239
    %v2256 = vpack.c.bf16 %v2242, %v2241
    %v2257 = vpack.c.bf16 %v2244, %v2243
    %v2258 = vpack.c.bf16 %v2246, %v2245
    %v2259 = vpack.c.bf16 %v2248, %v2247
    %v2260 = vpack.c.bf16 %v2250, %v2249
    %v2261 = vpack.c.bf16 %v2252, %v2251
    %v2262 = vpack.c.bf16 %v2254, %v2253
    %s2263 = scalar_lea.vmem [#allocation5], 576
    %v2264 = vld [vmem:[%s2263] sm:$0xff]
    %v2265 = vld [vmem:[%s2263 + $0x8] sm:$0xf]
    %v2266 = vld [vmem:[%s2263 + $0xc] sm:$0xff]
    %v2267 = vld [vmem:[%s2263 + $0x14] sm:$0xf]
    %v2268 = vld [vmem:[%s2263 + $0x18] sm:$0xff]
    %v2269 = vld [vmem:[%s2263 + $0x20] sm:$0xf]
    %v2270 = vld [vmem:[%s2263 + $0x24] sm:$0xff]
    %v2271 = vld [vmem:[%s2263 + $0x2c] sm:$0xf]
    %v2272 = vld [vmem:[%s2263 + $0x30] sm:$0xff]
    %v2273 = vld [vmem:[%s2263 + $0x38] sm:$0xf]
    %v2274 = vld [vmem:[%s2263 + $0x3c] sm:$0xff]
    %v2275 = vld [vmem:[%s2263 + $0x44] sm:$0xf]
    %v2276 = vld [vmem:[%s2263 + $0x48] sm:$0xff]
    %v2277 = vld [vmem:[%s2263 + $0x50] sm:$0xf]
    %v2278 = vld [vmem:[%s2263 + $0x54] sm:$0xff]
    %v2279 = vld [vmem:[%s2263 + $0x5c] sm:$0xf]
    %v2280 = vld [vmem:[%s2263 + $0x60] sm:$0xff]
    %v2281 = vld [vmem:[%s2263 + $0x68] sm:$0xf]
    %v2282 = vld [vmem:[%s2263 + $0x6c] sm:$0xff]
    %v2283 = vld [vmem:[%s2263 + $0x74] sm:$0xf]
    %v2284 = vld [vmem:[%s2263 + $0x78] sm:$0xff]
    %v2285 = vld [vmem:[%s2263 + $0x80] sm:$0xf]
    %v2286 = vld [vmem:[%s2263 + $0x84] sm:$0xff]
    %v2287 = vld [vmem:[%s2263 + $0x8c] sm:$0xf]
    %v2288 = vld [vmem:[%s2263 + $0x90] sm:$0xff]
    %v2289 = vld [vmem:[%s2263 + $0x98] sm:$0xf]
    %v2290 = vld [vmem:[%s2263 + $0x9c] sm:$0xff]
    %v2291 = vld [vmem:[%s2263 + $0xa4] sm:$0xf]
    %v2292 = vld [vmem:[%s2263 + $0xa8] sm:$0xff]
    %v2293 = vld [vmem:[%s2263 + $0xb0] sm:$0xf]
    %v2294 = vld [vmem:[%s2263 + $0xb4] sm:$0xff]
    %v2295 = vld [vmem:[%s2263 + $0xbc] sm:$0xf]
    %v2328 = vunpack.c.l.b16 %v2264
    %v2329 = vunpack.c.h.b16 %v2264
    %v2330 = vunpack.c.l.b16 %v2265
    %v2331 = vunpack.c.l.b16 %v2266
    %v2332 = vunpack.c.h.b16 %v2266
    %v2333 = vunpack.c.l.b16 %v2267
    %v2334 = vunpack.c.l.b16 %v2268
    %v2335 = vunpack.c.h.b16 %v2268
    %v2336 = vunpack.c.l.b16 %v2269
    %v2337 = vunpack.c.l.b16 %v2270
    %v2338 = vunpack.c.h.b16 %v2270
    %v2339 = vunpack.c.l.b16 %v2271
    %v2340 = vunpack.c.l.b16 %v2272
    %v2341 = vunpack.c.h.b16 %v2272
    %v2342 = vunpack.c.l.b16 %v2273
    %v2343 = vunpack.c.l.b16 %v2274
    %v2344 = vunpack.c.h.b16 %v2274
    %v2345 = vunpack.c.l.b16 %v2275
    %v2346 = vunpack.c.l.b16 %v2276
    %v2347 = vunpack.c.h.b16 %v2276
    %v2348 = vunpack.c.l.b16 %v2277
    %v2349 = vunpack.c.l.b16 %v2278
    %v2350 = vunpack.c.h.b16 %v2278
    %v2351 = vunpack.c.l.b16 %v2279
    %v2352 = vunpack.c.l.b16 %v2280
    %v2353 = vunpack.c.h.b16 %v2280
    %v2354 = vunpack.c.l.b16 %v2281
    %v2355 = vunpack.c.l.b16 %v2282
    %v2356 = vunpack.c.h.b16 %v2282
    %v2357 = vunpack.c.l.b16 %v2283
    %v2358 = vunpack.c.l.b16 %v2284
    %v2359 = vunpack.c.h.b16 %v2284
    %v2360 = vunpack.c.l.b16 %v2285
    %v2361 = vunpack.c.l.b16 %v2286
    %v2362 = vunpack.c.h.b16 %v2286
    %v2363 = vunpack.c.l.b16 %v2287
    %v2364 = vunpack.c.l.b16 %v2288
    %v2365 = vunpack.c.h.b16 %v2288
    %v2366 = vunpack.c.l.b16 %v2289
    %v2367 = vunpack.c.l.b16 %v2290
    %v2368 = vunpack.c.h.b16 %v2290
    %v2369 = vunpack.c.l.b16 %v2291
    %v2370 = vunpack.c.l.b16 %v2292
    %v2371 = vunpack.c.h.b16 %v2292
    %v2372 = vunpack.c.l.b16 %v2293
    %v2373 = vunpack.c.l.b16 %v2294
    %v2374 = vunpack.c.h.b16 %v2294
    %v2375 = vunpack.c.l.b16 %v2295
    %v2376 = vpack.c.b16 %v2331, %v2328
    %v2377 = vpack.c.b16 %v2332, %v2329
    %v2378 = vpack.c.b16 %v2333, %v2330
    %v2379 = vpack.c.b16 %v2337, %v2334
    %v2380 = vpack.c.b16 %v2338, %v2335
    %v2381 = vpack.c.b16 %v2339, %v2336
    %v2382 = vpack.c.b16 %v2343, %v2340
    %v2383 = vpack.c.b16 %v2344, %v2341
    %v2384 = vpack.c.b16 %v2345, %v2342
    %v2385 = vpack.c.b16 %v2349, %v2346
    %v2386 = vpack.c.b16 %v2350, %v2347
    %v2387 = vpack.c.b16 %v2351, %v2348
    %v2388 = vpack.c.b16 %v2355, %v2352
    %v2389 = vpack.c.b16 %v2356, %v2353
    %v2390 = vpack.c.b16 %v2357, %v2354
    %v2391 = vpack.c.b16 %v2361, %v2358
    %v2392 = vpack.c.b16 %v2362, %v2359
    %v2393 = vpack.c.b16 %v2363, %v2360
    %v2394 = vpack.c.b16 %v2367, %v2364
    %v2395 = vpack.c.b16 %v2368, %v2365
    %v2396 = vpack.c.b16 %v2369, %v2366
    %v2397 = vpack.c.b16 %v2373, %v2370
    %v2398 = vpack.c.b16 %v2374, %v2371
    %v2399 = vpack.c.b16 %v2375, %v2372
    %2424 = vmatprep.subr.bf16.mxu0 %v2398
    %2425 = vmatpush1.bf16.msra.mxu0 %v2397
    %2426 = vmatprep.subr.bf16.mxu0 %v2395
    %2427 = vmatpush1.bf16.msra.mxu0 %v2394
    %2428 = vmatprep.subr.bf16.mxu0 %v2392
    %2429 = vmatpush1.bf16.msra.mxu0 %v2391
    %2430 = vmatprep.subr.bf16.mxu0 %v2389
    %2431 = vmatpush1.bf16.msra.mxu0 %v2388
    %2432 = vmatprep.subr.bf16.mxu0 %v2386
    %2433 = vmatpush1.bf16.msra.mxu0 %v2385
    %2434 = vmatprep.subr.bf16.mxu0 %v2383
    %2435 = vmatpush1.bf16.msra.mxu0 %v2382
    %2436 = vmatprep.subr.bf16.mxu0 %v2380
    %2437 = vmatpush1.bf16.msra.mxu0 %v2379
    %2438 = vmatprep.subr.bf16.mxu0 %v2377
    %2439 = vmatpush1.bf16.msra.mxu0 %v2376
    %2440 = vmatprep.subr.bf16.mxu0 0
    %2441 = vmatpush2.bf16.msra.mxu0 0
    %2442 = vmatprep.subr.bf16.mxu0 0
    %2443 = vmatpush2.bf16.msra.mxu0 0
    %2444 = vmatprep.subr.bf16.mxu0 0
    %2445 = vmatpush2.bf16.msra.mxu0 0
    %2446 = vmatprep.subr.bf16.mxu0 0
    %2447 = vmatpush2.bf16.msra.mxu0 0
    %2448 = vmatprep.subr.bf16.mxu0 0
    %2449 = vmatpush2.bf16.msra.mxu0 0
    %2450 = vmatprep.subr.bf16.mxu0 0
    %2451 = vmatpush2.bf16.msra.mxu0 0
    %2452 = vmatprep.subr.bf16.mxu0 0
    %2453 = vmatpush2.bf16.msra.mxu0 0
    %2454 = vmatprep.subr.bf16.mxu0 0
    %2455 = vmatpush2.bf16.msra.mxu0 0
    %2456 = vmatprep.mubr.bf16.mxu0 0
    %2457 = vmatmul.mubr.bf16.gmra.mxu0 %v2255
    %v2458 = vpop.f32.mrf.mxu0
    %v2459 = vadd.f32 0.0, %v2458
    %v2460 = vpop.f32.mrf.mxu0
    %v2461 = vadd.f32 0.0, %v2460
    %v2462 = vpop.f32.mrf.mxu0
    %v2463 = vadd.f32 0.0, %v2462
    %v2464 = vpop.f32.mrf.mxu0
    %v2465 = vadd.f32 0.0, %v2464
    %2466 = vmatprep.mubr.bf16.mxu0 0
    %2467 = vmatmul.mubr.bf16.gmra.mxu0 %v2256
    %v2468 = vpop.f32.mrf.mxu0
    %v2469 = vadd.f32 0.0, %v2468
    %v2470 = vpop.f32.mrf.mxu0
    %v2471 = vadd.f32 0.0, %v2470
    %v2472 = vpop.f32.mrf.mxu0
    %v2473 = vadd.f32 0.0, %v2472
    %v2474 = vpop.f32.mrf.mxu0
    %v2475 = vadd.f32 0.0, %v2474
    %2476 = vmatprep.mubr.bf16.mxu0 0
    %2477 = vmatmul.mubr.bf16.gmra.mxu0 %v2257
    %v2478 = vpop.f32.mrf.mxu0
    %v2479 = vadd.f32 0.0, %v2478
    %v2480 = vpop.f32.mrf.mxu0
    %v2481 = vadd.f32 0.0, %v2480
    %v2482 = vpop.f32.mrf.mxu0
    %v2483 = vadd.f32 0.0, %v2482
    %v2484 = vpop.f32.mrf.mxu0
    %v2485 = vadd.f32 0.0, %v2484
    %2486 = vmatprep.mubr.bf16.mxu0 0
    %2487 = vmatmul.mubr.bf16.gmra.mxu0 %v2258
    %v2488 = vpop.f32.mrf.mxu0
    %v2489 = vadd.f32 0.0, %v2488
    %v2490 = vpop.f32.mrf.mxu0
    %v2491 = vadd.f32 0.0, %v2490
    %v2492 = vpop.f32.mrf.mxu0
    %v2493 = vadd.f32 0.0, %v2492
    %v2494 = vpop.f32.mrf.mxu0
    %v2495 = vadd.f32 0.0, %v2494
    %2496 = vmatprep.mubr.bf16.mxu0 0
    %2497 = vmatmul.mubr.bf16.gmra.mxu0 %v2259
    %v2498 = vpop.f32.mrf.mxu0
    %v2499 = vadd.f32 0.0, %v2498
    %v2500 = vpop.f32.mrf.mxu0
    %v2501 = vadd.f32 0.0, %v2500
    %v2502 = vpop.f32.mrf.mxu0
    %v2503 = vadd.f32 0.0, %v2502
    %v2504 = vpop.f32.mrf.mxu0
    %v2505 = vadd.f32 0.0, %v2504
    %2506 = vmatprep.mubr.bf16.mxu0 0
    %2507 = vmatmul.mubr.bf16.gmra.mxu0 %v2260
    %v2508 = vpop.f32.mrf.mxu0
    %v2509 = vadd.f32 0.0, %v2508
    %v2510 = vpop.f32.mrf.mxu0
    %v2511 = vadd.f32 0.0, %v2510
    %v2512 = vpop.f32.mrf.mxu0
    %v2513 = vadd.f32 0.0, %v2512
    %v2514 = vpop.f32.mrf.mxu0
    %v2515 = vadd.f32 0.0, %v2514
    %2516 = vmatprep.mubr.bf16.mxu0 0
    %2517 = vmatmul.mubr.bf16.gmra.mxu0 %v2261
    %v2518 = vpop.f32.mrf.mxu0
    %v2519 = vadd.f32 0.0, %v2518
    %v2520 = vpop.f32.mrf.mxu0
    %v2521 = vadd.f32 0.0, %v2520
    %v2522 = vpop.f32.mrf.mxu0
    %v2523 = vadd.f32 0.0, %v2522
    %v2524 = vpop.f32.mrf.mxu0
    %v2525 = vadd.f32 0.0, %v2524
    %2526 = vmatprep.mubr.bf16.mxu0 0
    %2527 = vmatmul.mubr.bf16.gmra.mxu0 %v2262
    %v2528 = vpop.f32.mrf.mxu0
    %v2529 = vadd.f32 0.0, %v2528
    %v2530 = vpop.f32.mrf.mxu0
    %v2531 = vadd.f32 0.0, %v2530
    %v2532 = vpop.f32.mrf.mxu0
    %v2533 = vadd.f32 0.0, %v2532
    %v2534 = vpop.f32.mrf.mxu0
    %v2535 = vadd.f32 0.0, %v2534
    %2536 = vdwg.mxu0
    %2537 = vmatprep.subr.bf16.mxu0 0
    %2538 = vmatpush1.bf16.msra.mxu0 %v2399
    %2539 = vmatprep.subr.bf16.mxu0 0
    %2540 = vmatpush1.bf16.msra.mxu0 %v2396
    %2541 = vmatprep.subr.bf16.mxu0 0
    %2542 = vmatpush1.bf16.msra.mxu0 %v2393
    %2543 = vmatprep.subr.bf16.mxu0 0
    %2544 = vmatpush1.bf16.msra.mxu0 %v2390
    %2545 = vmatprep.subr.bf16.mxu0 0
    %2546 = vmatpush1.bf16.msra.mxu0 %v2387
    %2547 = vmatprep.subr.bf16.mxu0 0
    %2548 = vmatpush1.bf16.msra.mxu0 %v2384
    %2549 = vmatprep.subr.bf16.mxu0 0
    %2550 = vmatpush1.bf16.msra.mxu0 %v2381
    %2551 = vmatprep.subr.bf16.mxu0 0
    %2552 = vmatpush1.bf16.msra.mxu0 %v2378
    %2553 = vmatprep.subr.bf16.mxu0 0
    %2554 = vmatpush2.bf16.msra.mxu0 0
    %2555 = vmatprep.subr.bf16.mxu0 0
    %2556 = vmatpush2.bf16.msra.mxu0 0
    %2557 = vmatprep.subr.bf16.mxu0 0
    %2558 = vmatpush2.bf16.msra.mxu0 0
    %2559 = vmatprep.subr.bf16.mxu0 0
    %2560 = vmatpush2.bf16.msra.mxu0 0
    %2561 = vmatprep.subr.bf16.mxu0 0
    %2562 = vmatpush2.bf16.msra.mxu0 0
    %2563 = vmatprep.subr.bf16.mxu0 0
    %2564 = vmatpush2.bf16.msra.mxu0 0
    %2565 = vmatprep.subr.bf16.mxu0 0
    %2566 = vmatpush2.bf16.msra.mxu0 0
    %2567 = vmatprep.subr.bf16.mxu0 0
    %2568 = vmatpush2.bf16.msra.mxu0 0
    %2569 = vmatprep.mubr.bf16.mxu0 0
    %2570 = vmatmul.mubr.bf16.gmra.mxu0 %v2255
    %v2571 = vpop.f32.mrf.mxu0
    %v2572 = vadd.f32 0.0, %v2571
    %v2573 = vpop.f32.mrf.mxu0
    %v2574 = vpop.f32.mrf.mxu0
    %v2575 = vadd.f32 0.0, %v2574
    %v2576 = vpop.f32.mrf.mxu0
    %2577 = vmatprep.mubr.bf16.mxu0 0
    %2578 = vmatmul.mubr.bf16.gmra.mxu0 %v2256
    %v2579 = vpop.f32.mrf.mxu0
    %v2580 = vadd.f32 0.0, %v2579
    %v2581 = vpop.f32.mrf.mxu0
    %v2582 = vpop.f32.mrf.mxu0
    %v2583 = vadd.f32 0.0, %v2582
    %v2584 = vpop.f32.mrf.mxu0
    %2585 = vmatprep.mubr.bf16.mxu0 0
    %2586 = vmatmul.mubr.bf16.gmra.mxu0 %v2257
    %v2587 = vpop.f32.mrf.mxu0
    %v2588 = vadd.f32 0.0, %v2587
    %v2589 = vpop.f32.mrf.mxu0
    %v2590 = vpop.f32.mrf.mxu0
    %v2591 = vadd.f32 0.0, %v2590
    %v2592 = vpop.f32.mrf.mxu0
    %2593 = vmatprep.mubr.bf16.mxu0 0
    %2594 = vmatmul.mubr.bf16.gmra.mxu0 %v2258
    %v2595 = vpop.f32.mrf.mxu0
    %v2596 = vadd.f32 0.0, %v2595
    %v2597 = vpop.f32.mrf.mxu0
    %v2598 = vpop.f32.mrf.mxu0
    %v2599 = vadd.f32 0.0, %v2598
    %v2600 = vpop.f32.mrf.mxu0
    %2601 = vmatprep.mubr.bf16.mxu0 0
    %2602 = vmatmul.mubr.bf16.gmra.mxu0 %v2259
    %v2603 = vpop.f32.mrf.mxu0
    %v2604 = vadd.f32 0.0, %v2603
    %v2605 = vpop.f32.mrf.mxu0
    %v2606 = vpop.f32.mrf.mxu0
    %v2607 = vadd.f32 0.0, %v2606
    %v2608 = vpop.f32.mrf.mxu0
    %2609 = vmatprep.mubr.bf16.mxu0 0
    %2610 = vmatmul.mubr.bf16.gmra.mxu0 %v2260
    %v2611 = vpop.f32.mrf.mxu0
    %v2612 = vadd.f32 0.0, %v2611
    %v2613 = vpop.f32.mrf.mxu0
    %v2614 = vpop.f32.mrf.mxu0
    %v2615 = vadd.f32 0.0, %v2614
    %v2616 = vpop.f32.mrf.mxu0
    %2617 = vmatprep.mubr.bf16.mxu0 0
    %2618 = vmatmul.mubr.bf16.gmra.mxu0 %v2261
    %v2619 = vpop.f32.mrf.mxu0
    %v2620 = vadd.f32 0.0, %v2619
    %v2621 = vpop.f32.mrf.mxu0
    %v2622 = vpop.f32.mrf.mxu0
    %v2623 = vadd.f32 0.0, %v2622
    %v2624 = vpop.f32.mrf.mxu0
    %2625 = vmatprep.mubr.bf16.mxu0 0
    %2626 = vmatmul.mubr.bf16.gmra.mxu0 %v2262
    %v2627 = vpop.f32.mrf.mxu0
    %v2628 = vadd.f32 0.0, %v2627
    %v2629 = vpop.f32.mrf.mxu0
    %v2630 = vpop.f32.mrf.mxu0
    %v2631 = vadd.f32 0.0, %v2630
    %v2632 = vpop.f32.mrf.mxu0
    %2633 = vdwg.mxu0
    %v2634 = vsel %vm288, %v2533, 0.0
    %v2635 = vsel %vm289, %v2459, 0.0
    %v2636 = vsel %vm290, %v2463, 0.0
    %v2637 = vsel %vm291, %v2469, 0.0
    %v2638 = vsel %vm292, %v2473, 0.0
    %v2639 = vsel %vm293, %v2479, 0.0
    %v2640 = vsel %vm294, %v2483, 0.0
    %v2641 = vsel %vm295, %v2489, 0.0
    %v2642 = vsel %vm296, %v2493, 0.0
    %v2643 = vsel %vm297, %v2499, 0.0
    %v2644 = vsel %vm298, %v2503, 0.0
    %v2645 = vsel %vm299, %v2509, 0.0
    %v2646 = vsel %vm300, %v2513, 0.0
    %v2647 = vsel %vm301, %v2519, 0.0
    %v2648 = vsel %vm302, %v2523, 0.0
    %v2649 = vsel %vm303, %v2529, 0.0
    %v2650 = vadd.f32 %v2461, %v2634
    %v2651 = vadd.f32 %v2465, %v2635
    %v2652 = vadd.f32 %v2471, %v2636
    %v2653 = vadd.f32 %v2475, %v2637
    %v2654 = vadd.f32 %v2481, %v2638
    %v2655 = vadd.f32 %v2485, %v2639
    %v2656 = vadd.f32 %v2491, %v2640
    %v2657 = vadd.f32 %v2495, %v2641
    %v2658 = vadd.f32 %v2501, %v2642
    %v2659 = vadd.f32 %v2505, %v2643
    %v2660 = vadd.f32 %v2511, %v2644
    %v2661 = vadd.f32 %v2515, %v2645
    %v2662 = vadd.f32 %v2521, %v2646
    %v2663 = vadd.f32 %v2525, %v2647
    %v2664 = vadd.f32 %v2531, %v2648
    %v2665 = vadd.f32 %v2535, %v2649
    %v2666 = vsel %vm352, %v2575, 0.0
    %v2667 = vsel %vm353, %v2580, 0.0
    %v2668 = vsel %vm354, %v2583, 0.0
    %v2669 = vsel %vm355, %v2588, 0.0
    %v2670 = vsel %vm356, %v2591, 0.0
    %v2671 = vsel %vm357, %v2596, 0.0
    %v2672 = vsel %vm358, %v2599, 0.0
    %v2673 = vsel %vm359, %v2604, 0.0
    %v2674 = vsel %vm360, %v2607, 0.0
    %v2675 = vsel %vm361, %v2612, 0.0
    %v2676 = vsel %vm362, %v2615, 0.0
    %v2677 = vsel %vm363, %v2620, 0.0
    %v2678 = vsel %vm364, %v2623, 0.0
    %v2679 = vsel %vm365, %v2628, 0.0
    %v2680 = vsel %vm366, %v2631, 0.0
    %v2681 = vsel %vm367, %v2572, 0.0
    %v2682 = vadd.f32 %v2650, %v2666
    %v2683 = vadd.f32 %v2651, %v2667
    %v2684 = vadd.f32 %v2652, %v2668
    %v2685 = vadd.f32 %v2653, %v2669
    %v2686 = vadd.f32 %v2654, %v2670
    %v2687 = vadd.f32 %v2655, %v2671
    %v2688 = vadd.f32 %v2656, %v2672
    %v2689 = vadd.f32 %v2657, %v2673
    %v2690 = vadd.f32 %v2658, %v2674
    %v2691 = vadd.f32 %v2659, %v2675
    %v2692 = vadd.f32 %v2660, %v2676
    %v2693 = vadd.f32 %v2661, %v2677
    %v2694 = vadd.f32 %v2662, %v2678
    %v2695 = vadd.f32 %v2663, %v2679
    %v2696 = vadd.f32 %v2664, %v2680
    %v2697 = vadd.f32 %v2665, %v2681
    %v2698 = vadd.f32 %v2682, %v2683
    %v2699 = vadd.f32 %v2698, %v2684
    %v2700 = vadd.f32 %v2699, %v2685
    %v2701 = vadd.f32 %v2700, %v2686
    %v2702 = vadd.f32 %v2701, %v2687
    %v2703 = vadd.f32 %v2702, %v2688
    %v2704 = vadd.f32 %v2703, %v2689
    %v2705 = vadd.f32 %v2704, %v2690
    %v2706 = vadd.f32 %v2705, %v2691
    %v2707 = vadd.f32 %v2706, %v2692
    %v2708 = vadd.f32 %v2707, %v2693
    %v2709 = vadd.f32 %v2708, %v2694
    %v2710 = vadd.f32 %v2709, %v2695
    %v2711 = vadd.f32 %v2710, %v2696
    %v2712 = vadd.f32 %v2711, %v2697
    %v2713 = vrot.slane %v2712, 4
    %v2714 = vadd.f32 %v2712, %v2713
    %v2715 = vrot.slane %v2714, 2
    %v2716 = vadd.f32 %v2714, %v2715
    %v2717 = vrot.slane %v2716, 1
    %v2718 = vadd.f32 %v2716, %v2717
    %v2719 = vmul.f32 %v2718, %v421
    %v2720 = vmul.f32 %v2682, %v2682
    %v2721 = vmul.f32 %v2683, %v2683
    %v2722 = vmul.f32 %v2684, %v2684
    %v2723 = vmul.f32 %v2685, %v2685
    %v2724 = vmul.f32 %v2686, %v2686
    %v2725 = vmul.f32 %v2687, %v2687
    %v2726 = vmul.f32 %v2688, %v2688
    %v2727 = vmul.f32 %v2689, %v2689
    %v2728 = vmul.f32 %v2690, %v2690
    %v2729 = vmul.f32 %v2691, %v2691
    %v2730 = vmul.f32 %v2692, %v2692
    %v2731 = vmul.f32 %v2693, %v2693
    %v2732 = vmul.f32 %v2694, %v2694
    %v2733 = vmul.f32 %v2695, %v2695
    %v2734 = vmul.f32 %v2696, %v2696
    %v2735 = vmul.f32 %v2697, %v2697
    %v2736 = vadd.f32 %v2720, %v2721
    %v2737 = vadd.f32 %v2736, %v2722
    %v2738 = vadd.f32 %v2737, %v2723
    %v2739 = vadd.f32 %v2738, %v2724
    %v2740 = vadd.f32 %v2739, %v2725
    %v2741 = vadd.f32 %v2740, %v2726
    %v2742 = vadd.f32 %v2741, %v2727
    %v2743 = vadd.f32 %v2742, %v2728
    %v2744 = vadd.f32 %v2743, %v2729
    %v2745 = vadd.f32 %v2744, %v2730
    %v2746 = vadd.f32 %v2745, %v2731
    %v2747 = vadd.f32 %v2746, %v2732
    %v2748 = vadd.f32 %v2747, %v2733
    %v2749 = vadd.f32 %v2748, %v2734
    %v2750 = vadd.f32 %v2749, %v2735
    %v2751 = vrot.slane %v2750, 4
    %v2752 = vadd.f32 %v2750, %v2751
    %v2753 = vrot.slane %v2752, 2
    %v2754 = vadd.f32 %v2752, %v2753
    %v2755 = vrot.slane %v2754, 1
    %v2756 = vadd.f32 %v2754, %v2755
    %v2757 = vmul.f32 %v2756, %v421
    %v2758 = vmul.f32 %v2719, %v2719
    %v2759 = vsub.f32 %v2757, %v2758
    %v2760 = vmax.f32 %v2759, 0.0
    %s2761 = scalar_lea.vmem %s3, 4
    %v2762 = vld [vmem:[%s2761] sm:$0x1]
    %v2763 = vadd.f32 %v2760, 1e-05
    %v2764 = vrsqrt.pop %v2763
    %v2765 = vmul.f32 %v2762, %v2764
    %s2766 = scalar_lea.vmem %s4, 4
    %v2767 = vld [vmem:[%s2766] sm:$0x1]
    %v2768 = vmul.f32 %v2719, %v2765
    %v2769 = vsub.f32 %v2767, %v2768
    %v2771 = vlaneseq
    %v2772 = vshrl.u32 %v2771, 7
    %v2773 = vsub.s32 0, %v2772
    %v2774 = vrot.slane %v2765, %v2773
    %v2776 = vmul.f32 %v2697, %v2774
    %v2778 = vlaneseq
    %v2779 = vshrl.u32 %v2778, 7
    %v2780 = vsub.s32 0, %v2779
    %v2781 = vrot.slane %v2769, %v2780
    %v2783 = vadd.f32 %v2776, %v2781
    %v2784 = vmax.f32 %v2783, 0.0
    %v2785 = vld [vmem:[%s5] sm:$0xff]
    %v2786 = vld [vmem:[%s5 + $0x8] sm:$0xff]
    %v2787 = vld [vmem:[%s5 + $0x10] sm:$0xff]
    %v2788 = vld [vmem:[%s5 + $0x18] sm:$0xff]
    %v2789 = vld [vmem:[%s5 + $0x20] sm:$0xff]
    %v2790 = vld [vmem:[%s5 + $0x28] sm:$0xff]
    %v2791 = vld [vmem:[%s5 + $0x30] sm:$0xff]
    %v2792 = vld [vmem:[%s5 + $0x38] sm:$0xff]
    %v2793 = vld [vmem:[%s5 + $0x40] sm:$0xff]
    %v2794 = vld [vmem:[%s5 + $0x48] sm:$0xff]
    %v2795 = vld [vmem:[%s5 + $0x50] sm:$0xff]
    %v2796 = vld [vmem:[%s5 + $0x58] sm:$0xff]
    %v2797 = vld [vmem:[%s5 + $0x60] sm:$0xff]
    %v2798 = vld [vmem:[%s5 + $0x68] sm:$0xff]
    %v2799 = vld [vmem:[%s5 + $0x70] sm:$0xff]
    %v2800 = vld [vmem:[%s5 + $0x78] sm:$0xff]
    %v2801 = vld [vmem:[%s6] sm:$0x1]
    %v2803 = vlaneseq
    %v2804 = vshrl.u32 %v2803, 7
    %v2805 = vsub.s32 0, %v2804
    %v2806 = vrot.slane %v2801, %v2805
    %2808 = vmatprep.subr.mxu0 0.0
    %2809 = vmatpush1.msra.mxu0 %v2800
    %2810 = vmatprep.subr.mxu0 0.0
    %2811 = vmatpush1.msra.mxu0 %v2799
    %2812 = vmatprep.subr.mxu0 0.0
    %2813 = vmatpush1.msra.mxu0 %v2798
    %2814 = vmatprep.subr.mxu0 0.0
    %2815 = vmatpush1.msra.mxu0 %v2797
    %2816 = vmatprep.subr.mxu0 0.0
    %2817 = vmatpush1.msra.mxu0 %v2796
    %2818 = vmatprep.subr.mxu0 0.0
    %2819 = vmatpush1.msra.mxu0 %v2795
    %2820 = vmatprep.subr.mxu0 0.0
    %2821 = vmatpush1.msra.mxu0 %v2794
    %2822 = vmatprep.subr.mxu0 0.0
    %2823 = vmatpush1.msra.mxu0 %v2793
    %2824 = vmatprep.subr.mxu0 0.0
    %2825 = vmatpush1.msra.mxu0 %v2792
    %2826 = vmatprep.subr.mxu0 0.0
    %2827 = vmatpush1.msra.mxu0 %v2791
    %2828 = vmatprep.subr.mxu0 0.0
    %2829 = vmatpush1.msra.mxu0 %v2790
    %2830 = vmatprep.subr.mxu0 0.0
    %2831 = vmatpush1.msra.mxu0 %v2789
    %2832 = vmatprep.subr.mxu0 0.0
    %2833 = vmatpush1.msra.mxu0 %v2788
    %2834 = vmatprep.subr.mxu0 0.0
    %2835 = vmatpush1.msra.mxu0 %v2787
    %2836 = vmatprep.subr.mxu0 0.0
    %2837 = vmatpush1.msra.mxu0 %v2786
    %2838 = vmatprep.subr.mxu0 0.0
    %2839 = vmatpush1.msra.mxu0 %v2785
    %2840 = vmatprep.subr.mxu0 0.0
    %2841 = vmatpush2.msra.mxu0 0.0
    %2842 = vmatprep.subr.mxu0 0.0
    %2843 = vmatpush2.msra.mxu0 0.0
    %2844 = vmatprep.subr.mxu0 0.0
    %2845 = vmatpush2.msra.mxu0 0.0
    %2846 = vmatprep.subr.mxu0 0.0
    %2847 = vmatpush2.msra.mxu0 0.0
    %2848 = vmatprep.subr.mxu0 0.0
    %2849 = vmatpush2.msra.mxu0 0.0
    %2850 = vmatprep.subr.mxu0 0.0
    %2851 = vmatpush2.msra.mxu0 0.0
    %2852 = vmatprep.subr.mxu0 0.0
    %2853 = vmatpush2.msra.mxu0 0.0
    %2854 = vmatprep.subr.mxu0 0.0
    %2855 = vmatpush2.msra.mxu0 0.0
    %2856 = vmatprep.subr.mxu0 0.0
    %2857 = vmatpush2.msra.mxu0 0.0
    %2858 = vmatprep.subr.mxu0 0.0
    %2859 = vmatpush2.msra.mxu0 0.0
    %2860 = vmatprep.subr.mxu0 0.0
    %2861 = vmatpush2.msra.mxu0 0.0
    %2862 = vmatprep.subr.mxu0 0.0
    %2863 = vmatpush2.msra.mxu0 0.0
    %2864 = vmatprep.subr.mxu0 0.0
    %2865 = vmatpush2.msra.mxu0 0.0
    %2866 = vmatprep.subr.mxu0 0.0
    %2867 = vmatpush2.msra.mxu0 0.0
    %2868 = vmatprep.subr.mxu0 0.0
    %2869 = vmatpush2.msra.mxu0 0.0
    %2870 = vmatprep.subr.mxu0 0.0
    %2871 = vmatpush2.msra.mxu0 0.0
    %2872 = vmatprep.mubr.f32.mxu0 0.0
    %2873 = vmatmul.mubr.f32.gmra.mxu0 %v2784
    %v2874 = vpop.f32.mrf.mxu0
    %v2875 = vadd.f32 %v2806, %v2874
    %v2876 = vpop.f32.mrf.mxu0
    %2877 = vdwg.mxu0
    %2878 = vst [vmem:[#allocation7] sm:$0xff] %v2875
    // Predicated region
    $region38: #{tpu_custom_call.1} parent=1 // pred_check
      _
    $region39: #{tpu_custom_call.1} parent=1 // pred_check_branch
      %2880 = sbr.rel (0) target = $region41
    $region40: #{tpu_custom_call.1} parent=1 // pred_region
      %s2882 = ssub.s32 128, 128
      %2883 = vsyncadd [#allocation4], %s2882
      %s2885 = sshll.u32 [#allocation7], 4
      %s2886 = int_to_ptr.vmem [resolvable:$true] %s2885
      %2888 = dma.vmem_to_hbm [thread:$0]  %s2886, 128, %s7, [#allocation4]
    $region41: #{tpu_custom_call.1} parent=1 // pred_fallthru
      _
    // Predicated region
    $region42: #{tpu_custom_call.1} parent=1 // pred_check
      _
    $region43: #{tpu_custom_call.1} parent=1 // pred_check_branch
      %2890 = sbr.rel (0) target = $region45
    $region44: #{tpu_custom_call.1} parent=1 // pred_region
      %2891 = dma.done [#allocation4], 128
    $region45: #{tpu_custom_call.1} parent=1 // pred_fallthru
      _
    %2892 = vsyncpa [#allocation3], 1
    %2893 = vsyncpa [#allocation6], 1
    %2894 = vsyncpa [#allocation4], 1

</llo_original>
